<compile_context>
chip_gen: v6e
topology: v6e:2x2x1
jax: 0.10.0
libtpu: 0.0.40
codegen_flags: <defaults>
</compile_context>

<pallas_src>
import functools

import jax
import jax.numpy as jnp
from jax.experimental import pallas as pl
from jax.experimental.pallas import tpu as pltpu


_VMEM_LIMIT = 32 * 1024 * 1024  # explicit scoped-VMEM limit (covers all tiles)


def _pick_row_tile(M, tm_max):
    """Row-tile size: a multiple of 16 (safe for bf16 sublane packing) or the
    full M, aiming for >= 2 grid steps so v7x's two TensorCores both get work
    under dimension_semantics=('parallel',)."""
    if M <= 16:
        return M                       # single full-array block
    tm = min(tm_max, (M + 1) // 2)     # >= 2 steps whenever M > tm_max or not tiny
    tm = max(16, ((tm + 15) // 16) * 16)
    return tm


# ----------------------------------------------------------------------------
# Pallas kernels
# ----------------------------------------------------------------------------
def _conv_relu_pool_kernel(p_ref, w_ref, b_ref, o_ref):
    """Fused 3x3 conv (stride 1, pad 1) + bias + ReLU + 2x2 max-pool.

    p_ref : (TM, 16*Cin) bf16  -- per pooled pixel, its flattened 4x4 input
            window (union of the four 3x3 receptive fields in the pool window)
    w_ref : (4, 16*Cin, Cout) bf16 -- 3x3 kernel zero-embedded at each of the
            four pool-phase offsets inside the 4x4 window
    b_ref : (1, Cout) f32
    o_ref : (TM, Cout) bf16   -- pooled activation rows (NHWC order)
    """
    patches = p_ref[...]
    acc = jnp.dot(patches, w_ref[0], preferred_element_type=jnp.float32)
    for k in range(1, 4):
        acc = jnp.maximum(
            acc, jnp.dot(patches, w_ref[k], preferred_element_type=jnp.float32))
    # Bias + ReLU hoisted out of the phase loop (exactly equivalent).
    o_ref[...] = jnp.maximum(acc + b_ref[...], 0.0).astype(o_ref.dtype)


def _mlp_head_kernel(x_ref, w1_ref, b1_ref, w2_ref, b2_ref, o_ref):
    """Fused fc1 (+bias+ReLU) -> fc2 (+bias). Both weights stay VMEM-resident.
    bf16 matmul inputs, f32 accumulation, f32 (lane-dense 128-wide) output."""
    h = jnp.dot(x_ref[...], w1_ref[...], preferred_element_type=jnp.float32)
    h = jnp.maximum(h + b1_ref[...], 0.0).astype(jnp.bfloat16)
    out = jnp.dot(h, w2_ref[...], preferred_element_type=jnp.float32)
    o_ref[...] = (out + b2_ref[...]).astype(o_ref.dtype)


# ----------------------------------------------------------------------------
# Pallas wrappers
# ----------------------------------------------------------------------------
def conv3x3_relu_pool(x, w4, bias, *, tm=4096):
    """x: (B, H, W, Cin) NHWC bf16; w4: (4, 16*Cin, Cout) bf16 phase-embedded
    weights; returns pooled activation (B, H//2, W//2, Cout) bf16."""
    B, H, W, Cin = x.shape
    _, K, Cout = w4.shape
    assert K == 16 * Cin
    Ho, Wo = H // 2, W // 2
    M = B * Ho * Wo

    # XLA-side layout glue: one 4x4-window patch per pooled pixel (16*Cin
    # values), shared by all four pool phases.
    # TODO(synk): move this gather in-kernel to remove the remaining 4x blow-up.
    xp = jnp.pad(x, ((0, 0), (1, 1), (1, 1), (0, 0)))
    cols = [xp[:, r:r + 2 * Ho:2, c:c + 2 * Wo:2, :]
            for r in range(4) for c in range(4)]
    patches = jnp.concatenate(cols, axis=-1).reshape(M, K)

    tm_eff = _pick_row_tile(M, tm)
    grid = (pl.cdiv(M, tm_eff),)

    out = pl.pallas_call(
        _conv_relu_pool_kernel,
        out_shape=jax.ShapeDtypeStruct((M, Cout), jnp.bfloat16),
        grid=grid,
        in_specs=[
            pl.BlockSpec((tm_eff, K), lambda i: (i, 0)),
            pl.BlockSpec((4, K, Cout), lambda i: (0, 0, 0)),
            pl.BlockSpec((1, Cout), lambda i: (0, 0)),
        ],
        out_specs=pl.BlockSpec((tm_eff, Cout), lambda i: (i, 0)),
        compiler_params=pltpu.CompilerParams(
            dimension_semantics=("parallel",),
            vmem_limit_bytes=_VMEM_LIMIT),
    )(patches, w4, bias.reshape(1, Cout))
    return out.reshape(B, Ho, Wo, Cout)


def mlp_head(x, w1, b1, w2p, b2p, *, tm=1024):
    """Fused classifier head: relu(x @ w1 + b1) @ w2p + b2p.
    x: (M, K) bf16; w1: (K, H) bf16; w2p: (H, 128) bf16 (fc2 zero-padded)."""
    M, K = x.shape
    Hd = w1.shape[1]
    N = w2p.shape[1]
    tm_eff = _pick_row_tile(M, tm)
    grid = (pl.cdiv(M, tm_eff),)

    return pl.pallas_call(
        _mlp_head_kernel,
        out_shape=jax.ShapeDtypeStruct((M, N), jnp.float32),
        grid=grid,
        in_specs=[
            pl.BlockSpec((tm_eff, K), lambda i: (i, 0)),
            pl.BlockSpec((K, Hd), lambda i: (0, 0)),
            pl.BlockSpec((1, Hd), lambda i: (0, 0)),
            pl.BlockSpec((Hd, N), lambda i: (0, 0)),
            pl.BlockSpec((1, N), lambda i: (0, 0)),
        ],
        out_specs=pl.BlockSpec((tm_eff, N), lambda i: (i, 0)),
        compiler_params=pltpu.CompilerParams(
            dimension_semantics=("parallel",),
            vmem_limit_bytes=_VMEM_LIMIT),
    )(x, w1, b1.reshape(1, Hd), w2p, b2p.reshape(1, N))


# ----------------------------------------------------------------------------
# Parameters (PyTorch-convention init) + one-time kernel-layout prep
# ----------------------------------------------------------------------------
def init_params(key, num_classes=10):
    ks = jax.random.split(key, 8)
    scale = 0.05
    return {
        # conv weights in HWIO; fc1 input features in PyTorch (C, H, W) order.
        "w_conv1": scale * jax.random.normal(ks[0], (3, 3, 1, 16), jnp.float32),
        "b_conv1": scale * jax.random.normal(ks[1], (16,), jnp.float32),
        "w_conv2": scale * jax.random.normal(ks[2], (3, 3, 16, 32), jnp.float32),
        "b_conv2": scale * jax.random.normal(ks[3], (32,), jnp.float32),
        "w_fc1": scale * jax.random.normal(ks[4], (32 * 7 * 7, 128), jnp.float32),
        "b_fc1": scale * jax.random.normal(ks[5], (128,), jnp.float32),
        "w_fc2": scale * jax.random.normal(ks[6], (128, num_classes), jnp.float32),
        "b_fc2": scale * jax.random.normal(ks[7], (num_classes,), jnp.float32),
    }


def _phase_embed(w_hwio):
    """(3,3,Cin,Cout) -> (4, 16*Cin, Cout): the 3x3 kernel zero-embedded at
    each of the four (p, q) pool-phase offsets inside a 4x4 window patch."""
    Cin, Cout = w_hwio.shape[2], w_hwio.shape[3]
    phases = []
    for p in (0, 1):
        for q in (0, 1):
            w4 = jnp.zeros((4, 4, Cin, Cout), w_hwio.dtype)
            w4 = w4.at[p:p + 3, q:q + 3, :, :].set(w_hwio)
            phases.append(w4.reshape(16 * Cin, Cout))
    return jnp.stack(phases, axis=0)


def prepare_params(params, num_classes=10, n_pad=128):
    """One-time layout/dtype transforms: phase-embedded bf16 conv weights,
    transpose-free bf16 fc1, lane-dense (zero-padded to 128) bf16 fc2."""
    # fc1 rows: PyTorch (C,H,W)-flatten order -> NHWC (H,W,C)-flatten order.
    w_fc1_hwc = (params["w_fc1"].reshape(32, 7, 7, 128)
                 .transpose(1, 2, 0, 3).reshape(32 * 7 * 7, 128))
    w_fc2_p = jnp.zeros((128, n_pad), jnp.float32).at[:, :num_classes].set(
        params["w_fc2"])
    b_fc2_p = jnp.zeros((n_pad,), jnp.float32).at[:num_classes].set(
        params["b_fc2"])
    return {
        "w_conv1": _phase_embed(params["w_conv1"]).astype(jnp.bfloat16),
        "b_conv1": params["b_conv1"],
        "w_conv2": _phase_embed(params["w_conv2"]).astype(jnp.bfloat16),
        "b_conv2": params["b_conv2"],
        "w_fc1": w_fc1_hwc.astype(jnp.bfloat16),
        "b_fc1": params["b_fc1"],
        "w_fc2": w_fc2_p.astype(jnp.bfloat16),
        "b_fc2": b_fc2_p,
    }


# ----------------------------------------------------------------------------
# SimpleCNN forward
# ----------------------------------------------------------------------------
@functools.partial(jax.jit, static_argnames=("num_classes",))
def simple_cnn_forward(x_nchw, prep, num_classes=10):
    B = x_nchw.shape[0]
    # NCHW -> NHWC is a free reshape because Cin == 1; bf16 halves all
    # downstream DMA (all matmuls still accumulate in f32).
    x = x_nchw.reshape(B, 28, 28, 1).astype(jnp.bfloat16)

    x = conv3x3_relu_pool(x, prep["w_conv1"], prep["b_conv1"], tm=8192)  # (B,14,14,16)
    x = conv3x3_relu_pool(x, prep["w_conv2"], prep["b_conv2"], tm=4096)  # (B, 7, 7,32)

    # NHWC flatten; w_fc1 rows were pre-permuted, so no transpose needed here.
    x = x.reshape(B, 7 * 7 * 32)                                          # (B, 1568)

    logits_p = mlp_head(x, prep["w_fc1"], prep["b_fc1"],
                        prep["w_fc2"], prep["b_fc2"], tm=1024)            # (B, 128)
    return logits_p[:, :num_classes]


# ----------------------------------------------------------------------------
# Plain-JAX reference (PyTorch semantics) for the sanity check
# ----------------------------------------------------------------------------
def reference_forward(x_nchw, params):
    x = jnp.transpose(x_nchw, (0, 2, 3, 1)).astype(jnp.float32)

    def conv(x, w, b):
        y = jax.lax.conv_general_dilated(
            x, w, window_strides=(1, 1), padding="SAME",
            dimension_numbers=("NHWC", "HWIO", "NHWC"))
        return jax.nn.relu(y + b)

    def pool(x):
        return jax.lax.reduce_window(
            x, -jnp.inf, jax.lax.max, (1, 2, 2, 1), (1, 2, 2, 1), "VALID")

    x = pool(conv(x, params["w_conv1"], params["b_conv1"]))
    x = pool(conv(x, params["w_conv2"], params["b_conv2"]))
    # PyTorch nn.Flatten flattens NCHW, i.e. (C, H, W) order.
    x = jnp.transpose(x, (0, 3, 1, 2)).reshape(x.shape[0], -1)
    x = jax.nn.relu(x @ params["w_fc1"] + params["b_fc1"])
    return x @ params["w_fc2"] + params["b_fc2"]


if __name__ == "__main__":
    key = jax.random.PRNGKey(0)
    k_x, k_p = jax.random.split(key)

    # MNIST-shaped input: the classifier's 32*7*7 flatten requires 28x28.
    B = 2
    x = jax.random.normal(k_x, (B, 1, 28, 28), jnp.float32)
    params = init_params(k_p, num_classes=10)
    prep = prepare_params(params, num_classes=10)

    logits = simple_cnn_forward(x, prep, num_classes=10)
    logits = jax.block_until_ready(logits)
    assert logits.shape == (B, 10), logits.shape

    ref = reference_forward(x, params)
    err = float(jnp.max(jnp.abs(logits - ref)))
    # bf16 matmul operands with f32 accumulation -> error well inside this.
    assert jnp.allclose(logits, ref, rtol=5e-2, atol=2e-2), ("mismatch", err)

    print("KERNEL_OK")
</pallas_src>

<mosaic_0001>
module attributes {stable_mosaic.version = 11 : i64} {
  func.func @_conv_relu_pool_kernel(%arg0: i32, %arg1: memref<208x16xbf16, #tpu.memory_space<vmem>>, %arg2: memref<4x16x16xbf16, #tpu.memory_space<vmem>>, %arg3: memref<1x16xf32, #tpu.memory_space<vmem>>, %arg4: memref<208x16xbf16, #tpu.memory_space<vmem>>) attributes {dimension_semantics = [#tpu.dimension_semantics<parallel>], iteration_bounds = array<i64: 2>, scalar_prefetch = 0 : i64, scratch_operands = 0 : i64, tpu.core_type = #tpu.core_type<tc>, window_params = [{transform_indices = @transform_0, window_bounds = array<i64: 208, 16>}, {pipeline_mode = #tpu.pipeline_mode<synchronous>, transform_indices = @transform_1, window_bounds = array<i64: 4, 16, 16>}, {pipeline_mode = #tpu.pipeline_mode<synchronous>, transform_indices = @transform_2, window_bounds = array<i64: 1, 16>}, {transform_indices = @transform_3, window_bounds = array<i64: 208, 16>}]} {
    %c0 = arith.constant 0 : index
    %c0_0 = arith.constant 0 : index
    %0 = vector.load %arg1[%c0, %c0_0] : memref<208x16xbf16, #tpu.memory_space<vmem>>, vector<208x16xbf16>
    %c0_1 = arith.constant 0 : index
    %c0_2 = arith.constant 0 : index
    %c0_3 = arith.constant 0 : index
    %1 = vector.load %arg2[%c0_1, %c0_2, %c0_3] : memref<4x16x16xbf16, #tpu.memory_space<vmem>>, vector<1x16x16xbf16>
    %2 = vector.shape_cast %1 : vector<1x16x16xbf16> to vector<16x16xbf16>
    %cst = arith.constant dense<0.000000e+00> : vector<208x16xf32>
    %3 = tpu.matmul %0, %2, %cst {dimension_numbers = #tpu.dot_dimension_numbers<[1], [0], [0], [1], [0, 0, 1, 1], [], []>} : vector<208x16xbf16>, vector<16x16xbf16>, vector<208x16xf32> -> vector<208x16xf32>
    %c1 = arith.constant 1 : index
    %c0_4 = arith.constant 0 : index
    %c0_5 = arith.constant 0 : index
    %4 = vector.load %arg2[%c1, %c0_4, %c0_5] : memref<4x16x16xbf16, #tpu.memory_space<vmem>>, vector<1x16x16xbf16>
    %5 = vector.shape_cast %4 : vector<1x16x16xbf16> to vector<16x16xbf16>
    %cst_6 = arith.constant dense<0.000000e+00> : vector<208x16xf32>
    %6 = tpu.matmul %0, %5, %cst_6 {dimension_numbers = #tpu.dot_dimension_numbers<[1], [0], [0], [1], [0, 0, 1, 1], [], []>} : vector<208x16xbf16>, vector<16x16xbf16>, vector<208x16xf32> -> vector<208x16xf32>
    %7 = arith.maximumf %3, %6 : vector<208x16xf32>
    %c2 = arith.constant 2 : index
    %c0_7 = arith.constant 0 : index
    %c0_8 = arith.constant 0 : index
    %8 = vector.load %arg2[%c2, %c0_7, %c0_8] : memref<4x16x16xbf16, #tpu.memory_space<vmem>>, vector<1x16x16xbf16>
    %9 = vector.shape_cast %8 : vector<1x16x16xbf16> to vector<16x16xbf16>
    %cst_9 = arith.constant dense<0.000000e+00> : vector<208x16xf32>
    %10 = tpu.matmul %0, %9, %cst_9 {dimension_numbers = #tpu.dot_dimension_numbers<[1], [0], [0], [1], [0, 0, 1, 1], [], []>} : vector<208x16xbf16>, vector<16x16xbf16>, vector<208x16xf32> -> vector<208x16xf32>
    %11 = arith.maximumf %7, %10 : vector<208x16xf32>
    %c3 = arith.constant 3 : index
    %c0_10 = arith.constant 0 : index
    %c0_11 = arith.constant 0 : index
    %12 = vector.load %arg2[%c3, %c0_10, %c0_11] : memref<4x16x16xbf16, #tpu.memory_space<vmem>>, vector<1x16x16xbf16>
    %13 = vector.shape_cast %12 : vector<1x16x16xbf16> to vector<16x16xbf16>
    %cst_12 = arith.constant dense<0.000000e+00> : vector<208x16xf32>
    %14 = tpu.matmul %0, %13, %cst_12 {dimension_numbers = #tpu.dot_dimension_numbers<[1], [0], [0], [1], [0, 0, 1, 1], [], []>} : vector<208x16xbf16>, vector<16x16xbf16>, vector<208x16xf32> -> vector<208x16xf32>
    %15 = arith.maximumf %11, %14 : vector<208x16xf32>
    %c0_13 = arith.constant 0 : index
    %c0_14 = arith.constant 0 : index
    %16 = vector.load %arg3[%c0_13, %c0_14] : memref<1x16xf32, #tpu.memory_space<vmem>>, vector<1x16xf32>
    %17 = vector.broadcast %16 : vector<1x16xf32> to vector<208x16xf32>
    %18 = arith.addf %15, %17 : vector<208x16xf32>
    %cst_15 = arith.constant 0.000000e+00 : f32
    %19 = vector.broadcast %cst_15 : f32 to vector<208x16xf32>
    %20 = arith.maximumf %18, %19 : vector<208x16xf32>
    %21 = arith.truncf %20 : vector<208x16xf32> to vector<208x16xbf16>
    %c0_16 = arith.constant 0 : index
    %c0_17 = arith.constant 0 : index
    %22 = vector.load %arg4[%c0_16, %c0_17] : memref<208x16xbf16, #tpu.memory_space<vmem>>, vector<208x16xbf16>
    tpu.vector_store %arg4[%c0_16, %c0_17], %21 {strides = array<i32>} : memref<208x16xbf16, #tpu.memory_space<vmem>>, vector<208x16xbf16>,
    return
  }
  func.func @transform_0(%arg0: i32) -> (i32, i32) {
    %c0_i32 = arith.constant 0 : i32
    %c0_i32_0 = arith.constant 0 : i32
    return %arg0, %c0_i32 : i32, i32
  }
  func.func @transform_1(%arg0: i32) -> (i32, i32, i32) {
    %c0_i32 = arith.constant 0 : i32
    %c0_i32_0 = arith.constant 0 : i32
    %c0_i32_1 = arith.constant 0 : i32
    %c0_i32_2 = arith.constant 0 : i32
    return %c0_i32, %c0_i32_0, %c0_i32_1 : i32, i32, i32
  }
  func.func @transform_2(%arg0: i32) -> (i32, i32) {
    %c0_i32 = arith.constant 0 : i32
    %c0_i32_0 = arith.constant 0 : i32
    %c0_i32_1 = arith.constant 0 : i32
    return %c0_i32, %c0_i32_0 : i32, i32
  }
  func.func @transform_3(%arg0: i32) -> (i32, i32) {
    %c0_i32 = arith.constant 0 : i32
    %c0_i32_0 = arith.constant 0 : i32
    return %arg0, %c0_i32 : i32, i32
  }
}

module attributes {stable_mosaic.version = 11 : i64} {
  func.func @_conv_relu_pool_kernel(%arg0: i32, %arg1: memref<64x256xbf16, #tpu.memory_space<vmem>>, %arg2: memref<4x256x32xbf16, #tpu.memory_space<vmem>>, %arg3: memref<1x32xf32, #tpu.memory_space<vmem>>, %arg4: memref<64x32xbf16, #tpu.memory_space<vmem>>) attributes {dimension_semantics = [#tpu.dimension_semantics<parallel>], iteration_bounds = array<i64: 2>, scalar_prefetch = 0 : i64, scratch_operands = 0 : i64, tpu.core_type = #tpu.core_type<tc>, window_params = [{transform_indices = @transform_0, window_bounds = array<i64: 64, 256>}, {pipeline_mode = #tpu.pipeline_mode<synchronous>, transform_indices = @transform_1, window_bounds = array<i64: 4, 256, 32>}, {pipeline_mode = #tpu.pipeline_mode<synchronous>, transform_indices = @transform_2, window_bounds = array<i64: 1, 32>}, {transform_indices = @transform_3, window_bounds = array<i64: 64, 32>}]} {
    %c0 = arith.constant 0 : index
    %c0_0 = arith.constant 0 : index
    %0 = vector.load %arg1[%c0, %c0_0] : memref<64x256xbf16, #tpu.memory_space<vmem>>, vector<64x256xbf16>
    %c0_1 = arith.constant 0 : index
    %c0_2 = arith.constant 0 : index
    %c0_3 = arith.constant 0 : index
    %1 = vector.load %arg2[%c0_1, %c0_2, %c0_3] : memref<4x256x32xbf16, #tpu.memory_space<vmem>>, vector<1x256x32xbf16>
    %2 = vector.shape_cast %1 : vector<1x256x32xbf16> to vector<256x32xbf16>
    %cst = arith.constant dense<0.000000e+00> : vector<64x32xf32>
    %3 = tpu.matmul %0, %2, %cst {dimension_numbers = #tpu.dot_dimension_numbers<[1], [0], [0], [1], [0, 0, 1, 1], [], []>} : vector<64x256xbf16>, vector<256x32xbf16>, vector<64x32xf32> -> vector<64x32xf32>
    %c1 = arith.constant 1 : index
    %c0_4 = arith.constant 0 : index
    %c0_5 = arith.constant 0 : index
    %4 = vector.load %arg2[%c1, %c0_4, %c0_5] : memref<4x256x32xbf16, #tpu.memory_space<vmem>>, vector<1x256x32xbf16>
    %5 = vector.shape_cast %4 : vector<1x256x32xbf16> to vector<256x32xbf16>
    %cst_6 = arith.constant dense<0.000000e+00> : vector<64x32xf32>
    %6 = tpu.matmul %0, %5, %cst_6 {dimension_numbers = #tpu.dot_dimension_numbers<[1], [0], [0], [1], [0, 0, 1, 1], [], []>} : vector<64x256xbf16>, vector<256x32xbf16>, vector<64x32xf32> -> vector<64x32xf32>
    %7 = arith.maximumf %3, %6 : vector<64x32xf32>
    %c2 = arith.constant 2 : index
    %c0_7 = arith.constant 0 : index
    %c0_8 = arith.constant 0 : index
    %8 = vector.load %arg2[%c2, %c0_7, %c0_8] : memref<4x256x32xbf16, #tpu.memory_space<vmem>>, vector<1x256x32xbf16>
    %9 = vector.shape_cast %8 : vector<1x256x32xbf16> to vector<256x32xbf16>
    %cst_9 = arith.constant dense<0.000000e+00> : vector<64x32xf32>
    %10 = tpu.matmul %0, %9, %cst_9 {dimension_numbers = #tpu.dot_dimension_numbers<[1], [0], [0], [1], [0, 0, 1, 1], [], []>} : vector<64x256xbf16>, vector<256x32xbf16>, vector<64x32xf32> -> vector<64x32xf32>
    %11 = arith.maximumf %7, %10 : vector<64x32xf32>
    %c3 = arith.constant 3 : index
    %c0_10 = arith.constant 0 : index
    %c0_11 = arith.constant 0 : index
    %12 = vector.load %arg2[%c3, %c0_10, %c0_11] : memref<4x256x32xbf16, #tpu.memory_space<vmem>>, vector<1x256x32xbf16>
    %13 = vector.shape_cast %12 : vector<1x256x32xbf16> to vector<256x32xbf16>
    %cst_12 = arith.constant dense<0.000000e+00> : vector<64x32xf32>
    %14 = tpu.matmul %0, %13, %cst_12 {dimension_numbers = #tpu.dot_dimension_numbers<[1], [0], [0], [1], [0, 0, 1, 1], [], []>} : vector<64x256xbf16>, vector<256x32xbf16>, vector<64x32xf32> -> vector<64x32xf32>
    %15 = arith.maximumf %11, %14 : vector<64x32xf32>
    %c0_13 = arith.constant 0 : index
    %c0_14 = arith.constant 0 : index
    %16 = vector.load %arg3[%c0_13, %c0_14] : memref<1x32xf32, #tpu.memory_space<vmem>>, vector<1x32xf32>
    %17 = vector.broadcast %16 : vector<1x32xf32> to vector<64x32xf32>
    %18 = arith.addf %15, %17 : vector<64x32xf32>
    %cst_15 = arith.constant 0.000000e+00 : f32
    %19 = vector.broadcast %cst_15 : f32 to vector<64x32xf32>
    %20 = arith.maximumf %18, %19 : vector<64x32xf32>
    %21 = arith.truncf %20 : vector<64x32xf32> to vector<64x32xbf16>
    %c0_16 = arith.constant 0 : index
    %c0_17 = arith.constant 0 : index
    %22 = vector.load %arg4[%c0_16, %c0_17] : memref<64x32xbf16, #tpu.memory_space<vmem>>, vector<64x32xbf16>
    tpu.vector_store %arg4[%c0_16, %c0_17], %21 {strides = array<i32>} : memref<64x32xbf16, #tpu.memory_space<vmem>>, vector<64x32xbf16>,
    return
  }
  func.func @transform_0(%arg0: i32) -> (i32, i32) {
    %c0_i32 = arith.constant 0 : i32
    %c0_i32_0 = arith.constant 0 : i32
    return %arg0, %c0_i32 : i32, i32
  }
  func.func @transform_1(%arg0: i32) -> (i32, i32, i32) {
    %c0_i32 = arith.constant 0 : i32
    %c0_i32_0 = arith.constant 0 : i32
    %c0_i32_1 = arith.constant 0 : i32
    %c0_i32_2 = arith.constant 0 : i32
    return %c0_i32, %c0_i32_0, %c0_i32_1 : i32, i32, i32
  }
  func.func @transform_2(%arg0: i32) -> (i32, i32) {
    %c0_i32 = arith.constant 0 : i32
    %c0_i32_0 = arith.constant 0 : i32
    %c0_i32_1 = arith.constant 0 : i32
    return %c0_i32, %c0_i32_0 : i32, i32
  }
  func.func @transform_3(%arg0: i32) -> (i32, i32) {
    %c0_i32 = arith.constant 0 : i32
    %c0_i32_0 = arith.constant 0 : i32
    return %arg0, %c0_i32 : i32, i32
  }
}

module attributes {stable_mosaic.version = 11 : i64} {
  func.func @_mlp_head_kernel(%arg0: i32, %arg1: memref<2x1568xbf16, #tpu.memory_space<vmem>>, %arg2: memref<1568x128xbf16, #tpu.memory_space<vmem>>, %arg3: memref<1x128xf32, #tpu.memory_space<vmem>>, %arg4: memref<128x128xbf16, #tpu.memory_space<vmem>>, %arg5: memref<1x128xf32, #tpu.memory_space<vmem>>, %arg6: memref<2x128xf32, #tpu.memory_space<vmem>>) attributes {dimension_semantics = [#tpu.dimension_semantics<parallel>], iteration_bounds = array<i64: 1>, scalar_prefetch = 0 : i64, scratch_operands = 0 : i64, tpu.core_type = #tpu.core_type<tc>, window_params = [{transform_indices = @transform_0, window_bounds = array<i64: 2, 1568>}, {pipeline_mode = #tpu.pipeline_mode<synchronous>, transform_indices = @transform_1, window_bounds = array<i64: 1568, 128>}, {pipeline_mode = #tpu.pipeline_mode<synchronous>, transform_indices = @transform_2, window_bounds = array<i64: 1, 128>}, {pipeline_mode = #tpu.pipeline_mode<synchronous>, transform_indices = @transform_3, window_bounds = array<i64: 128, 128>}, {pipeline_mode = #tpu.pipeline_mode<synchronous>, transform_indices = @transform_4, window_bounds = array<i64: 1, 128>}, {transform_indices = @transform_5, window_bounds = array<i64: 2, 128>}]} {
    %c0 = arith.constant 0 : index
    %c0_0 = arith.constant 0 : index
    %0 = vector.load %arg1[%c0, %c0_0] : memref<2x1568xbf16, #tpu.memory_space<vmem>>, vector<2x1568xbf16>
    %c0_1 = arith.constant 0 : index
    %c0_2 = arith.constant 0 : index
    %1 = vector.load %arg2[%c0_1, %c0_2] : memref<1568x128xbf16, #tpu.memory_space<vmem>>, vector<1568x128xbf16>
    %cst = arith.constant dense<0.000000e+00> : vector<2x128xf32>
    %2 = tpu.matmul %0, %1, %cst {dimension_numbers = #tpu.dot_dimension_numbers<[1], [0], [0], [1], [0, 0, 1, 1], [], []>} : vector<2x1568xbf16>, vector<1568x128xbf16>, vector<2x128xf32> -> vector<2x128xf32>
    %c0_3 = arith.constant 0 : index
    %c0_4 = arith.constant 0 : index
    %3 = vector.load %arg3[%c0_3, %c0_4] : memref<1x128xf32, #tpu.memory_space<vmem>>, vector<1x128xf32>
    %4 = vector.broadcast %3 : vector<1x128xf32> to vector<2x128xf32>
    %5 = arith.addf %2, %4 : vector<2x128xf32>
    %cst_5 = arith.constant 0.000000e+00 : f32
    %6 = vector.broadcast %cst_5 : f32 to vector<2x128xf32>
    %7 = arith.maximumf %5, %6 : vector<2x128xf32>
    %8 = arith.truncf %7 : vector<2x128xf32> to vector<2x128xbf16>
    %c0_6 = arith.constant 0 : index
    %c0_7 = arith.constant 0 : index
    %9 = vector.load %arg4[%c0_6, %c0_7] : memref<128x128xbf16, #tpu.memory_space<vmem>>, vector<128x128xbf16>
    %cst_8 = arith.constant dense<0.000000e+00> : vector<2x128xf32>
    %10 = tpu.matmul %8, %9, %cst_8 {dimension_numbers = #tpu.dot_dimension_numbers<[1], [0], [0], [1], [0, 0, 1, 1], [], []>} : vector<2x128xbf16>, vector<128x128xbf16>, vector<2x128xf32> -> vector<2x128xf32>
    %c0_9 = arith.constant 0 : index
    %c0_10 = arith.constant 0 : index
    %11 = vector.load %arg5[%c0_9, %c0_10] : memref<1x128xf32, #tpu.memory_space<vmem>>, vector<1x128xf32>
    %12 = vector.broadcast %11 : vector<1x128xf32> to vector<2x128xf32>
    %13 = arith.addf %10, %12 : vector<2x128xf32>
    %c0_11 = arith.constant 0 : index
    %c0_12 = arith.constant 0 : index
    %14 = vector.load %arg6[%c0_11, %c0_12] : memref<2x128xf32, #tpu.memory_space<vmem>>, vector<2x128xf32>
    tpu.vector_store %arg6[%c0_11, %c0_12], %13 {strides = array<i32>} : memref<2x128xf32, #tpu.memory_space<vmem>>, vector<2x128xf32>,
    return
  }
  func.func @transform_0(%arg0: i32) -> (i32, i32) {
    %c0_i32 = arith.constant 0 : i32
    %c0_i32_0 = arith.constant 0 : i32
    return %arg0, %c0_i32 : i32, i32
  }
  func.func @transform_1(%arg0: i32) -> (i32, i32) {
    %c0_i32 = arith.constant 0 : i32
    %c0_i32_0 = arith.constant 0 : i32
    %c0_i32_1 = arith.constant 0 : i32
    return %c0_i32, %c0_i32_0 : i32, i32
  }
  func.func @transform_2(%arg0: i32) -> (i32, i32) {
    %c0_i32 = arith.constant 0 : i32
    %c0_i32_0 = arith.constant 0 : i32
    %c0_i32_1 = arith.constant 0 : i32
    return %c0_i32, %c0_i32_0 : i32, i32
  }
  func.func @transform_3(%arg0: i32) -> (i32, i32) {
    %c0_i32 = arith.constant 0 : i32
    %c0_i32_0 = arith.constant 0 : i32
    %c0_i32_1 = arith.constant 0 : i32
    return %c0_i32, %c0_i32_0 : i32, i32
  }
  func.func @transform_4(%arg0: i32) -> (i32, i32) {
    %c0_i32 = arith.constant 0 : i32
    %c0_i32_0 = arith.constant 0 : i32
    %c0_i32_1 = arith.constant 0 : i32
    return %c0_i32, %c0_i32_0 : i32, i32
  }
  func.func @transform_5(%arg0: i32) -> (i32, i32) {
    %c0_i32 = arith.constant 0 : i32
    %c0_i32_0 = arith.constant 0 : i32
    return %arg0, %c0_i32 : i32, i32
  }
}

</mosaic_0001>

<llo_original>
// kernel: simple_cnn_forward.3
$region0: #{simple_cnn_forward.3}
  #allocation0 [shape = 'u32[]', space=smem, size = 0x4, offset = 0x4, fixed_abs, tag = 'smem constant byte address 0x4 - core index']
  #allocation1 [shape = 'u32[144,128]{1,0:T(1,128)}', space=vmem, size = 0x12000, scoped, tag = 'internal scratch']
  %s0 = inlined_call_operand.vmem [shape: bf16[392,16], index: 0, kind: input, shape index: {}]
  %s1 = inlined_call_operand.vmem [shape: bf16[4,16,16], index: 1, kind: input, shape index: {}]
  %s2 = inlined_call_operand.vmem [shape: f32[1,16], index: 2, kind: input, shape index: {}]
  %s3 = inlined_call_operand.vmem [shape: bf16[392,16], index: 3, kind: output, shape index: {}]
  %s4 = sld [smem:[#allocation0]]
  $region89: #{simple_cnn_forward.3} parent=0
    _
  %s6 = ssub.s32 1, %s4
  %s7 = scalar_select 0, %s6, %s4
  $region1: #{simple_cnn_forward.3} parent=0
    #allocation2 [shape = 'u8[106496]{0}', space=vmem, size = 0x1a000, scoped, tag = 'output window, operand 0']
    loop: start=0, step=1, limit=4
    $region2: #{simple_cnn_forward.3} parent=1 // loop_pre_header
      _
    $region3: #{simple_cnn_forward.3} parent=1 // loop_header
      %s9 = sphi 0, %s13
      %p10 = scmp.ge.s32.totalorder %s9, 4
      %s19 = sphi 0, %s21
      %s22 = sphi 0, %s19
      %s23 = sphi 0, %s22
      %s39 = sphi 0, %s23
      %s43 = sphi 0, %s43
      %s45 = sphi 0, %s43
      %s46 = sphi 0, %s45
      %s60 = sphi 0, %s46
      %s64 = sphi 0, %s64
      %s66 = sphi 0, %s64
      %s67 = sphi 0, %s66
      %s81 = sphi 0, %s67
      %s87 = sphi 0, %s89
      %s90 = sphi 0, %s87
      %s91 = sphi 0, %s90
      %s107 = sphi 0, %s91
    $region4: #{simple_cnn_forward.3} parent=1 // loop_header_branch
      %12 = sbr.rel (%p10) target = $region8
    $region5: #{simple_cnn_forward.3} parent=1 // loop_body
      %s14 = ssub.s32 %s9, 1
      %s15 = ssub.s32 %s9, 2
      %s16 = sadd.s32 %s9, 1
      %s17 = ssub.s32 %s9, %s16
      %p18 = scmp.eq.s32.totalorder %s17, 0
      %s20 = sadd.s32 %s19, 1
      %s21 = scalar_select %p18, %s19, %s20
      %p24 = pneg %p18
      %p25 = scmp.eq.s32.totalorder %s9, 1
      %p26 = por %p24, %p25
      %p27 = scmp.ne.s32.totalorder %s19, %s22
      %p28 = scmp.eq.s32.totalorder %s9, 0
      %p29 = por %p27, %p28
      %p30 = scmp.ne.s32.totalorder %s19, %s22
      %p31 = scmp.eq.s32.totalorder %s14, 1
      %p32 = por %p30, %p31
      %p33 = scmp.ne.s32.totalorder %s22, %s23
      %p34 = scmp.eq.s32.totalorder %s14, 0
      %p35 = por %p33, %p34
      %p36 = scmp.ne.s32.totalorder %s22, %s23
      %p37 = scmp.eq.s32.totalorder %s15, 1
      %p38 = por %p36, %p37
      %p40 = scmp.ne.s32.totalorder %s23, %s39
      %p41 = scmp.eq.s32.totalorder %s15, 0
      %p42 = por %p40, %p41
      %s44 = sadd.s32 %s43, 1
      %p47 = scmp.eq.s32.totalorder %s9, 1
      %p48 = scmp.ne.s32.totalorder %s43, %s45
      %p49 = scmp.eq.s32.totalorder %s9, 0
      %p50 = por %p48, %p49
      %p51 = scmp.ne.s32.totalorder %s43, %s45
      %p52 = scmp.eq.s32.totalorder %s14, 1
      %p53 = por %p51, %p52
      %p54 = scmp.ne.s32.totalorder %s45, %s46
      %p55 = scmp.eq.s32.totalorder %s14, 0
      %p56 = por %p54, %p55
      %p57 = scmp.ne.s32.totalorder %s45, %s46
      %p58 = scmp.eq.s32.totalorder %s15, 1
      %p59 = por %p57, %p58
      %p61 = scmp.ne.s32.totalorder %s46, %s60
      %p62 = scmp.eq.s32.totalorder %s15, 0
      %p63 = por %p61, %p62
      %s65 = sadd.s32 %s64, 1
      %p68 = scmp.eq.s32.totalorder %s9, 1
      %p69 = scmp.ne.s32.totalorder %s64, %s66
      %p70 = scmp.eq.s32.totalorder %s9, 0
      %p71 = por %p69, %p70
      %p72 = scmp.ne.s32.totalorder %s64, %s66
      %p73 = scmp.eq.s32.totalorder %s14, 1
      %p74 = por %p72, %p73
      %p75 = scmp.ne.s32.totalorder %s66, %s67
      %p76 = scmp.eq.s32.totalorder %s14, 0
      %p77 = por %p75, %p76
      %p78 = scmp.ne.s32.totalorder %s66, %s67
      %p79 = scmp.eq.s32.totalorder %s15, 1
      %p80 = por %p78, %p79
      %p82 = scmp.ne.s32.totalorder %s67, %s81
      %p83 = scmp.eq.s32.totalorder %s15, 0
      %p84 = por %p82, %p83
      %s85 = ssub.s32 %s9, %s16
      %p86 = scmp.eq.s32.totalorder %s85, 0
      %s88 = sadd.s32 %s87, 1
      %s89 = scalar_select %p86, %s87, %s88
      %p92 = pneg %p86
      %p93 = scmp.eq.s32.totalorder %s9, 1
      %p94 = por %p92, %p93
      %p95 = scmp.ne.s32.totalorder %s87, %s90
      %p96 = scmp.eq.s32.totalorder %s9, 0
      %p97 = por %p95, %p96
      %p98 = scmp.ne.s32.totalorder %s87, %s90
      %p99 = scmp.eq.s32.totalorder %s14, 1
      %p100 = por %p98, %p99
      %p101 = scmp.ne.s32.totalorder %s90, %s91
      %p102 = scmp.eq.s32.totalorder %s14, 0
      %p103 = por %p101, %p102
      %p104 = scmp.ne.s32.totalorder %s90, %s91
      %p105 = scmp.eq.s32.totalorder %s15, 1
      %p106 = por %p104, %p105
      %p108 = scmp.ne.s32.totalorder %s91, %s107
      %p109 = scmp.eq.s32.totalorder %s15, 0
      %p110 = por %p108, %p109
      %p111 = scmp.le.s32.totalorder 1, %s9
      %p112 = scmp.lt.s32.totalorder %s9, 3
      %p113 = pnand %p111, %p112
      %p114 = pneg %p113
      // Predicated region
      $region9: #{simple_cnn_forward.3} parent=5 // pred_check
        _
      $region10: #{simple_cnn_forward.3} parent=5 // pred_check_branch
        %116 = sbr.rel (%p113) target = $region12
      $region11: #{simple_cnn_forward.3} parent=5 // pred_region
        %s117 = ssub.s32 %s9, 1
        // Predicated region
        $region13: #{simple_cnn_forward.3} parent=11 // pred_check
          %p118 = pneg %p56
        $region14: #{simple_cnn_forward.3} parent=11 // pred_check_branch
          %120 = sbr.rel (%p118) target = $region16
        $region15: #{simple_cnn_forward.3} parent=11 // pred_region
          _
        $region16: #{simple_cnn_forward.3} parent=11 // pred_fallthru
          _
        // Predicated region
        $region17: #{simple_cnn_forward.3} parent=11 // pred_check
          %p121 = pneg %p77
        $region18: #{simple_cnn_forward.3} parent=11 // pred_check_branch
          %123 = sbr.rel (%p121) target = $region20
        $region19: #{simple_cnn_forward.3} parent=11 // pred_region
          _
        $region20: #{simple_cnn_forward.3} parent=11 // pred_fallthru
          _
      $region12: #{simple_cnn_forward.3} parent=5 // pred_fallthru
        _
      %p124 = scmp.lt.s32.totalorder %s9, 2
      // Predicated region
      $region21: #{simple_cnn_forward.3} parent=5 // pred_check
        %p125 = pneg %p124
      $region22: #{simple_cnn_forward.3} parent=5 // pred_check_branch
        %127 = sbr.rel (%p125) target = $region24
      $region23: #{simple_cnn_forward.3} parent=5 // pred_region
        // Predicated region
        $region25: #{simple_cnn_forward.3} parent=23 // pred_check
          %p128 = pneg %p29
        $region26: #{simple_cnn_forward.3} parent=23 // pred_check_branch
          %130 = sbr.rel (%p128) target = $region28
        $region27: #{simple_cnn_forward.3} parent=23 // pred_region
          %s131 = smul.u32 26, %s9
          %s132 = ssub.s32 49, %s131
          %p133 = scmp.lt.s32.totalorder %s132, 26
          %s134 = scalar_select %p133, %s132, 26
          %s135 = smul.u32 64, %s134
          %p136 = scmp.lt.s32.totalorder %s131, 48
          %s137 = scalar_select %p136, %s131, 48
          %s138 = smul.addr %s137, 4
          %s139 = scalar_lea.vmem %s0, %s138
          %s140 = smul.u32 26, %s9
          %s141 = ssub.s32 49, %s140
          %p142 = scmp.lt.s32.totalorder %s141, 26
          %s143 = scalar_select %p142, %s141, 26
          %s144 = smul.u32 64, %s143
        $region28: #{simple_cnn_forward.3} parent=23 // pred_fallthru
          _
      $region24: #{simple_cnn_forward.3} parent=5 // pred_fallthru
        _
      %p145 = scmp.le.s32.totalorder 1, %s9
      %p146 = scmp.lt.s32.totalorder %s9, 3
      %p147 = pnand %p145, %p146
      %p148 = pneg %p147
      // Predicated region
      $region29: #{simple_cnn_forward.3} parent=5 // pred_check
        _
      $region30: #{simple_cnn_forward.3} parent=5 // pred_check_branch
        %150 = sbr.rel (%p147) target = $region32
      $region31: #{simple_cnn_forward.3} parent=5 // pred_region
        %s151 = ssub.s32 %s9, 1
        %s152 = smul.u32 26, %s14
        %s153 = ssub.s32 49, %s152
        %p154 = scmp.lt.s32.totalorder %s153, 26
        %s155 = scalar_select %p154, %s153, 26
        %s156 = smul.u32 64, %s155
        %p157 = scmp.lt.s32.totalorder %s152, 48
        %s158 = scalar_select %p157, %s152, 48
        %s159 = smul.addr %s158, 4
        %s160 = scalar_lea.vmem %s0, %s159
        %p161 = pneg %p35
        %p162 = pneg %p32
        %p163 = pneg %p56
        %p164 = pneg %p53
        %p165 = pneg %p77
        %p166 = pneg %p74
        %p167 = pneg %p103
        %p168 = pneg %p100
        %s169 = sand.u32 %s90, 1
        %s170 = sand.u32 %s90, 1
        %s171 = smul.addr %s170, 104
        %s172 = scalar_lea.vmem [#allocation2], %s171
        %s173 = smul.u32 26, %s14
        %s174 = ssub.s32 49, %s173
        %p175 = scmp.lt.s32.totalorder %s174, 26
        %s176 = scalar_select %p175, %s174, 26
        %s177 = smul.u32 64, %s176
        %p178 = scmp.lt.s32.totalorder %s173, 48
        %s179 = scalar_select %p178, %s173, 48
        %s180 = smul.addr %s179, 4
        %s181 = scalar_lea.vmem %s0, %s180
        %s182 = smul.u32 26, %s14
        %s183 = ssub.s32 49, %s182
        %p184 = scmp.lt.s32.totalorder %s183, 26
        %s185 = scalar_select %p184, %s183, 26
        %s186 = smul.u32 64, %s185
        %s187 = smul.u32 26, %s14
        %s188 = ssub.s32 49, %s187
        %p189 = scmp.lt.s32.totalorder %s188, 26
        %s190 = scalar_select %p189, %s188, 26
        %s191 = smul.u32 64, %s190
        %v193 = vld [vmem:[%s181] sm:$0xf]
        %v194 = vld [vmem:[%s181 + $0x4] sm:$0xf]
        %v195 = vld [vmem:[%s181 + $0x8] sm:$0xf]
        %v196 = vld [vmem:[%s181 + $0xc] sm:$0xf]
        %v197 = vld [vmem:[%s181 + $0x10] sm:$0xf]
        %v198 = vld [vmem:[%s181 + $0x14] sm:$0xf]
        %v199 = vld [vmem:[%s181 + $0x18] sm:$0xf]
        %v200 = vld [vmem:[%s181 + $0x1c] sm:$0xf]
        %v201 = vld [vmem:[%s181 + $0x20] sm:$0xf]
        %v202 = vld [vmem:[%s181 + $0x24] sm:$0xf]
        %v203 = vld [vmem:[%s181 + $0x28] sm:$0xf]
        %v204 = vld [vmem:[%s181 + $0x2c] sm:$0xf]
        %v205 = vld [vmem:[%s181 + $0x30] sm:$0xf]
        %v206 = vld [vmem:[%s181 + $0x34] sm:$0xf]
        %v207 = vld [vmem:[%s181 + $0x38] sm:$0xf]
        %v208 = vld [vmem:[%s181 + $0x3c] sm:$0xf]
        %v209 = vld [vmem:[%s181 + $0x40] sm:$0xf]
        %v210 = vld [vmem:[%s181 + $0x44] sm:$0xf]
        %v211 = vld [vmem:[%s181 + $0x48] sm:$0xf]
        %v212 = vld [vmem:[%s181 + $0x4c] sm:$0xf]
        %v213 = vld [vmem:[%s181 + $0x50] sm:$0xf]
        %v214 = vld [vmem:[%s181 + $0x54] sm:$0xf]
        %v215 = vld [vmem:[%s181 + $0x58] sm:$0xf]
        %v216 = vld [vmem:[%s181 + $0x5c] sm:$0xf]
        %v217 = vld [vmem:[%s181 + $0x60] sm:$0xf]
        %v218 = vld [vmem:[%s181 + $0x64] sm:$0xf]
        %v219 = vld [vmem:[%s1] sm:$0xf]
        %v220 = vld [vmem:[%s1 + $0x4] sm:$0xf]
        %v247 = vunpack.c.l.b16 %v193
        %v248 = vunpack.c.l.b16 %v194
        %v249 = vunpack.c.l.b16 %v195
        %v250 = vunpack.c.l.b16 %v196
        %v251 = vunpack.c.l.b16 %v197
        %v252 = vunpack.c.l.b16 %v198
        %v253 = vunpack.c.l.b16 %v199
        %v254 = vunpack.c.l.b16 %v200
        %v255 = vunpack.c.l.b16 %v201
        %v256 = vunpack.c.l.b16 %v202
        %v257 = vunpack.c.l.b16 %v203
        %v258 = vunpack.c.l.b16 %v204
        %v259 = vunpack.c.l.b16 %v205
        %v260 = vunpack.c.l.b16 %v206
        %v261 = vunpack.c.l.b16 %v207
        %v262 = vunpack.c.l.b16 %v208
        %v263 = vunpack.c.l.b16 %v209
        %v264 = vunpack.c.l.b16 %v210
        %v265 = vunpack.c.l.b16 %v211
        %v266 = vunpack.c.l.b16 %v212
        %v267 = vunpack.c.l.b16 %v213
        %v268 = vunpack.c.l.b16 %v214
        %v269 = vunpack.c.l.b16 %v215
        %v270 = vunpack.c.l.b16 %v216
        %v271 = vunpack.c.l.b16 %v217
        %v272 = vunpack.c.l.b16 %v218
        %v273 = vpack.c.b16 %v248, %v247
        %v274 = vpack.c.b16 %v250, %v249
        %v275 = vpack.c.b16 %v252, %v251
        %v276 = vpack.c.b16 %v254, %v253
        %v277 = vpack.c.b16 %v256, %v255
        %v278 = vpack.c.b16 %v258, %v257
        %v279 = vpack.c.b16 %v260, %v259
        %v280 = vpack.c.b16 %v262, %v261
        %v281 = vpack.c.b16 %v264, %v263
        %v282 = vpack.c.b16 %v266, %v265
        %v283 = vpack.c.b16 %v268, %v267
        %v284 = vpack.c.b16 %v270, %v269
        %v285 = vpack.c.b16 %v272, %v271
        %v288 = vunpack.c.l.b16 %v219
        %v289 = vunpack.c.l.b16 %v220
        %v290 = vpack.c.b16 %v289, %v288
        %vm292 = vcmask 130048
        %v294 = vsel %vm292, %v273, 0
        %v297 = vsel %vm292, %v274, 0
        %v300 = vsel %vm292, %v275, 0
        %v303 = vsel %vm292, %v276, 0
        %v306 = vsel %vm292, %v277, 0
        %v309 = vsel %vm292, %v278, 0
        %v312 = vsel %vm292, %v279, 0
        %v315 = vsel %vm292, %v280, 0
        %v318 = vsel %vm292, %v281, 0
        %v321 = vsel %vm292, %v282, 0
        %v324 = vsel %vm292, %v283, 0
        %v327 = vsel %vm292, %v284, 0
        %v330 = vsel %vm292, %v285, 0
        %332 = vmatprep.subr.bf16.mxu0 0
        %333 = vmatpush1.bf16.msra.mxu0 0
        %334 = vmatprep.subr.bf16.mxu0 0
        %335 = vmatpush1.bf16.msra.mxu0 0
        %336 = vmatprep.subr.bf16.mxu0 0
        %337 = vmatpush1.bf16.msra.mxu0 0
        %338 = vmatprep.subr.bf16.mxu0 0
        %339 = vmatpush1.bf16.msra.mxu0 0
        %340 = vmatprep.subr.bf16.mxu0 0
        %341 = vmatpush1.bf16.msra.mxu0 0
        %342 = vmatprep.subr.bf16.mxu0 0
        %343 = vmatpush1.bf16.msra.mxu0 0
        %344 = vmatprep.subr.bf16.mxu0 0
        %345 = vmatpush1.bf16.msra.mxu0 0
        %346 = vmatprep.subr.bf16.mxu0 0
        %347 = vmatpush1.bf16.msra.mxu0 %v290
        %348 = vmatprep.subr.bf16.mxu0 0
        %349 = vmatpush2.bf16.msra.mxu0 0
        %350 = vmatprep.subr.bf16.mxu0 0
        %351 = vmatpush2.bf16.msra.mxu0 0
        %352 = vmatprep.subr.bf16.mxu0 0
        %353 = vmatpush2.bf16.msra.mxu0 0
        %354 = vmatprep.subr.bf16.mxu0 0
        %355 = vmatpush2.bf16.msra.mxu0 0
        %356 = vmatprep.subr.bf16.mxu0 0
        %357 = vmatpush2.bf16.msra.mxu0 0
        %358 = vmatprep.subr.bf16.mxu0 0
        %359 = vmatpush2.bf16.msra.mxu0 0
        %360 = vmatprep.subr.bf16.mxu0 0
        %361 = vmatpush2.bf16.msra.mxu0 0
        %362 = vmatprep.subr.bf16.mxu0 0
        %363 = vmatpush2.bf16.msra.mxu0 0
        %364 = vmatprep.mubr.bf16.mxu0 0
        %365 = vmatmul.mubr.bf16.gmra.mxu0 %v294
        %v366 = vpop.f32.mrf.mxu0
        %v367 = vadd.f32 0.0, %v366
        %v368 = vpop.f32.mrf.mxu0
        %v369 = vpop.f32.mrf.mxu0
        %v370 = vadd.f32 0.0, %v369
        %v371 = vpop.f32.mrf.mxu0
        %372 = vmatprep.mubr.bf16.mxu0 0
        %373 = vmatmul.mubr.bf16.gmra.mxu0 %v297
        %v374 = vpop.f32.mrf.mxu0
        %v375 = vadd.f32 0.0, %v374
        %v376 = vpop.f32.mrf.mxu0
        %v377 = vpop.f32.mrf.mxu0
        %v378 = vadd.f32 0.0, %v377
        %v379 = vpop.f32.mrf.mxu0
        %380 = vmatprep.mubr.bf16.mxu0 0
        %381 = vmatmul.mubr.bf16.gmra.mxu0 %v300
        %v382 = vpop.f32.mrf.mxu0
        %v383 = vadd.f32 0.0, %v382
        %v384 = vpop.f32.mrf.mxu0
        %v385 = vpop.f32.mrf.mxu0
        %v386 = vadd.f32 0.0, %v385
        %v387 = vpop.f32.mrf.mxu0
        %388 = vmatprep.mubr.bf16.mxu0 0
        %389 = vmatmul.mubr.bf16.gmra.mxu0 %v303
        %v390 = vpop.f32.mrf.mxu0
        %v391 = vadd.f32 0.0, %v390
        %v392 = vpop.f32.mrf.mxu0
        %v393 = vpop.f32.mrf.mxu0
        %v394 = vadd.f32 0.0, %v393
        %v395 = vpop.f32.mrf.mxu0
        %396 = vmatprep.mubr.bf16.mxu0 0
        %397 = vmatmul.mubr.bf16.gmra.mxu0 %v306
        %v398 = vpop.f32.mrf.mxu0
        %v399 = vadd.f32 0.0, %v398
        %v400 = vpop.f32.mrf.mxu0
        %v401 = vpop.f32.mrf.mxu0
        %v402 = vadd.f32 0.0, %v401
        %v403 = vpop.f32.mrf.mxu0
        %404 = vmatprep.mubr.bf16.mxu0 0
        %405 = vmatmul.mubr.bf16.gmra.mxu0 %v309
        %v406 = vpop.f32.mrf.mxu0
        %v407 = vadd.f32 0.0, %v406
        %v408 = vpop.f32.mrf.mxu0
        %v409 = vpop.f32.mrf.mxu0
        %v410 = vadd.f32 0.0, %v409
        %v411 = vpop.f32.mrf.mxu0
        %412 = vmatprep.mubr.bf16.mxu0 0
        %413 = vmatmul.mubr.bf16.gmra.mxu0 %v312
        %v414 = vpop.f32.mrf.mxu0
        %v415 = vadd.f32 0.0, %v414
        %v416 = vpop.f32.mrf.mxu0
        %v417 = vpop.f32.mrf.mxu0
        %v418 = vadd.f32 0.0, %v417
        %v419 = vpop.f32.mrf.mxu0
        %420 = vmatprep.mubr.bf16.mxu0 0
        %421 = vmatmul.mubr.bf16.gmra.mxu0 %v315
        %v422 = vpop.f32.mrf.mxu0
        %v423 = vadd.f32 0.0, %v422
        %v424 = vpop.f32.mrf.mxu0
        %v425 = vpop.f32.mrf.mxu0
        %v426 = vadd.f32 0.0, %v425
        %v427 = vpop.f32.mrf.mxu0
        %428 = vmatprep.mubr.bf16.mxu0 0
        %429 = vmatmul.mubr.bf16.gmra.mxu0 %v318
        %v430 = vpop.f32.mrf.mxu0
        %v431 = vadd.f32 0.0, %v430
        %v432 = vpop.f32.mrf.mxu0
        %v433 = vpop.f32.mrf.mxu0
        %v434 = vadd.f32 0.0, %v433
        %v435 = vpop.f32.mrf.mxu0
        %436 = vmatprep.mubr.bf16.mxu0 0
        %437 = vmatmul.mubr.bf16.gmra.mxu0 %v321
        %v438 = vpop.f32.mrf.mxu0
        %v439 = vadd.f32 0.0, %v438
        %v440 = vpop.f32.mrf.mxu0
        %v441 = vpop.f32.mrf.mxu0
        %v442 = vadd.f32 0.0, %v441
        %v443 = vpop.f32.mrf.mxu0
        %444 = vmatprep.mubr.bf16.mxu0 0
        %445 = vmatmul.mubr.bf16.gmra.mxu0 %v324
        %v446 = vpop.f32.mrf.mxu0
        %v447 = vadd.f32 0.0, %v446
        %v448 = vpop.f32.mrf.mxu0
        %v449 = vpop.f32.mrf.mxu0
        %v450 = vadd.f32 0.0, %v449
        %v451 = vpop.f32.mrf.mxu0
        %452 = vmatprep.mubr.bf16.mxu0 0
        %453 = vmatmul.mubr.bf16.gmra.mxu0 %v327
        %v454 = vpop.f32.mrf.mxu0
        %v455 = vadd.f32 0.0, %v454
        %v456 = vpop.f32.mrf.mxu0
        %v457 = vpop.f32.mrf.mxu0
        %v458 = vadd.f32 0.0, %v457
        %v459 = vpop.f32.mrf.mxu0
        %460 = vmatprep.mubr.bf16.mxu0 0
        %461 = vmatmul.mubr.bf16.gmra.mxu0 %v330
        %v462 = vpop.f32.mrf.mxu0
        %v463 = vadd.f32 0.0, %v462
        %v464 = vpop.f32.mrf.mxu0
        %v465 = vpop.f32.mrf.mxu0
        %v466 = vadd.f32 0.0, %v465
        %v467 = vpop.f32.mrf.mxu0
        %468 = vdwg.mxu0
        %s469 = scalar_lea.vmem %s1, 8
        %v470 = vld [vmem:[%s469] sm:$0xf]
        %v471 = vld [vmem:[%s469 + $0x4] sm:$0xf]
        %v474 = vunpack.c.l.b16 %v470
        %v475 = vunpack.c.l.b16 %v471
        %v476 = vpack.c.b16 %v475, %v474
        %478 = vmatprep.subr.bf16.mxu0 0
        %479 = vmatpush1.bf16.msra.mxu0 0
        %480 = vmatprep.subr.bf16.mxu0 0
        %481 = vmatpush1.bf16.msra.mxu0 0
        %482 = vmatprep.subr.bf16.mxu0 0
        %483 = vmatpush1.bf16.msra.mxu0 0
        %484 = vmatprep.subr.bf16.mxu0 0
        %485 = vmatpush1.bf16.msra.mxu0 0
        %486 = vmatprep.subr.bf16.mxu0 0
        %487 = vmatpush1.bf16.msra.mxu0 0
        %488 = vmatprep.subr.bf16.mxu0 0
        %489 = vmatpush1.bf16.msra.mxu0 0
        %490 = vmatprep.subr.bf16.mxu0 0
        %491 = vmatpush1.bf16.msra.mxu0 0
        %492 = vmatprep.subr.bf16.mxu0 0
        %493 = vmatpush1.bf16.msra.mxu0 %v476
        %494 = vmatprep.subr.bf16.mxu0 0
        %495 = vmatpush2.bf16.msra.mxu0 0
        %496 = vmatprep.subr.bf16.mxu0 0
        %497 = vmatpush2.bf16.msra.mxu0 0
        %498 = vmatprep.subr.bf16.mxu0 0
        %499 = vmatpush2.bf16.msra.mxu0 0
        %500 = vmatprep.subr.bf16.mxu0 0
        %501 = vmatpush2.bf16.msra.mxu0 0
        %502 = vmatprep.subr.bf16.mxu0 0
        %503 = vmatpush2.bf16.msra.mxu0 0
        %504 = vmatprep.subr.bf16.mxu0 0
        %505 = vmatpush2.bf16.msra.mxu0 0
        %506 = vmatprep.subr.bf16.mxu0 0
        %507 = vmatpush2.bf16.msra.mxu0 0
        %508 = vmatprep.subr.bf16.mxu0 0
        %509 = vmatpush2.bf16.msra.mxu0 0
        %510 = vmatprep.mubr.bf16.mxu0 0
        %511 = vmatmul.mubr.bf16.gmra.mxu0 %v294
        %v512 = vpop.f32.mrf.mxu0
        %v513 = vadd.f32 0.0, %v512
        %v514 = vpop.f32.mrf.mxu0
        %v515 = vpop.f32.mrf.mxu0
        %v516 = vadd.f32 0.0, %v515
        %v517 = vpop.f32.mrf.mxu0
        %518 = vmatprep.mubr.bf16.mxu0 0
        %519 = vmatmul.mubr.bf16.gmra.mxu0 %v297
        %v520 = vpop.f32.mrf.mxu0
        %v521 = vadd.f32 0.0, %v520
        %v522 = vpop.f32.mrf.mxu0
        %v523 = vpop.f32.mrf.mxu0
        %v524 = vadd.f32 0.0, %v523
        %v525 = vpop.f32.mrf.mxu0
        %526 = vmatprep.mubr.bf16.mxu0 0
        %527 = vmatmul.mubr.bf16.gmra.mxu0 %v300
        %v528 = vpop.f32.mrf.mxu0
        %v529 = vadd.f32 0.0, %v528
        %v530 = vpop.f32.mrf.mxu0
        %v531 = vpop.f32.mrf.mxu0
        %v532 = vadd.f32 0.0, %v531
        %v533 = vpop.f32.mrf.mxu0
        %534 = vmatprep.mubr.bf16.mxu0 0
        %535 = vmatmul.mubr.bf16.gmra.mxu0 %v303
        %v536 = vpop.f32.mrf.mxu0
        %v537 = vadd.f32 0.0, %v536
        %v538 = vpop.f32.mrf.mxu0
        %v539 = vpop.f32.mrf.mxu0
        %v540 = vadd.f32 0.0, %v539
        %v541 = vpop.f32.mrf.mxu0
        %542 = vmatprep.mubr.bf16.mxu0 0
        %543 = vmatmul.mubr.bf16.gmra.mxu0 %v306
        %v544 = vpop.f32.mrf.mxu0
        %v545 = vadd.f32 0.0, %v544
        %v546 = vpop.f32.mrf.mxu0
        %v547 = vpop.f32.mrf.mxu0
        %v548 = vadd.f32 0.0, %v547
        %v549 = vpop.f32.mrf.mxu0
        %550 = vmatprep.mubr.bf16.mxu0 0
        %551 = vmatmul.mubr.bf16.gmra.mxu0 %v309
        %v552 = vpop.f32.mrf.mxu0
        %v553 = vadd.f32 0.0, %v552
        %v554 = vpop.f32.mrf.mxu0
        %v555 = vpop.f32.mrf.mxu0
        %v556 = vadd.f32 0.0, %v555
        %v557 = vpop.f32.mrf.mxu0
        %558 = vmatprep.mubr.bf16.mxu0 0
        %559 = vmatmul.mubr.bf16.gmra.mxu0 %v312
        %v560 = vpop.f32.mrf.mxu0
        %v561 = vadd.f32 0.0, %v560
        %v562 = vpop.f32.mrf.mxu0
        %v563 = vpop.f32.mrf.mxu0
        %v564 = vadd.f32 0.0, %v563
        %v565 = vpop.f32.mrf.mxu0
        %566 = vmatprep.mubr.bf16.mxu0 0
        %567 = vmatmul.mubr.bf16.gmra.mxu0 %v315
        %v568 = vpop.f32.mrf.mxu0
        %v569 = vadd.f32 0.0, %v568
        %v570 = vpop.f32.mrf.mxu0
        %v571 = vpop.f32.mrf.mxu0
        %v572 = vadd.f32 0.0, %v571
        %v573 = vpop.f32.mrf.mxu0
        %574 = vmatprep.mubr.bf16.mxu0 0
        %575 = vmatmul.mubr.bf16.gmra.mxu0 %v318
        %v576 = vpop.f32.mrf.mxu0
        %v577 = vadd.f32 0.0, %v576
        %v578 = vpop.f32.mrf.mxu0
        %v579 = vpop.f32.mrf.mxu0
        %v580 = vadd.f32 0.0, %v579
        %v581 = vpop.f32.mrf.mxu0
        %582 = vmatprep.mubr.bf16.mxu0 0
        %583 = vmatmul.mubr.bf16.gmra.mxu0 %v321
        %v584 = vpop.f32.mrf.mxu0
        %v585 = vadd.f32 0.0, %v584
        %v586 = vpop.f32.mrf.mxu0
        %v587 = vpop.f32.mrf.mxu0
        %v588 = vadd.f32 0.0, %v587
        %v589 = vpop.f32.mrf.mxu0
        %590 = vmatprep.mubr.bf16.mxu0 0
        %591 = vmatmul.mubr.bf16.gmra.mxu0 %v324
        %v592 = vpop.f32.mrf.mxu0
        %v593 = vadd.f32 0.0, %v592
        %v594 = vpop.f32.mrf.mxu0
        %v595 = vpop.f32.mrf.mxu0
        %v596 = vadd.f32 0.0, %v595
        %v597 = vpop.f32.mrf.mxu0
        %598 = vmatprep.mubr.bf16.mxu0 0
        %599 = vmatmul.mubr.bf16.gmra.mxu0 %v327
        %v600 = vpop.f32.mrf.mxu0
        %v601 = vadd.f32 0.0, %v600
        %v602 = vpop.f32.mrf.mxu0
        %v603 = vpop.f32.mrf.mxu0
        %v604 = vadd.f32 0.0, %v603
        %v605 = vpop.f32.mrf.mxu0
        %606 = vmatprep.mubr.bf16.mxu0 0
        %607 = vmatmul.mubr.bf16.gmra.mxu0 %v330
        %v608 = vpop.f32.mrf.mxu0
        %v609 = vadd.f32 0.0, %v608
        %v610 = vpop.f32.mrf.mxu0
        %v611 = vpop.f32.mrf.mxu0
        %v612 = vadd.f32 0.0, %v611
        %v613 = vpop.f32.mrf.mxu0
        %614 = vdwg.mxu0
        %v615 = vmax.f32 %v367, %v513
        %v616 = vmax.f32 %v370, %v516
        %v617 = vmax.f32 %v375, %v521
        %v618 = vmax.f32 %v378, %v524
        %v619 = vmax.f32 %v383, %v529
        %v620 = vmax.f32 %v386, %v532
        %v621 = vmax.f32 %v391, %v537
        %v622 = vmax.f32 %v394, %v540
        %v623 = vmax.f32 %v399, %v545
        %v624 = vmax.f32 %v402, %v548
        %v625 = vmax.f32 %v407, %v553
        %v626 = vmax.f32 %v410, %v556
        %v627 = vmax.f32 %v415, %v561
        %v628 = vmax.f32 %v418, %v564
        %v629 = vmax.f32 %v423, %v569
        %v630 = vmax.f32 %v426, %v572
        %v631 = vmax.f32 %v431, %v577
        %v632 = vmax.f32 %v434, %v580
        %v633 = vmax.f32 %v439, %v585
        %v634 = vmax.f32 %v442, %v588
        %v635 = vmax.f32 %v447, %v593
        %v636 = vmax.f32 %v450, %v596
        %v637 = vmax.f32 %v455, %v601
        %v638 = vmax.f32 %v458, %v604
        %v639 = vmax.f32 %v463, %v609
        %v640 = vmax.f32 %v466, %v612
        %s641 = scalar_lea.vmem %s1, 16
        %v642 = vld [vmem:[%s641] sm:$0xf]
        %v643 = vld [vmem:[%s641 + $0x4] sm:$0xf]
        %v646 = vunpack.c.l.b16 %v642
        %v647 = vunpack.c.l.b16 %v643
        %v648 = vpack.c.b16 %v647, %v646
        %650 = vmatprep.subr.bf16.mxu0 0
        %651 = vmatpush1.bf16.msra.mxu0 0
        %652 = vmatprep.subr.bf16.mxu0 0
        %653 = vmatpush1.bf16.msra.mxu0 0
        %654 = vmatprep.subr.bf16.mxu0 0
        %655 = vmatpush1.bf16.msra.mxu0 0
        %656 = vmatprep.subr.bf16.mxu0 0
        %657 = vmatpush1.bf16.msra.mxu0 0
        %658 = vmatprep.subr.bf16.mxu0 0
        %659 = vmatpush1.bf16.msra.mxu0 0
        %660 = vmatprep.subr.bf16.mxu0 0
        %661 = vmatpush1.bf16.msra.mxu0 0
        %662 = vmatprep.subr.bf16.mxu0 0
        %663 = vmatpush1.bf16.msra.mxu0 0
        %664 = vmatprep.subr.bf16.mxu0 0
        %665 = vmatpush1.bf16.msra.mxu0 %v648
        %666 = vmatprep.subr.bf16.mxu0 0
        %667 = vmatpush2.bf16.msra.mxu0 0
        %668 = vmatprep.subr.bf16.mxu0 0
        %669 = vmatpush2.bf16.msra.mxu0 0
        %670 = vmatprep.subr.bf16.mxu0 0
        %671 = vmatpush2.bf16.msra.mxu0 0
        %672 = vmatprep.subr.bf16.mxu0 0
        %673 = vmatpush2.bf16.msra.mxu0 0
        %674 = vmatprep.subr.bf16.mxu0 0
        %675 = vmatpush2.bf16.msra.mxu0 0
        %676 = vmatprep.subr.bf16.mxu0 0
        %677 = vmatpush2.bf16.msra.mxu0 0
        %678 = vmatprep.subr.bf16.mxu0 0
        %679 = vmatpush2.bf16.msra.mxu0 0
        %680 = vmatprep.subr.bf16.mxu0 0
        %681 = vmatpush2.bf16.msra.mxu0 0
        %682 = vmatprep.mubr.bf16.mxu0 0
        %683 = vmatmul.mubr.bf16.gmra.mxu0 %v294
        %v684 = vpop.f32.mrf.mxu0
        %v685 = vadd.f32 0.0, %v684
        %v686 = vpop.f32.mrf.mxu0
        %v687 = vpop.f32.mrf.mxu0
        %v688 = vadd.f32 0.0, %v687
        %v689 = vpop.f32.mrf.mxu0
        %690 = vmatprep.mubr.bf16.mxu0 0
        %691 = vmatmul.mubr.bf16.gmra.mxu0 %v297
        %v692 = vpop.f32.mrf.mxu0
        %v693 = vadd.f32 0.0, %v692
        %v694 = vpop.f32.mrf.mxu0
        %v695 = vpop.f32.mrf.mxu0
        %v696 = vadd.f32 0.0, %v695
        %v697 = vpop.f32.mrf.mxu0
        %698 = vmatprep.mubr.bf16.mxu0 0
        %699 = vmatmul.mubr.bf16.gmra.mxu0 %v300
        %v700 = vpop.f32.mrf.mxu0
        %v701 = vadd.f32 0.0, %v700
        %v702 = vpop.f32.mrf.mxu0
        %v703 = vpop.f32.mrf.mxu0
        %v704 = vadd.f32 0.0, %v703
        %v705 = vpop.f32.mrf.mxu0
        %706 = vmatprep.mubr.bf16.mxu0 0
        %707 = vmatmul.mubr.bf16.gmra.mxu0 %v303
        %v708 = vpop.f32.mrf.mxu0
        %v709 = vadd.f32 0.0, %v708
        %v710 = vpop.f32.mrf.mxu0
        %v711 = vpop.f32.mrf.mxu0
        %v712 = vadd.f32 0.0, %v711
        %v713 = vpop.f32.mrf.mxu0
        %714 = vmatprep.mubr.bf16.mxu0 0
        %715 = vmatmul.mubr.bf16.gmra.mxu0 %v306
        %v716 = vpop.f32.mrf.mxu0
        %v717 = vadd.f32 0.0, %v716
        %v718 = vpop.f32.mrf.mxu0
        %v719 = vpop.f32.mrf.mxu0
        %v720 = vadd.f32 0.0, %v719
        %v721 = vpop.f32.mrf.mxu0
        %722 = vmatprep.mubr.bf16.mxu0 0
        %723 = vmatmul.mubr.bf16.gmra.mxu0 %v309
        %v724 = vpop.f32.mrf.mxu0
        %v725 = vadd.f32 0.0, %v724
        %v726 = vpop.f32.mrf.mxu0
        %v727 = vpop.f32.mrf.mxu0
        %v728 = vadd.f32 0.0, %v727
        %v729 = vpop.f32.mrf.mxu0
        %730 = vmatprep.mubr.bf16.mxu0 0
        %731 = vmatmul.mubr.bf16.gmra.mxu0 %v312
        %v732 = vpop.f32.mrf.mxu0
        %v733 = vadd.f32 0.0, %v732
        %v734 = vpop.f32.mrf.mxu0
        %v735 = vpop.f32.mrf.mxu0
        %v736 = vadd.f32 0.0, %v735
        %v737 = vpop.f32.mrf.mxu0
        %738 = vmatprep.mubr.bf16.mxu0 0
        %739 = vmatmul.mubr.bf16.gmra.mxu0 %v315
        %v740 = vpop.f32.mrf.mxu0
        %v741 = vadd.f32 0.0, %v740
        %v742 = vpop.f32.mrf.mxu0
        %v743 = vpop.f32.mrf.mxu0
        %v744 = vadd.f32 0.0, %v743
        %v745 = vpop.f32.mrf.mxu0
        %746 = vmatprep.mubr.bf16.mxu0 0
        %747 = vmatmul.mubr.bf16.gmra.mxu0 %v318
        %v748 = vpop.f32.mrf.mxu0
        %v749 = vadd.f32 0.0, %v748
        %v750 = vpop.f32.mrf.mxu0
        %v751 = vpop.f32.mrf.mxu0
        %v752 = vadd.f32 0.0, %v751
        %v753 = vpop.f32.mrf.mxu0
        %754 = vmatprep.mubr.bf16.mxu0 0
        %755 = vmatmul.mubr.bf16.gmra.mxu0 %v321
        %v756 = vpop.f32.mrf.mxu0
        %v757 = vadd.f32 0.0, %v756
        %v758 = vpop.f32.mrf.mxu0
        %v759 = vpop.f32.mrf.mxu0
        %v760 = vadd.f32 0.0, %v759
        %v761 = vpop.f32.mrf.mxu0
        %762 = vmatprep.mubr.bf16.mxu0 0
        %763 = vmatmul.mubr.bf16.gmra.mxu0 %v324
        %v764 = vpop.f32.mrf.mxu0
        %v765 = vadd.f32 0.0, %v764
        %v766 = vpop.f32.mrf.mxu0
        %v767 = vpop.f32.mrf.mxu0
        %v768 = vadd.f32 0.0, %v767
        %v769 = vpop.f32.mrf.mxu0
        %770 = vmatprep.mubr.bf16.mxu0 0
        %771 = vmatmul.mubr.bf16.gmra.mxu0 %v327
        %v772 = vpop.f32.mrf.mxu0
        %v773 = vadd.f32 0.0, %v772
        %v774 = vpop.f32.mrf.mxu0
        %v775 = vpop.f32.mrf.mxu0
        %v776 = vadd.f32 0.0, %v775
        %v777 = vpop.f32.mrf.mxu0
        %778 = vmatprep.mubr.bf16.mxu0 0
        %779 = vmatmul.mubr.bf16.gmra.mxu0 %v330
        %v780 = vpop.f32.mrf.mxu0
        %v781 = vadd.f32 0.0, %v780
        %v782 = vpop.f32.mrf.mxu0
        %v783 = vpop.f32.mrf.mxu0
        %v784 = vadd.f32 0.0, %v783
        %v785 = vpop.f32.mrf.mxu0
        %786 = vdwg.mxu0
        %v787 = vmax.f32 %v615, %v685
        %v788 = vmax.f32 %v616, %v688
        %v789 = vmax.f32 %v617, %v693
        %v790 = vmax.f32 %v618, %v696
        %v791 = vmax.f32 %v619, %v701
        %v792 = vmax.f32 %v620, %v704
        %v793 = vmax.f32 %v621, %v709
        %v794 = vmax.f32 %v622, %v712
        %v795 = vmax.f32 %v623, %v717
        %v796 = vmax.f32 %v624, %v720
        %v797 = vmax.f32 %v625, %v725
        %v798 = vmax.f32 %v626, %v728
        %v799 = vmax.f32 %v627, %v733
        %v800 = vmax.f32 %v628, %v736
        %v801 = vmax.f32 %v629, %v741
        %v802 = vmax.f32 %v630, %v744
        %v803 = vmax.f32 %v631, %v749
        %v804 = vmax.f32 %v632, %v752
        %v805 = vmax.f32 %v633, %v757
        %v806 = vmax.f32 %v634, %v760
        %v807 = vmax.f32 %v635, %v765
        %v808 = vmax.f32 %v636, %v768
        %v809 = vmax.f32 %v637, %v773
        %v810 = vmax.f32 %v638, %v776
        %v811 = vmax.f32 %v639, %v781
        %v812 = vmax.f32 %v640, %v784
        %s813 = scalar_lea.vmem %s1, 24
        %v814 = vld [vmem:[%s813] sm:$0xf]
        %v815 = vld [vmem:[%s813 + $0x4] sm:$0xf]
        %v818 = vunpack.c.l.b16 %v814
        %v819 = vunpack.c.l.b16 %v815
        %v820 = vpack.c.b16 %v819, %v818
        %822 = vmatprep.subr.bf16.mxu0 0
        %823 = vmatpush1.bf16.msra.mxu0 0
        %824 = vmatprep.subr.bf16.mxu0 0
        %825 = vmatpush1.bf16.msra.mxu0 0
        %826 = vmatprep.subr.bf16.mxu0 0
        %827 = vmatpush1.bf16.msra.mxu0 0
        %828 = vmatprep.subr.bf16.mxu0 0
        %829 = vmatpush1.bf16.msra.mxu0 0
        %830 = vmatprep.subr.bf16.mxu0 0
        %831 = vmatpush1.bf16.msra.mxu0 0
        %832 = vmatprep.subr.bf16.mxu0 0
        %833 = vmatpush1.bf16.msra.mxu0 0
        %834 = vmatprep.subr.bf16.mxu0 0
        %835 = vmatpush1.bf16.msra.mxu0 0
        %836 = vmatprep.subr.bf16.mxu0 0
        %837 = vmatpush1.bf16.msra.mxu0 %v820
        %838 = vmatprep.subr.bf16.mxu0 0
        %839 = vmatpush2.bf16.msra.mxu0 0
        %840 = vmatprep.subr.bf16.mxu0 0
        %841 = vmatpush2.bf16.msra.mxu0 0
        %842 = vmatprep.subr.bf16.mxu0 0
        %843 = vmatpush2.bf16.msra.mxu0 0
        %844 = vmatprep.subr.bf16.mxu0 0
        %845 = vmatpush2.bf16.msra.mxu0 0
        %846 = vmatprep.subr.bf16.mxu0 0
        %847 = vmatpush2.bf16.msra.mxu0 0
        %848 = vmatprep.subr.bf16.mxu0 0
        %849 = vmatpush2.bf16.msra.mxu0 0
        %850 = vmatprep.subr.bf16.mxu0 0
        %851 = vmatpush2.bf16.msra.mxu0 0
        %852 = vmatprep.subr.bf16.mxu0 0
        %853 = vmatpush2.bf16.msra.mxu0 0
        %854 = vmatprep.mubr.bf16.mxu0 0
        %855 = vmatmul.mubr.bf16.gmra.mxu0 %v294
        %v856 = vpop.f32.mrf.mxu0
        %v857 = vadd.f32 0.0, %v856
        %v858 = vpop.f32.mrf.mxu0
        %v859 = vpop.f32.mrf.mxu0
        %v860 = vadd.f32 0.0, %v859
        %v861 = vpop.f32.mrf.mxu0
        %862 = vmatprep.mubr.bf16.mxu0 0
        %863 = vmatmul.mubr.bf16.gmra.mxu0 %v297
        %v864 = vpop.f32.mrf.mxu0
        %v865 = vadd.f32 0.0, %v864
        %v866 = vpop.f32.mrf.mxu0
        %v867 = vpop.f32.mrf.mxu0
        %v868 = vadd.f32 0.0, %v867
        %v869 = vpop.f32.mrf.mxu0
        %870 = vmatprep.mubr.bf16.mxu0 0
        %871 = vmatmul.mubr.bf16.gmra.mxu0 %v300
        %v872 = vpop.f32.mrf.mxu0
        %v873 = vadd.f32 0.0, %v872
        %v874 = vpop.f32.mrf.mxu0
        %v875 = vpop.f32.mrf.mxu0
        %v876 = vadd.f32 0.0, %v875
        %v877 = vpop.f32.mrf.mxu0
        %878 = vmatprep.mubr.bf16.mxu0 0
        %879 = vmatmul.mubr.bf16.gmra.mxu0 %v303
        %v880 = vpop.f32.mrf.mxu0
        %v881 = vadd.f32 0.0, %v880
        %v882 = vpop.f32.mrf.mxu0
        %v883 = vpop.f32.mrf.mxu0
        %v884 = vadd.f32 0.0, %v883
        %v885 = vpop.f32.mrf.mxu0
        %886 = vmatprep.mubr.bf16.mxu0 0
        %887 = vmatmul.mubr.bf16.gmra.mxu0 %v306
        %v888 = vpop.f32.mrf.mxu0
        %v889 = vadd.f32 0.0, %v888
        %v890 = vpop.f32.mrf.mxu0
        %v891 = vpop.f32.mrf.mxu0
        %v892 = vadd.f32 0.0, %v891
        %v893 = vpop.f32.mrf.mxu0
        %894 = vmatprep.mubr.bf16.mxu0 0
        %895 = vmatmul.mubr.bf16.gmra.mxu0 %v309
        %v896 = vpop.f32.mrf.mxu0
        %v897 = vadd.f32 0.0, %v896
        %v898 = vpop.f32.mrf.mxu0
        %v899 = vpop.f32.mrf.mxu0
        %v900 = vadd.f32 0.0, %v899
        %v901 = vpop.f32.mrf.mxu0
        %902 = vmatprep.mubr.bf16.mxu0 0
        %903 = vmatmul.mubr.bf16.gmra.mxu0 %v312
        %v904 = vpop.f32.mrf.mxu0
        %v905 = vadd.f32 0.0, %v904
        %v906 = vpop.f32.mrf.mxu0
        %v907 = vpop.f32.mrf.mxu0
        %v908 = vadd.f32 0.0, %v907
        %v909 = vpop.f32.mrf.mxu0
        %910 = vmatprep.mubr.bf16.mxu0 0
        %911 = vmatmul.mubr.bf16.gmra.mxu0 %v315
        %v912 = vpop.f32.mrf.mxu0
        %v913 = vadd.f32 0.0, %v912
        %v914 = vpop.f32.mrf.mxu0
        %v915 = vpop.f32.mrf.mxu0
        %v916 = vadd.f32 0.0, %v915
        %v917 = vpop.f32.mrf.mxu0
        %918 = vmatprep.mubr.bf16.mxu0 0
        %919 = vmatmul.mubr.bf16.gmra.mxu0 %v318
        %v920 = vpop.f32.mrf.mxu0
        %v921 = vadd.f32 0.0, %v920
        %v922 = vpop.f32.mrf.mxu0
        %v923 = vpop.f32.mrf.mxu0
        %v924 = vadd.f32 0.0, %v923
        %v925 = vpop.f32.mrf.mxu0
        %926 = vmatprep.mubr.bf16.mxu0 0
        %927 = vmatmul.mubr.bf16.gmra.mxu0 %v321
        %v928 = vpop.f32.mrf.mxu0
        %v929 = vadd.f32 0.0, %v928
        %v930 = vpop.f32.mrf.mxu0
        %v931 = vpop.f32.mrf.mxu0
        %v932 = vadd.f32 0.0, %v931
        %v933 = vpop.f32.mrf.mxu0
        %934 = vmatprep.mubr.bf16.mxu0 0
        %935 = vmatmul.mubr.bf16.gmra.mxu0 %v324
        %v936 = vpop.f32.mrf.mxu0
        %v937 = vadd.f32 0.0, %v936
        %v938 = vpop.f32.mrf.mxu0
        %v939 = vpop.f32.mrf.mxu0
        %v940 = vadd.f32 0.0, %v939
        %v941 = vpop.f32.mrf.mxu0
        %942 = vmatprep.mubr.bf16.mxu0 0
        %943 = vmatmul.mubr.bf16.gmra.mxu0 %v327
        %v944 = vpop.f32.mrf.mxu0
        %v945 = vadd.f32 0.0, %v944
        %v946 = vpop.f32.mrf.mxu0
        %v947 = vpop.f32.mrf.mxu0
        %v948 = vadd.f32 0.0, %v947
        %v949 = vpop.f32.mrf.mxu0
        %950 = vmatprep.mubr.bf16.mxu0 0
        %951 = vmatmul.mubr.bf16.gmra.mxu0 %v330
        %v952 = vpop.f32.mrf.mxu0
        %v953 = vadd.f32 0.0, %v952
        %v954 = vpop.f32.mrf.mxu0
        %v955 = vpop.f32.mrf.mxu0
        %v956 = vadd.f32 0.0, %v955
        %v957 = vpop.f32.mrf.mxu0
        %958 = vdwg.mxu0
        %v959 = vmax.f32 %v787, %v857
        %v960 = vmax.f32 %v788, %v860
        %v961 = vmax.f32 %v789, %v865
        %v962 = vmax.f32 %v790, %v868
        %v963 = vmax.f32 %v791, %v873
        %v964 = vmax.f32 %v792, %v876
        %v965 = vmax.f32 %v793, %v881
        %v966 = vmax.f32 %v794, %v884
        %v967 = vmax.f32 %v795, %v889
        %v968 = vmax.f32 %v796, %v892
        %v969 = vmax.f32 %v797, %v897
        %v970 = vmax.f32 %v798, %v900
        %v971 = vmax.f32 %v799, %v905
        %v972 = vmax.f32 %v800, %v908
        %v973 = vmax.f32 %v801, %v913
        %v974 = vmax.f32 %v802, %v916
        %v975 = vmax.f32 %v803, %v921
        %v976 = vmax.f32 %v804, %v924
        %v977 = vmax.f32 %v805, %v929
        %v978 = vmax.f32 %v806, %v932
        %v979 = vmax.f32 %v807, %v937
        %v980 = vmax.f32 %v808, %v940
        %v981 = vmax.f32 %v809, %v945
        %v982 = vmax.f32 %v810, %v948
        %v983 = vmax.f32 %v811, %v953
        %v984 = vmax.f32 %v812, %v956
        %v985 = vld [vmem:[%s2] sm:$0x1]
        %v987 = vlaneseq
        %v988 = vshrl.u32 %v987, 7
        %v989 = vsub.s32 0, %v988
        %v990 = vrot.slane %v985, %v989
        %v992 = vadd.f32 %v959, %v990
        %v993 = vadd.f32 %v960, %v990
        %v994 = vadd.f32 %v961, %v990
        %v995 = vadd.f32 %v962, %v990
        %v996 = vadd.f32 %v963, %v990
        %v997 = vadd.f32 %v964, %v990
        %v998 = vadd.f32 %v965, %v990
        %v999 = vadd.f32 %v966, %v990
        %v1000 = vadd.f32 %v967, %v990
        %v1001 = vadd.f32 %v968, %v990
        %v1002 = vadd.f32 %v969, %v990
        %v1003 = vadd.f32 %v970, %v990
        %v1004 = vadd.f32 %v971, %v990
        %v1005 = vadd.f32 %v972, %v990
        %v1006 = vadd.f32 %v973, %v990
        %v1007 = vadd.f32 %v974, %v990
        %v1008 = vadd.f32 %v975, %v990
        %v1009 = vadd.f32 %v976, %v990
        %v1010 = vadd.f32 %v977, %v990
        %v1011 = vadd.f32 %v978, %v990
        %v1012 = vadd.f32 %v979, %v990
        %v1013 = vadd.f32 %v980, %v990
        %v1014 = vadd.f32 %v981, %v990
        %v1015 = vadd.f32 %v982, %v990
        %v1016 = vadd.f32 %v983, %v990
        %v1017 = vadd.f32 %v984, %v990
        %v1018 = vmax.f32 %v992, 0.0
        %v1019 = vmax.f32 %v993, 0.0
        %v1020 = vmax.f32 %v994, 0.0
        %v1021 = vmax.f32 %v995, 0.0
        %v1022 = vmax.f32 %v996, 0.0
        %v1023 = vmax.f32 %v997, 0.0
        %v1024 = vmax.f32 %v998, 0.0
        %v1025 = vmax.f32 %v999, 0.0
        %v1026 = vmax.f32 %v1000, 0.0
        %v1027 = vmax.f32 %v1001, 0.0
        %v1028 = vmax.f32 %v1002, 0.0
        %v1029 = vmax.f32 %v1003, 0.0
        %v1030 = vmax.f32 %v1004, 0.0
        %v1031 = vmax.f32 %v1005, 0.0
        %v1032 = vmax.f32 %v1006, 0.0
        %v1033 = vmax.f32 %v1007, 0.0
        %v1034 = vmax.f32 %v1008, 0.0
        %v1035 = vmax.f32 %v1009, 0.0
        %v1036 = vmax.f32 %v1010, 0.0
        %v1037 = vmax.f32 %v1011, 0.0
        %v1038 = vmax.f32 %v1012, 0.0
        %v1039 = vmax.f32 %v1013, 0.0
        %v1040 = vmax.f32 %v1014, 0.0
        %v1041 = vmax.f32 %v1015, 0.0
        %v1042 = vmax.f32 %v1016, 0.0
        %v1043 = vmax.f32 %v1017, 0.0
        %v1044 = vpack.c.bf16 %v1019, %v1018
        %v1045 = vpack.c.bf16 %v1021, %v1020
        %v1046 = vpack.c.bf16 %v1023, %v1022
        %v1047 = vpack.c.bf16 %v1025, %v1024
        %v1048 = vpack.c.bf16 %v1027, %v1026
        %v1049 = vpack.c.bf16 %v1029, %v1028
        %v1050 = vpack.c.bf16 %v1031, %v1030
        %v1051 = vpack.c.bf16 %v1033, %v1032
        %v1052 = vpack.c.bf16 %v1035, %v1034
        %v1053 = vpack.c.bf16 %v1037, %v1036
        %v1054 = vpack.c.bf16 %v1039, %v1038
        %v1055 = vpack.c.bf16 %v1041, %v1040
        %v1056 = vpack.c.bf16 %v1043, %v1042
        %v1070 = vunpack.c.l.b16 %v1044
        %v1071 = vunpack.c.h.b16 %v1044
        %v1072 = vunpack.c.l.b16 %v1045
        %v1073 = vunpack.c.h.b16 %v1045
        %v1074 = vunpack.c.l.b16 %v1046
        %v1075 = vunpack.c.h.b16 %v1046
        %v1076 = vunpack.c.l.b16 %v1047
        %v1077 = vunpack.c.h.b16 %v1047
        %v1078 = vunpack.c.l.b16 %v1048
        %v1079 = vunpack.c.h.b16 %v1048
        %v1080 = vunpack.c.l.b16 %v1049
        %v1081 = vunpack.c.h.b16 %v1049
        %v1082 = vunpack.c.l.b16 %v1050
        %v1083 = vunpack.c.h.b16 %v1050
        %v1084 = vunpack.c.l.b16 %v1051
        %v1085 = vunpack.c.h.b16 %v1051
        %v1086 = vunpack.c.l.b16 %v1052
        %v1087 = vunpack.c.h.b16 %v1052
        %v1088 = vunpack.c.l.b16 %v1053
        %v1089 = vunpack.c.h.b16 %v1053
        %v1090 = vunpack.c.l.b16 %v1054
        %v1091 = vunpack.c.h.b16 %v1054
        %v1092 = vunpack.c.l.b16 %v1055
        %v1093 = vunpack.c.h.b16 %v1055
        %v1094 = vunpack.c.l.b16 %v1056
        %v1095 = vunpack.c.h.b16 %v1056
        %v1096 = vpack.c.b16 %v1070, %v1070
        %v1097 = vpack.c.b16 %v1071, %v1071
        %v1098 = vpack.c.b16 %v1072, %v1072
        %v1099 = vpack.c.b16 %v1073, %v1073
        %v1100 = vpack.c.b16 %v1074, %v1074
        %v1101 = vpack.c.b16 %v1075, %v1075
        %v1102 = vpack.c.b16 %v1076, %v1076
        %v1103 = vpack.c.b16 %v1077, %v1077
        %v1104 = vpack.c.b16 %v1078, %v1078
        %v1105 = vpack.c.b16 %v1079, %v1079
        %v1106 = vpack.c.b16 %v1080, %v1080
        %v1107 = vpack.c.b16 %v1081, %v1081
        %v1108 = vpack.c.b16 %v1082, %v1082
        %v1109 = vpack.c.b16 %v1083, %v1083
        %v1110 = vpack.c.b16 %v1084, %v1084
        %v1111 = vpack.c.b16 %v1085, %v1085
        %v1112 = vpack.c.b16 %v1086, %v1086
        %v1113 = vpack.c.b16 %v1087, %v1087
        %v1114 = vpack.c.b16 %v1088, %v1088
        %v1115 = vpack.c.b16 %v1089, %v1089
        %v1116 = vpack.c.b16 %v1090, %v1090
        %v1117 = vpack.c.b16 %v1091, %v1091
        %v1118 = vpack.c.b16 %v1092, %v1092
        %v1119 = vpack.c.b16 %v1093, %v1093
        %v1120 = vpack.c.b16 %v1094, %v1094
        %v1121 = vpack.c.b16 %v1095, %v1095
        %vm1148 = vcmask 125952
        %1149 = vst.msk [vmem:[%s172] sm:$0xf] %vm1148, %v1096
        %1150 = vst.msk [vmem:[%s172 + $0x4] sm:$0xf] %vm1148, %v1097
        %1151 = vst.msk [vmem:[%s172 + $0x8] sm:$0xf] %vm1148, %v1098
        %1152 = vst.msk [vmem:[%s172 + $0xc] sm:$0xf] %vm1148, %v1099
        %1153 = vst.msk [vmem:[%s172 + $0x10] sm:$0xf] %vm1148, %v1100
        %1154 = vst.msk [vmem:[%s172 + $0x14] sm:$0xf] %vm1148, %v1101
        %1155 = vst.msk [vmem:[%s172 + $0x18] sm:$0xf] %vm1148, %v1102
        %1156 = vst.msk [vmem:[%s172 + $0x1c] sm:$0xf] %vm1148, %v1103
        %1157 = vst.msk [vmem:[%s172 + $0x20] sm:$0xf] %vm1148, %v1104
        %1158 = vst.msk [vmem:[%s172 + $0x24] sm:$0xf] %vm1148, %v1105
        %1159 = vst.msk [vmem:[%s172 + $0x28] sm:$0xf] %vm1148, %v1106
        %1160 = vst.msk [vmem:[%s172 + $0x2c] sm:$0xf] %vm1148, %v1107
        %1161 = vst.msk [vmem:[%s172 + $0x30] sm:$0xf] %vm1148, %v1108
        %1162 = vst.msk [vmem:[%s172 + $0x34] sm:$0xf] %vm1148, %v1109
        %1163 = vst.msk [vmem:[%s172 + $0x38] sm:$0xf] %vm1148, %v1110
        %1164 = vst.msk [vmem:[%s172 + $0x3c] sm:$0xf] %vm1148, %v1111
        %1165 = vst.msk [vmem:[%s172 + $0x40] sm:$0xf] %vm1148, %v1112
        %1166 = vst.msk [vmem:[%s172 + $0x44] sm:$0xf] %vm1148, %v1113
        %1167 = vst.msk [vmem:[%s172 + $0x48] sm:$0xf] %vm1148, %v1114
        %1168 = vst.msk [vmem:[%s172 + $0x4c] sm:$0xf] %vm1148, %v1115
        %1169 = vst.msk [vmem:[%s172 + $0x50] sm:$0xf] %vm1148, %v1116
        %1170 = vst.msk [vmem:[%s172 + $0x54] sm:$0xf] %vm1148, %v1117
        %1171 = vst.msk [vmem:[%s172 + $0x58] sm:$0xf] %vm1148, %v1118
        %1172 = vst.msk [vmem:[%s172 + $0x5c] sm:$0xf] %vm1148, %v1119
        %1173 = vst.msk [vmem:[%s172 + $0x60] sm:$0xf] %vm1148, %v1120
        %1174 = vst.msk [vmem:[%s172 + $0x64] sm:$0xf] %vm1148, %v1121
        %s1175 = sand.u32 %s90, 1
        %s1176 = sand.u32 %s90, 1
        %s1177 = smul.addr %s1176, 104
        %s1178 = scalar_lea.vmem [#allocation2], %s1177
        // Predicated region
        $region33: #{simple_cnn_forward.3} parent=31 // pred_check
          %p1179 = pneg %p100
        $region34: #{simple_cnn_forward.3} parent=31 // pred_check_branch
          %1181 = sbr.rel (%p1179) target = $region36
        $region35: #{simple_cnn_forward.3} parent=31 // pred_region
          %s1182 = smul.u32 26, %s14
          %s1183 = ssub.s32 49, %s1182
          %p1184 = scmp.lt.s32.totalorder %s1183, 26
          %s1185 = scalar_select %p1184, %s1183, 26
          %s1186 = smul.u32 64, %s1185
          %p1187 = scmp.ne.s32.totalorder 0, %s1186
          %s1188 = smul.addr %s1182, 4
          %s1189 = scalar_lea.vmem %s3, %s1188
          // Predicated region
          $region37: #{simple_cnn_forward.3} parent=35 // pred_check
            %p1190 = pneg %p1187
          $region38: #{simple_cnn_forward.3} parent=35 // pred_check_branch
            %1192 = sbr.rel (%p1190) target = $region40
          $region39: #{simple_cnn_forward.3} parent=35 // pred_region
            // Predicated region
            $region41: #{simple_cnn_forward.3} parent=39 // pred_check
              _
            $region42: #{simple_cnn_forward.3} parent=39 // pred_check_branch
              %1194 = sbr.rel target = $region44
            $region43: #{simple_cnn_forward.3} parent=39 // pred_region
              // Predicated region
              $region63: #{simple_cnn_forward.3} parent=43 // pred_check
                _
              $region64: #{simple_cnn_forward.3} parent=43 // pred_check_branch
                %1295 = sbr.rel (0) target = $region66
              $region65: #{simple_cnn_forward.3} parent=43 // pred_region
                %s1297 = ssub.s32 16, 1
                %s1298 = sdiv.u32.pop %s1185, 26
                %s1299 = srem.u32.pop %s1185, 26
                // While loop
                $region67: #{simple_cnn_forward.3} parent=65 // loop_pre_header
                  _
                $region68: #{simple_cnn_forward.3} parent=65 // loop_header
                  %s1301 = sphi 0, %s1303
                  %p1302 = scmp.ge.s32.totalorder %s1301, %s1298
                  %s1306 = sphi 0, %s1363
                  %s1307 = sphi %s1178, %s1366
                  %s1308 = sphi %s1189, %s1367
                $region69: #{simple_cnn_forward.3} parent=65 // loop_header_branch
                  %1305 = sbr.rel (%p1302) target = $region73
                $region70: #{simple_cnn_forward.3} parent=65 // loop_body
                  %v1309 = vld [vmem:[%s1307] sm:%s1297]
                  %1310 = vst [vmem:[%s1308] sm:%s1297] %v1309
                  %v1311 = vld [vmem:[%s1307 + $0x4] sm:%s1297]
                  %1312 = vst [vmem:[%s1308 + $0x4] sm:%s1297] %v1311
                  %v1313 = vld [vmem:[%s1307 + $0x8] sm:%s1297]
                  %1314 = vst [vmem:[%s1308 + $0x8] sm:%s1297] %v1313
                  %v1315 = vld [vmem:[%s1307 + $0xc] sm:%s1297]
                  %1316 = vst [vmem:[%s1308 + $0xc] sm:%s1297] %v1315
                  %v1317 = vld [vmem:[%s1307 + $0x10] sm:%s1297]
                  %1318 = vst [vmem:[%s1308 + $0x10] sm:%s1297] %v1317
                  %v1319 = vld [vmem:[%s1307 + $0x14] sm:%s1297]
                  %1320 = vst [vmem:[%s1308 + $0x14] sm:%s1297] %v1319
                  %v1321 = vld [vmem:[%s1307 + $0x18] sm:%s1297]
                  %1322 = vst [vmem:[%s1308 + $0x18] sm:%s1297] %v1321
                  %v1323 = vld [vmem:[%s1307 + $0x1c] sm:%s1297]
                  %1324 = vst [vmem:[%s1308 + $0x1c] sm:%s1297] %v1323
                  %v1325 = vld [vmem:[%s1307 + $0x20] sm:%s1297]
                  %1326 = vst [vmem:[%s1308 + $0x20] sm:%s1297] %v1325
                  %v1327 = vld [vmem:[%s1307 + $0x24] sm:%s1297]
                  %1328 = vst [vmem:[%s1308 + $0x24] sm:%s1297] %v1327
                  %v1329 = vld [vmem:[%s1307 + $0x28] sm:%s1297]
                  %1330 = vst [vmem:[%s1308 + $0x28] sm:%s1297] %v1329
                  %v1331 = vld [vmem:[%s1307 + $0x2c] sm:%s1297]
                  %1332 = vst [vmem:[%s1308 + $0x2c] sm:%s1297] %v1331
                  %v1333 = vld [vmem:[%s1307 + $0x30] sm:%s1297]
                  %1334 = vst [vmem:[%s1308 + $0x30] sm:%s1297] %v1333
                  %v1335 = vld [vmem:[%s1307 + $0x34] sm:%s1297]
                  %1336 = vst [vmem:[%s1308 + $0x34] sm:%s1297] %v1335
                  %v1337 = vld [vmem:[%s1307 + $0x38] sm:%s1297]
                  %1338 = vst [vmem:[%s1308 + $0x38] sm:%s1297] %v1337
                  %v1339 = vld [vmem:[%s1307 + $0x3c] sm:%s1297]
                  %1340 = vst [vmem:[%s1308 + $0x3c] sm:%s1297] %v1339
                  %v1341 = vld [vmem:[%s1307 + $0x40] sm:%s1297]
                  %1342 = vst [vmem:[%s1308 + $0x40] sm:%s1297] %v1341
                  %v1343 = vld [vmem:[%s1307 + $0x44] sm:%s1297]
                  %1344 = vst [vmem:[%s1308 + $0x44] sm:%s1297] %v1343
                  %v1345 = vld [vmem:[%s1307 + $0x48] sm:%s1297]
                  %1346 = vst [vmem:[%s1308 + $0x48] sm:%s1297] %v1345
                  %v1347 = vld [vmem:[%s1307 + $0x4c] sm:%s1297]
                  %1348 = vst [vmem:[%s1308 + $0x4c] sm:%s1297] %v1347
                  %v1349 = vld [vmem:[%s1307 + $0x50] sm:%s1297]
                  %1350 = vst [vmem:[%s1308 + $0x50] sm:%s1297] %v1349
                  %v1351 = vld [vmem:[%s1307 + $0x54] sm:%s1297]
                  %1352 = vst [vmem:[%s1308 + $0x54] sm:%s1297] %v1351
                  %v1353 = vld [vmem:[%s1307 + $0x58] sm:%s1297]
                  %1354 = vst [vmem:[%s1308 + $0x58] sm:%s1297] %v1353
                  %v1355 = vld [vmem:[%s1307 + $0x5c] sm:%s1297]
                  %1356 = vst [vmem:[%s1308 + $0x5c] sm:%s1297] %v1355
                  %v1357 = vld [vmem:[%s1307 + $0x60] sm:%s1297]
                  %1358 = vst [vmem:[%s1308 + $0x60] sm:%s1297] %v1357
                  %v1359 = vld [vmem:[%s1307 + $0x64] sm:%s1297]
                  %1360 = vst [vmem:[%s1308 + $0x64] sm:%s1297] %v1359
                  %s1361 = sadd.s32 1, %s1306
                  %p1362 = scmp.ge.s32.totalorder %s1361, %s1298
                  %s1363 = scalar_select %p1362, 0, %s1361
                  %s1364 = smul.u32 %s1363, 104
                  %s1365 = smul.u32 %s1363, 104
                  %s1366 = scalar_lea.vmem %s1178, %s1364 [#allocation2]
                  %s1367 = scalar_lea.vmem %s1189, %s1365
                $region71: #{simple_cnn_forward.3} parent=65 // loop_footer
                  %s1303 = sadd.s32 %s1301, 1
                $region72: #{simple_cnn_forward.3} parent=65 // loop_footer_branch
                  %1300 = sbr.rel target = $region68
                $region73: #{simple_cnn_forward.3} parent=65 // loop_exit
                  _
                %s1368 = sdiv.u32.pop %s1185, 26
                %s1369 = srem.u32.pop %s1185, 26
                %s1370 = smul.u32 %s1368, 26
                %s1371 = smul.u32 4, %s1370
                %s1372 = scalar_lea.vmem %s1178, %s1371 [#allocation2]
                %s1373 = smul.u32 4, %s1370
                %s1374 = scalar_lea.vmem %s1189, %s1373
                // While loop
                $region74: #{simple_cnn_forward.3} parent=65 // loop_pre_header
                  _
                $region75: #{simple_cnn_forward.3} parent=65 // loop_header
                  %s1376 = sphi 0, %s1378
                  %p1377 = scmp.ge.s32.totalorder %s1376, %s1369
                  %s1381 = sphi 0, %s1388
                  %s1382 = sphi %s1372, %s1391
                  %s1383 = sphi %s1374, %s1392
                $region76: #{simple_cnn_forward.3} parent=65 // loop_header_branch
                  %1380 = sbr.rel (%p1377) target = $region80
                $region77: #{simple_cnn_forward.3} parent=65 // loop_body
                  %v1384 = vld [vmem:[%s1382] sm:%s1297]
                  %1385 = vst [vmem:[%s1383] sm:%s1297] %v1384
                  %s1386 = sadd.s32 1, %s1381
                  %p1387 = scmp.ge.s32.totalorder %s1386, %s1369
                  %s1388 = scalar_select %p1387, 0, %s1386
                  %s1389 = smul.u32 %s1388, 4
                  %s1390 = smul.u32 %s1388, 4
                  %s1391 = scalar_lea.vmem %s1372, %s1389 [#allocation2]
                  %s1392 = scalar_lea.vmem %s1374, %s1390
                $region78: #{simple_cnn_forward.3} parent=65 // loop_footer
                  %s1378 = sadd.s32 %s1376, 1
                $region79: #{simple_cnn_forward.3} parent=65 // loop_footer_branch
                  %1375 = sbr.rel target = $region75
                $region80: #{simple_cnn_forward.3} parent=65 // loop_exit
                  _
              $region66: #{simple_cnn_forward.3} parent=43 // pred_fallthru
                _
            $region44: #{simple_cnn_forward.3} parent=39 // pred_fallthru
              _
            // Predicated region
            $region45: #{simple_cnn_forward.3} parent=39 // pred_check
              _
            $region46: #{simple_cnn_forward.3} parent=39 // pred_check_branch
              %1196 = sbr.rel (0) target = $region48
            $region47: #{simple_cnn_forward.3} parent=39 // pred_region
              %s1198 = ssub.s32 16, 1
              %s1199 = sdiv.u32.pop %s1185, 26
              %s1200 = srem.u32.pop %s1185, 26
              // While loop
              $region49: #{simple_cnn_forward.3} parent=47 // loop_pre_header
                _
              $region50: #{simple_cnn_forward.3} parent=47 // loop_header
                %s1202 = sphi 0, %s1204
                %p1203 = scmp.ge.s32.totalorder %s1202, %s1199
                %s1207 = sphi 0, %s1264
                %s1208 = sphi %s1178, %s1267
                %s1209 = sphi %s1189, %s1268
              $region51: #{simple_cnn_forward.3} parent=47 // loop_header_branch
                %1206 = sbr.rel (%p1203) target = $region55
              $region52: #{simple_cnn_forward.3} parent=47 // loop_body
                %v1210 = vld [vmem:[%s1208] sm:%s1198]
                %1211 = vst [vmem:[%s1209] sm:%s1198] %v1210
                %v1212 = vld [vmem:[%s1208 + $0x4] sm:%s1198]
                %1213 = vst [vmem:[%s1209 + $0x4] sm:%s1198] %v1212
                %v1214 = vld [vmem:[%s1208 + $0x8] sm:%s1198]
                %1215 = vst [vmem:[%s1209 + $0x8] sm:%s1198] %v1214
                %v1216 = vld [vmem:[%s1208 + $0xc] sm:%s1198]
                %1217 = vst [vmem:[%s1209 + $0xc] sm:%s1198] %v1216
                %v1218 = vld [vmem:[%s1208 + $0x10] sm:%s1198]
                %1219 = vst [vmem:[%s1209 + $0x10] sm:%s1198] %v1218
                %v1220 = vld [vmem:[%s1208 + $0x14] sm:%s1198]
                %1221 = vst [vmem:[%s1209 + $0x14] sm:%s1198] %v1220
                %v1222 = vld [vmem:[%s1208 + $0x18] sm:%s1198]
                %1223 = vst [vmem:[%s1209 + $0x18] sm:%s1198] %v1222
                %v1224 = vld [vmem:[%s1208 + $0x1c] sm:%s1198]
                %1225 = vst [vmem:[%s1209 + $0x1c] sm:%s1198] %v1224
                %v1226 = vld [vmem:[%s1208 + $0x20] sm:%s1198]
                %1227 = vst [vmem:[%s1209 + $0x20] sm:%s1198] %v1226
                %v1228 = vld [vmem:[%s1208 + $0x24] sm:%s1198]
                %1229 = vst [vmem:[%s1209 + $0x24] sm:%s1198] %v1228
                %v1230 = vld [vmem:[%s1208 + $0x28] sm:%s1198]
                %1231 = vst [vmem:[%s1209 + $0x28] sm:%s1198] %v1230
                %v1232 = vld [vmem:[%s1208 + $0x2c] sm:%s1198]
                %1233 = vst [vmem:[%s1209 + $0x2c] sm:%s1198] %v1232
                %v1234 = vld [vmem:[%s1208 + $0x30] sm:%s1198]
                %1235 = vst [vmem:[%s1209 + $0x30] sm:%s1198] %v1234
                %v1236 = vld [vmem:[%s1208 + $0x34] sm:%s1198]
                %1237 = vst [vmem:[%s1209 + $0x34] sm:%s1198] %v1236
                %v1238 = vld [vmem:[%s1208 + $0x38] sm:%s1198]
                %1239 = vst [vmem:[%s1209 + $0x38] sm:%s1198] %v1238
                %v1240 = vld [vmem:[%s1208 + $0x3c] sm:%s1198]
                %1241 = vst [vmem:[%s1209 + $0x3c] sm:%s1198] %v1240
                %v1242 = vld [vmem:[%s1208 + $0x40] sm:%s1198]
                %1243 = vst [vmem:[%s1209 + $0x40] sm:%s1198] %v1242
                %v1244 = vld [vmem:[%s1208 + $0x44] sm:%s1198]
                %1245 = vst [vmem:[%s1209 + $0x44] sm:%s1198] %v1244
                %v1246 = vld [vmem:[%s1208 + $0x48] sm:%s1198]
                %1247 = vst [vmem:[%s1209 + $0x48] sm:%s1198] %v1246
                %v1248 = vld [vmem:[%s1208 + $0x4c] sm:%s1198]
                %1249 = vst [vmem:[%s1209 + $0x4c] sm:%s1198] %v1248
                %v1250 = vld [vmem:[%s1208 + $0x50] sm:%s1198]
                %1251 = vst [vmem:[%s1209 + $0x50] sm:%s1198] %v1250
                %v1252 = vld [vmem:[%s1208 + $0x54] sm:%s1198]
                %1253 = vst [vmem:[%s1209 + $0x54] sm:%s1198] %v1252
                %v1254 = vld [vmem:[%s1208 + $0x58] sm:%s1198]
                %1255 = vst [vmem:[%s1209 + $0x58] sm:%s1198] %v1254
                %v1256 = vld [vmem:[%s1208 + $0x5c] sm:%s1198]
                %1257 = vst [vmem:[%s1209 + $0x5c] sm:%s1198] %v1256
                %v1258 = vld [vmem:[%s1208 + $0x60] sm:%s1198]
                %1259 = vst [vmem:[%s1209 + $0x60] sm:%s1198] %v1258
                %v1260 = vld [vmem:[%s1208 + $0x64] sm:%s1198]
                %1261 = vst [vmem:[%s1209 + $0x64] sm:%s1198] %v1260
                %s1262 = sadd.s32 1, %s1207
                %p1263 = scmp.ge.s32.totalorder %s1262, %s1199
                %s1264 = scalar_select %p1263, 0, %s1262
                %s1265 = smul.u32 %s1264, 104
                %s1266 = smul.u32 %s1264, 104
                %s1267 = scalar_lea.vmem %s1178, %s1265 [#allocation2]
                %s1268 = scalar_lea.vmem %s1189, %s1266
              $region53: #{simple_cnn_forward.3} parent=47 // loop_footer
                %s1204 = sadd.s32 %s1202, 1
              $region54: #{simple_cnn_forward.3} parent=47 // loop_footer_branch
                %1201 = sbr.rel target = $region50
              $region55: #{simple_cnn_forward.3} parent=47 // loop_exit
                _
              %s1269 = sdiv.u32.pop %s1185, 26
              %s1270 = srem.u32.pop %s1185, 26
              %s1271 = smul.u32 %s1269, 26
              %s1272 = smul.u32 4, %s1271
              %s1273 = scalar_lea.vmem %s1178, %s1272 [#allocation2]
              %s1274 = smul.u32 4, %s1271
              %s1275 = scalar_lea.vmem %s1189, %s1274
              // While loop
              $region56: #{simple_cnn_forward.3} parent=47 // loop_pre_header
                _
              $region57: #{simple_cnn_forward.3} parent=47 // loop_header
                %s1277 = sphi 0, %s1279
                %p1278 = scmp.ge.s32.totalorder %s1277, %s1270
                %s1282 = sphi 0, %s1289
                %s1283 = sphi %s1273, %s1292
                %s1284 = sphi %s1275, %s1293
              $region58: #{simple_cnn_forward.3} parent=47 // loop_header_branch
                %1281 = sbr.rel (%p1278) target = $region62
              $region59: #{simple_cnn_forward.3} parent=47 // loop_body
                %v1285 = vld [vmem:[%s1283] sm:%s1198]
                %1286 = vst [vmem:[%s1284] sm:%s1198] %v1285
                %s1287 = sadd.s32 1, %s1282
                %p1288 = scmp.ge.s32.totalorder %s1287, %s1270
                %s1289 = scalar_select %p1288, 0, %s1287
                %s1290 = smul.u32 %s1289, 4
                %s1291 = smul.u32 %s1289, 4
                %s1292 = scalar_lea.vmem %s1273, %s1290 [#allocation2]
                %s1293 = scalar_lea.vmem %s1275, %s1291
              $region60: #{simple_cnn_forward.3} parent=47 // loop_footer
                %s1279 = sadd.s32 %s1277, 1
              $region61: #{simple_cnn_forward.3} parent=47 // loop_footer_branch
                %1276 = sbr.rel target = $region57
              $region62: #{simple_cnn_forward.3} parent=47 // loop_exit
                _
            $region48: #{simple_cnn_forward.3} parent=39 // pred_fallthru
              _
          $region40: #{simple_cnn_forward.3} parent=35 // pred_fallthru
            _
          %1393 = vnop
        $region36: #{simple_cnn_forward.3} parent=31 // pred_fallthru
          _
      $region32: #{simple_cnn_forward.3} parent=5 // pred_fallthru
        _
      %p1394 = scmp.le.s32.totalorder 2, %s9
      // Predicated region
      $region81: #{simple_cnn_forward.3} parent=5 // pred_check
        %p1395 = pneg %p1394
      $region82: #{simple_cnn_forward.3} parent=5 // pred_check_branch
        %1397 = sbr.rel (%p1395) target = $region84
      $region83: #{simple_cnn_forward.3} parent=5 // pred_region
        %s1398 = ssub.s32 %s9, 2
        // Predicated region
        $region85: #{simple_cnn_forward.3} parent=83 // pred_check
          %p1399 = pneg %p106
        $region86: #{simple_cnn_forward.3} parent=83 // pred_check_branch
          %1401 = sbr.rel (%p1399) target = $region88
        $region87: #{simple_cnn_forward.3} parent=83 // pred_region
          %s1402 = sand.u32 %s91, 1
          %s1403 = sand.u32 %s91, 1
          %s1404 = smul.addr %s1403, 104
          %s1405 = scalar_lea.vmem [#allocation2], %s1404
        $region88: #{simple_cnn_forward.3} parent=83 // pred_fallthru
          _
      $region84: #{simple_cnn_forward.3} parent=5 // pred_fallthru
        _
    $region6: #{simple_cnn_forward.3} parent=1 // loop_footer
      %s13 = sadd.s32 1, %s9
    $region7: #{simple_cnn_forward.3} parent=1 // loop_footer_branch
      %8 = sbr.rel target = $region3
    $region8: #{simple_cnn_forward.3} parent=1 // loop_exit
      _

// kernel: simple_cnn_forward.4
$region0: #{simple_cnn_forward.4}
  #allocation0 [shape = 'u32[]', space=smem, size = 0x4, offset = 0x4, fixed_abs, tag = 'smem constant byte address 0x4 - core index']
  #allocation1 [shape = 'u32[144,128]{1,0:T(1,128)}', space=vmem, size = 0x12000, scoped, tag = 'internal scratch']
  %s0 = inlined_call_operand.vmem [shape: bf16[98,256], index: 0, kind: input, shape index: {}]
  %s1 = inlined_call_operand.vmem [shape: bf16[4,256,32], index: 1, kind: input, shape index: {}]
  %s2 = inlined_call_operand.vmem [shape: f32[1,32], index: 2, kind: input, shape index: {}]
  %s3 = inlined_call_operand.vmem [shape: bf16[98,32], index: 3, kind: output, shape index: {}]
  %s4 = sld [smem:[#allocation0]]
  $region89: #{simple_cnn_forward.4} parent=0
    _
  %s6 = ssub.s32 1, %s4
  %s7 = scalar_select 0, %s6, %s4
  $region1: #{simple_cnn_forward.4} parent=0
    #allocation2 [shape = 'u8[32768]{0}', space=vmem, size = 0x8000, scoped, tag = 'output window, operand 0']
    loop: start=0, step=1, limit=4
    $region2: #{simple_cnn_forward.4} parent=1 // loop_pre_header
      _
    $region3: #{simple_cnn_forward.4} parent=1 // loop_header
      %s9 = sphi 0, %s13
      %p10 = scmp.ge.s32.totalorder %s9, 4
      %s19 = sphi 0, %s21
      %s22 = sphi 0, %s19
      %s23 = sphi 0, %s22
      %s39 = sphi 0, %s23
      %s43 = sphi 0, %s43
      %s45 = sphi 0, %s43
      %s46 = sphi 0, %s45
      %s60 = sphi 0, %s46
      %s64 = sphi 0, %s64
      %s66 = sphi 0, %s64
      %s67 = sphi 0, %s66
      %s81 = sphi 0, %s67
      %s87 = sphi 0, %s89
      %s90 = sphi 0, %s87
      %s91 = sphi 0, %s90
      %s107 = sphi 0, %s91
    $region4: #{simple_cnn_forward.4} parent=1 // loop_header_branch
      %12 = sbr.rel (%p10) target = $region8
    $region5: #{simple_cnn_forward.4} parent=1 // loop_body
      %s14 = ssub.s32 %s9, 1
      %s15 = ssub.s32 %s9, 2
      %s16 = sadd.s32 %s9, 1
      %s17 = ssub.s32 %s9, %s16
      %p18 = scmp.eq.s32.totalorder %s17, 0
      %s20 = sadd.s32 %s19, 1
      %s21 = scalar_select %p18, %s19, %s20
      %p24 = pneg %p18
      %p25 = scmp.eq.s32.totalorder %s9, 1
      %p26 = por %p24, %p25
      %p27 = scmp.ne.s32.totalorder %s19, %s22
      %p28 = scmp.eq.s32.totalorder %s9, 0
      %p29 = por %p27, %p28
      %p30 = scmp.ne.s32.totalorder %s19, %s22
      %p31 = scmp.eq.s32.totalorder %s14, 1
      %p32 = por %p30, %p31
      %p33 = scmp.ne.s32.totalorder %s22, %s23
      %p34 = scmp.eq.s32.totalorder %s14, 0
      %p35 = por %p33, %p34
      %p36 = scmp.ne.s32.totalorder %s22, %s23
      %p37 = scmp.eq.s32.totalorder %s15, 1
      %p38 = por %p36, %p37
      %p40 = scmp.ne.s32.totalorder %s23, %s39
      %p41 = scmp.eq.s32.totalorder %s15, 0
      %p42 = por %p40, %p41
      %s44 = sadd.s32 %s43, 1
      %p47 = scmp.eq.s32.totalorder %s9, 1
      %p48 = scmp.ne.s32.totalorder %s43, %s45
      %p49 = scmp.eq.s32.totalorder %s9, 0
      %p50 = por %p48, %p49
      %p51 = scmp.ne.s32.totalorder %s43, %s45
      %p52 = scmp.eq.s32.totalorder %s14, 1
      %p53 = por %p51, %p52
      %p54 = scmp.ne.s32.totalorder %s45, %s46
      %p55 = scmp.eq.s32.totalorder %s14, 0
      %p56 = por %p54, %p55
      %p57 = scmp.ne.s32.totalorder %s45, %s46
      %p58 = scmp.eq.s32.totalorder %s15, 1
      %p59 = por %p57, %p58
      %p61 = scmp.ne.s32.totalorder %s46, %s60
      %p62 = scmp.eq.s32.totalorder %s15, 0
      %p63 = por %p61, %p62
      %s65 = sadd.s32 %s64, 1
      %p68 = scmp.eq.s32.totalorder %s9, 1
      %p69 = scmp.ne.s32.totalorder %s64, %s66
      %p70 = scmp.eq.s32.totalorder %s9, 0
      %p71 = por %p69, %p70
      %p72 = scmp.ne.s32.totalorder %s64, %s66
      %p73 = scmp.eq.s32.totalorder %s14, 1
      %p74 = por %p72, %p73
      %p75 = scmp.ne.s32.totalorder %s66, %s67
      %p76 = scmp.eq.s32.totalorder %s14, 0
      %p77 = por %p75, %p76
      %p78 = scmp.ne.s32.totalorder %s66, %s67
      %p79 = scmp.eq.s32.totalorder %s15, 1
      %p80 = por %p78, %p79
      %p82 = scmp.ne.s32.totalorder %s67, %s81
      %p83 = scmp.eq.s32.totalorder %s15, 0
      %p84 = por %p82, %p83
      %s85 = ssub.s32 %s9, %s16
      %p86 = scmp.eq.s32.totalorder %s85, 0
      %s88 = sadd.s32 %s87, 1
      %s89 = scalar_select %p86, %s87, %s88
      %p92 = pneg %p86
      %p93 = scmp.eq.s32.totalorder %s9, 1
      %p94 = por %p92, %p93
      %p95 = scmp.ne.s32.totalorder %s87, %s90
      %p96 = scmp.eq.s32.totalorder %s9, 0
      %p97 = por %p95, %p96
      %p98 = scmp.ne.s32.totalorder %s87, %s90
      %p99 = scmp.eq.s32.totalorder %s14, 1
      %p100 = por %p98, %p99
      %p101 = scmp.ne.s32.totalorder %s90, %s91
      %p102 = scmp.eq.s32.totalorder %s14, 0
      %p103 = por %p101, %p102
      %p104 = scmp.ne.s32.totalorder %s90, %s91
      %p105 = scmp.eq.s32.totalorder %s15, 1
      %p106 = por %p104, %p105
      %p108 = scmp.ne.s32.totalorder %s91, %s107
      %p109 = scmp.eq.s32.totalorder %s15, 0
      %p110 = por %p108, %p109
      %p111 = scmp.le.s32.totalorder 1, %s9
      %p112 = scmp.lt.s32.totalorder %s9, 3
      %p113 = pnand %p111, %p112
      %p114 = pneg %p113
      // Predicated region
      $region9: #{simple_cnn_forward.4} parent=5 // pred_check
        _
      $region10: #{simple_cnn_forward.4} parent=5 // pred_check_branch
        %116 = sbr.rel (%p113) target = $region12
      $region11: #{simple_cnn_forward.4} parent=5 // pred_region
        %s117 = ssub.s32 %s9, 1
        // Predicated region
        $region13: #{simple_cnn_forward.4} parent=11 // pred_check
          %p118 = pneg %p56
        $region14: #{simple_cnn_forward.4} parent=11 // pred_check_branch
          %120 = sbr.rel (%p118) target = $region16
        $region15: #{simple_cnn_forward.4} parent=11 // pred_region
          _
        $region16: #{simple_cnn_forward.4} parent=11 // pred_fallthru
          _
        // Predicated region
        $region17: #{simple_cnn_forward.4} parent=11 // pred_check
          %p121 = pneg %p77
        $region18: #{simple_cnn_forward.4} parent=11 // pred_check_branch
          %123 = sbr.rel (%p121) target = $region20
        $region19: #{simple_cnn_forward.4} parent=11 // pred_region
          _
        $region20: #{simple_cnn_forward.4} parent=11 // pred_fallthru
          _
      $region12: #{simple_cnn_forward.4} parent=5 // pred_fallthru
        _
      %p124 = scmp.lt.s32.totalorder %s9, 2
      // Predicated region
      $region21: #{simple_cnn_forward.4} parent=5 // pred_check
        %p125 = pneg %p124
      $region22: #{simple_cnn_forward.4} parent=5 // pred_check_branch
        %127 = sbr.rel (%p125) target = $region24
      $region23: #{simple_cnn_forward.4} parent=5 // pred_region
        // Predicated region
        $region25: #{simple_cnn_forward.4} parent=23 // pred_check
          %p128 = pneg %p29
        $region26: #{simple_cnn_forward.4} parent=23 // pred_check_branch
          %130 = sbr.rel (%p128) target = $region28
        $region27: #{simple_cnn_forward.4} parent=23 // pred_region
          %s131 = smul.u32 8, %s9
          %s132 = ssub.s32 13, %s131
          %p133 = scmp.lt.s32.totalorder %s132, 8
          %s134 = scalar_select %p133, %s132, 8
          %s135 = smul.u32 64, %s134
          %s136 = smul.u32 %s135, 2
          %p137 = scmp.lt.s32.totalorder %s131, 12
          %s138 = scalar_select %p137, %s131, 12
          %s139 = smul.addr %s138, 2
          %s140 = smul.addr %s139, 4
          %s141 = scalar_lea.vmem %s0, %s140
          %s142 = smul.u32 8, %s9
          %s143 = ssub.s32 13, %s142
          %p144 = scmp.lt.s32.totalorder %s143, 8
          %s145 = scalar_select %p144, %s143, 8
          %s146 = smul.u32 64, %s145
          %s147 = smul.u32 %s146, 2
        $region28: #{simple_cnn_forward.4} parent=23 // pred_fallthru
          _
      $region24: #{simple_cnn_forward.4} parent=5 // pred_fallthru
        _
      %p148 = scmp.le.s32.totalorder 1, %s9
      %p149 = scmp.lt.s32.totalorder %s9, 3
      %p150 = pnand %p148, %p149
      %p151 = pneg %p150
      // Predicated region
      $region29: #{simple_cnn_forward.4} parent=5 // pred_check
        _
      $region30: #{simple_cnn_forward.4} parent=5 // pred_check_branch
        %153 = sbr.rel (%p150) target = $region32
      $region31: #{simple_cnn_forward.4} parent=5 // pred_region
        %s154 = ssub.s32 %s9, 1
        %s155 = smul.u32 8, %s14
        %s156 = ssub.s32 13, %s155
        %p157 = scmp.lt.s32.totalorder %s156, 8
        %s158 = scalar_select %p157, %s156, 8
        %s159 = smul.u32 64, %s158
        %s160 = smul.u32 %s159, 2
        %p161 = scmp.lt.s32.totalorder %s155, 12
        %s162 = scalar_select %p161, %s155, 12
        %s163 = smul.addr %s162, 2
        %s164 = smul.addr %s163, 4
        %s165 = scalar_lea.vmem %s0, %s164
        %p166 = pneg %p35
        %p167 = pneg %p32
        %p168 = pneg %p56
        %p169 = pneg %p53
        %p170 = pneg %p77
        %p171 = pneg %p74
        %p172 = pneg %p103
        %p173 = pneg %p100
        %s174 = sand.u32 %s90, 1
        %s175 = sand.u32 %s90, 1
        %s176 = smul.addr %s175, 32
        %s177 = scalar_lea.vmem [#allocation2], %s176
        %s178 = smul.u32 8, %s14
        %s179 = ssub.s32 13, %s178
        %p180 = scmp.lt.s32.totalorder %s179, 8
        %s181 = scalar_select %p180, %s179, 8
        %s182 = smul.u32 64, %s181
        %s183 = smul.u32 %s182, 2
        %p184 = scmp.lt.s32.totalorder %s178, 12
        %s185 = scalar_select %p184, %s178, 12
        %s186 = smul.addr %s185, 2
        %s187 = smul.addr %s186, 4
        %s188 = scalar_lea.vmem %s0, %s187
        %s189 = smul.u32 8, %s14
        %s190 = ssub.s32 13, %s189
        %p191 = scmp.lt.s32.totalorder %s190, 8
        %s192 = scalar_select %p191, %s190, 8
        %s193 = smul.u32 64, %s192
        %s194 = smul.u32 %s193, 2
        %s195 = smul.u32 8, %s14
        %s196 = ssub.s32 13, %s195
        %p197 = scmp.lt.s32.totalorder %s196, 8
        %s198 = scalar_select %p197, %s196, 8
        %s199 = smul.u32 64, %s198
        %v201 = vld [vmem:[%s188] sm:$0xff]
        %v202 = vld [vmem:[%s188 + $0x8] sm:$0xff]
        %v203 = vld [vmem:[%s188 + $0x10] sm:$0xff]
        %v204 = vld [vmem:[%s188 + $0x18] sm:$0xff]
        %v205 = vld [vmem:[%s188 + $0x20] sm:$0xff]
        %v206 = vld [vmem:[%s188 + $0x28] sm:$0xff]
        %v207 = vld [vmem:[%s188 + $0x30] sm:$0xff]
        %v208 = vld [vmem:[%s188 + $0x38] sm:$0xff]
        %v209 = vld [vmem:[%s1] sm:$0xf]
        %v210 = vld [vmem:[%s1 + $0x4] sm:$0xf]
        %v211 = vld [vmem:[%s1 + $0x8] sm:$0xf]
        %v212 = vld [vmem:[%s1 + $0xc] sm:$0xf]
        %v213 = vld [vmem:[%s1 + $0x10] sm:$0xf]
        %v214 = vld [vmem:[%s1 + $0x14] sm:$0xf]
        %v215 = vld [vmem:[%s1 + $0x18] sm:$0xf]
        %v216 = vld [vmem:[%s1 + $0x1c] sm:$0xf]
        %v217 = vld [vmem:[%s1 + $0x20] sm:$0xf]
        %v218 = vld [vmem:[%s1 + $0x24] sm:$0xf]
        %v219 = vld [vmem:[%s1 + $0x28] sm:$0xf]
        %v220 = vld [vmem:[%s1 + $0x2c] sm:$0xf]
        %v221 = vld [vmem:[%s1 + $0x30] sm:$0xf]
        %v222 = vld [vmem:[%s1 + $0x34] sm:$0xf]
        %v223 = vld [vmem:[%s1 + $0x38] sm:$0xf]
        %v224 = vld [vmem:[%s1 + $0x3c] sm:$0xf]
        %v225 = vld [vmem:[%s1 + $0x40] sm:$0xf]
        %v226 = vld [vmem:[%s1 + $0x44] sm:$0xf]
        %v227 = vld [vmem:[%s1 + $0x48] sm:$0xf]
        %v228 = vld [vmem:[%s1 + $0x4c] sm:$0xf]
        %v229 = vld [vmem:[%s1 + $0x50] sm:$0xf]
        %v230 = vld [vmem:[%s1 + $0x54] sm:$0xf]
        %v231 = vld [vmem:[%s1 + $0x58] sm:$0xf]
        %v232 = vld [vmem:[%s1 + $0x5c] sm:$0xf]
        %v233 = vld [vmem:[%s1 + $0x60] sm:$0xf]
        %v234 = vld [vmem:[%s1 + $0x64] sm:$0xf]
        %v235 = vld [vmem:[%s1 + $0x68] sm:$0xf]
        %v236 = vld [vmem:[%s1 + $0x6c] sm:$0xf]
        %v237 = vld [vmem:[%s1 + $0x70] sm:$0xf]
        %v238 = vld [vmem:[%s1 + $0x74] sm:$0xf]
        %v239 = vld [vmem:[%s1 + $0x78] sm:$0xf]
        %v240 = vld [vmem:[%s1 + $0x7c] sm:$0xf]
        %v249 = vunpack.c.l.b16 %v201
        %v250 = vunpack.c.h.b16 %v201
        %v251 = vunpack.c.l.b16 %v202
        %v252 = vunpack.c.h.b16 %v202
        %v253 = vunpack.c.l.b16 %v203
        %v254 = vunpack.c.h.b16 %v203
        %v255 = vunpack.c.l.b16 %v204
        %v256 = vunpack.c.h.b16 %v204
        %v257 = vunpack.c.l.b16 %v205
        %v258 = vunpack.c.h.b16 %v205
        %v259 = vunpack.c.l.b16 %v206
        %v260 = vunpack.c.h.b16 %v206
        %v261 = vunpack.c.l.b16 %v207
        %v262 = vunpack.c.h.b16 %v207
        %v263 = vunpack.c.l.b16 %v208
        %v264 = vunpack.c.h.b16 %v208
        %v265 = vpack.c.b16 %v251, %v249
        %v266 = vpack.c.b16 %v252, %v250
        %v267 = vpack.c.b16 %v255, %v253
        %v268 = vpack.c.b16 %v256, %v254
        %v269 = vpack.c.b16 %v259, %v257
        %v270 = vpack.c.b16 %v260, %v258
        %v271 = vpack.c.b16 %v263, %v261
        %v272 = vpack.c.b16 %v264, %v262
        %v313 = vunpack.c.l.b16 %v209
        %v314 = vunpack.c.l.b16 %v210
        %v315 = vunpack.c.l.b16 %v211
        %v316 = vunpack.c.l.b16 %v212
        %v317 = vunpack.c.l.b16 %v213
        %v318 = vunpack.c.l.b16 %v214
        %v319 = vunpack.c.l.b16 %v215
        %v320 = vunpack.c.l.b16 %v216
        %v321 = vunpack.c.l.b16 %v217
        %v322 = vunpack.c.l.b16 %v218
        %v323 = vunpack.c.l.b16 %v219
        %v324 = vunpack.c.l.b16 %v220
        %v325 = vunpack.c.l.b16 %v221
        %v326 = vunpack.c.l.b16 %v222
        %v327 = vunpack.c.l.b16 %v223
        %v328 = vunpack.c.l.b16 %v224
        %v329 = vunpack.c.l.b16 %v225
        %v330 = vunpack.c.l.b16 %v226
        %v331 = vunpack.c.l.b16 %v227
        %v332 = vunpack.c.l.b16 %v228
        %v333 = vunpack.c.l.b16 %v229
        %v334 = vunpack.c.l.b16 %v230
        %v335 = vunpack.c.l.b16 %v231
        %v336 = vunpack.c.l.b16 %v232
        %v337 = vunpack.c.l.b16 %v233
        %v338 = vunpack.c.l.b16 %v234
        %v339 = vunpack.c.l.b16 %v235
        %v340 = vunpack.c.l.b16 %v236
        %v341 = vunpack.c.l.b16 %v237
        %v342 = vunpack.c.l.b16 %v238
        %v343 = vunpack.c.l.b16 %v239
        %v344 = vunpack.c.l.b16 %v240
        %v345 = vpack.c.b16 %v314, %v313
        %v346 = vpack.c.b16 %v316, %v315
        %v347 = vpack.c.b16 %v318, %v317
        %v348 = vpack.c.b16 %v320, %v319
        %v349 = vpack.c.b16 %v322, %v321
        %v350 = vpack.c.b16 %v324, %v323
        %v351 = vpack.c.b16 %v326, %v325
        %v352 = vpack.c.b16 %v328, %v327
        %v353 = vpack.c.b16 %v330, %v329
        %v354 = vpack.c.b16 %v332, %v331
        %v355 = vpack.c.b16 %v334, %v333
        %v356 = vpack.c.b16 %v336, %v335
        %v357 = vpack.c.b16 %v338, %v337
        %v358 = vpack.c.b16 %v340, %v339
        %v359 = vpack.c.b16 %v342, %v341
        %v360 = vpack.c.b16 %v344, %v343
        %377 = vmatprep.subr.bf16.mxu0 0
        %378 = vmatpush1.bf16.msra.mxu0 %v352
        %379 = vmatprep.subr.bf16.mxu0 0
        %380 = vmatpush1.bf16.msra.mxu0 %v351
        %381 = vmatprep.subr.bf16.mxu0 0
        %382 = vmatpush1.bf16.msra.mxu0 %v350
        %383 = vmatprep.subr.bf16.mxu0 0
        %384 = vmatpush1.bf16.msra.mxu0 %v349
        %385 = vmatprep.subr.bf16.mxu0 0
        %386 = vmatpush1.bf16.msra.mxu0 %v348
        %387 = vmatprep.subr.bf16.mxu0 0
        %388 = vmatpush1.bf16.msra.mxu0 %v347
        %389 = vmatprep.subr.bf16.mxu0 0
        %390 = vmatpush1.bf16.msra.mxu0 %v346
        %391 = vmatprep.subr.bf16.mxu0 0
        %392 = vmatpush1.bf16.msra.mxu0 %v345
        %393 = vmatprep.subr.bf16.mxu0 0
        %394 = vmatpush2.bf16.msra.mxu0 %v360
        %395 = vmatprep.subr.bf16.mxu0 0
        %396 = vmatpush2.bf16.msra.mxu0 %v359
        %397 = vmatprep.subr.bf16.mxu0 0
        %398 = vmatpush2.bf16.msra.mxu0 %v358
        %399 = vmatprep.subr.bf16.mxu0 0
        %400 = vmatpush2.bf16.msra.mxu0 %v357
        %401 = vmatprep.subr.bf16.mxu0 0
        %402 = vmatpush2.bf16.msra.mxu0 %v356
        %403 = vmatprep.subr.bf16.mxu0 0
        %404 = vmatpush2.bf16.msra.mxu0 %v355
        %405 = vmatprep.subr.bf16.mxu0 0
        %406 = vmatpush2.bf16.msra.mxu0 %v354
        %407 = vmatprep.subr.bf16.mxu0 0
        %408 = vmatpush2.bf16.msra.mxu0 %v353
        %409 = vmatprep.mubr.bf16.mxu0 %v266
        %410 = vmatmul.mubr.bf16.gmra.mxu0 %v265
        %v411 = vpop.f32.mrf.mxu0
        %v412 = vadd.f32 0.0, %v411
        %v413 = vpop.f32.mrf.mxu0
        %v414 = vpop.f32.mrf.mxu0
        %v415 = vadd.f32 0.0, %v414
        %v416 = vpop.f32.mrf.mxu0
        %417 = vmatprep.mubr.bf16.mxu0 %v268
        %418 = vmatmul.mubr.bf16.gmra.mxu0 %v267
        %v419 = vpop.f32.mrf.mxu0
        %v420 = vadd.f32 0.0, %v419
        %v421 = vpop.f32.mrf.mxu0
        %v422 = vpop.f32.mrf.mxu0
        %v423 = vadd.f32 0.0, %v422
        %v424 = vpop.f32.mrf.mxu0
        %425 = vmatprep.mubr.bf16.mxu0 %v270
        %426 = vmatmul.mubr.bf16.gmra.mxu0 %v269
        %v427 = vpop.f32.mrf.mxu0
        %v428 = vadd.f32 0.0, %v427
        %v429 = vpop.f32.mrf.mxu0
        %v430 = vpop.f32.mrf.mxu0
        %v431 = vadd.f32 0.0, %v430
        %v432 = vpop.f32.mrf.mxu0
        %433 = vmatprep.mubr.bf16.mxu0 %v272
        %434 = vmatmul.mubr.bf16.gmra.mxu0 %v271
        %v435 = vpop.f32.mrf.mxu0
        %v436 = vadd.f32 0.0, %v435
        %v437 = vpop.f32.mrf.mxu0
        %v438 = vpop.f32.mrf.mxu0
        %v439 = vadd.f32 0.0, %v438
        %v440 = vpop.f32.mrf.mxu0
        %441 = vdwg.mxu0
        %s442 = scalar_lea.vmem %s1, 128
        %v443 = vld [vmem:[%s442] sm:$0xf]
        %v444 = vld [vmem:[%s442 + $0x4] sm:$0xf]
        %v445 = vld [vmem:[%s442 + $0x8] sm:$0xf]
        %v446 = vld [vmem:[%s442 + $0xc] sm:$0xf]
        %v447 = vld [vmem:[%s442 + $0x10] sm:$0xf]
        %v448 = vld [vmem:[%s442 + $0x14] sm:$0xf]
        %v449 = vld [vmem:[%s442 + $0x18] sm:$0xf]
        %v450 = vld [vmem:[%s442 + $0x1c] sm:$0xf]
        %v451 = vld [vmem:[%s442 + $0x20] sm:$0xf]
        %v452 = vld [vmem:[%s442 + $0x24] sm:$0xf]
        %v453 = vld [vmem:[%s442 + $0x28] sm:$0xf]
        %v454 = vld [vmem:[%s442 + $0x2c] sm:$0xf]
        %v455 = vld [vmem:[%s442 + $0x30] sm:$0xf]
        %v456 = vld [vmem:[%s442 + $0x34] sm:$0xf]
        %v457 = vld [vmem:[%s442 + $0x38] sm:$0xf]
        %v458 = vld [vmem:[%s442 + $0x3c] sm:$0xf]
        %v459 = vld [vmem:[%s442 + $0x40] sm:$0xf]
        %v460 = vld [vmem:[%s442 + $0x44] sm:$0xf]
        %v461 = vld [vmem:[%s442 + $0x48] sm:$0xf]
        %v462 = vld [vmem:[%s442 + $0x4c] sm:$0xf]
        %v463 = vld [vmem:[%s442 + $0x50] sm:$0xf]
        %v464 = vld [vmem:[%s442 + $0x54] sm:$0xf]
        %v465 = vld [vmem:[%s442 + $0x58] sm:$0xf]
        %v466 = vld [vmem:[%s442 + $0x5c] sm:$0xf]
        %v467 = vld [vmem:[%s442 + $0x60] sm:$0xf]
        %v468 = vld [vmem:[%s442 + $0x64] sm:$0xf]
        %v469 = vld [vmem:[%s442 + $0x68] sm:$0xf]
        %v470 = vld [vmem:[%s442 + $0x6c] sm:$0xf]
        %v471 = vld [vmem:[%s442 + $0x70] sm:$0xf]
        %v472 = vld [vmem:[%s442 + $0x74] sm:$0xf]
        %v473 = vld [vmem:[%s442 + $0x78] sm:$0xf]
        %v474 = vld [vmem:[%s442 + $0x7c] sm:$0xf]
        %v507 = vunpack.c.l.b16 %v443
        %v508 = vunpack.c.l.b16 %v444
        %v509 = vunpack.c.l.b16 %v445
        %v510 = vunpack.c.l.b16 %v446
        %v511 = vunpack.c.l.b16 %v447
        %v512 = vunpack.c.l.b16 %v448
        %v513 = vunpack.c.l.b16 %v449
        %v514 = vunpack.c.l.b16 %v450
        %v515 = vunpack.c.l.b16 %v451
        %v516 = vunpack.c.l.b16 %v452
        %v517 = vunpack.c.l.b16 %v453
        %v518 = vunpack.c.l.b16 %v454
        %v519 = vunpack.c.l.b16 %v455
        %v520 = vunpack.c.l.b16 %v456
        %v521 = vunpack.c.l.b16 %v457
        %v522 = vunpack.c.l.b16 %v458
        %v523 = vunpack.c.l.b16 %v459
        %v524 = vunpack.c.l.b16 %v460
        %v525 = vunpack.c.l.b16 %v461
        %v526 = vunpack.c.l.b16 %v462
        %v527 = vunpack.c.l.b16 %v463
        %v528 = vunpack.c.l.b16 %v464
        %v529 = vunpack.c.l.b16 %v465
        %v530 = vunpack.c.l.b16 %v466
        %v531 = vunpack.c.l.b16 %v467
        %v532 = vunpack.c.l.b16 %v468
        %v533 = vunpack.c.l.b16 %v469
        %v534 = vunpack.c.l.b16 %v470
        %v535 = vunpack.c.l.b16 %v471
        %v536 = vunpack.c.l.b16 %v472
        %v537 = vunpack.c.l.b16 %v473
        %v538 = vunpack.c.l.b16 %v474
        %v539 = vpack.c.b16 %v508, %v507
        %v540 = vpack.c.b16 %v510, %v509
        %v541 = vpack.c.b16 %v512, %v511
        %v542 = vpack.c.b16 %v514, %v513
        %v543 = vpack.c.b16 %v516, %v515
        %v544 = vpack.c.b16 %v518, %v517
        %v545 = vpack.c.b16 %v520, %v519
        %v546 = vpack.c.b16 %v522, %v521
        %v547 = vpack.c.b16 %v524, %v523
        %v548 = vpack.c.b16 %v526, %v525
        %v549 = vpack.c.b16 %v528, %v527
        %v550 = vpack.c.b16 %v530, %v529
        %v551 = vpack.c.b16 %v532, %v531
        %v552 = vpack.c.b16 %v534, %v533
        %v553 = vpack.c.b16 %v536, %v535
        %v554 = vpack.c.b16 %v538, %v537
        %571 = vmatprep.subr.bf16.mxu0 0
        %572 = vmatpush1.bf16.msra.mxu0 %v546
        %573 = vmatprep.subr.bf16.mxu0 0
        %574 = vmatpush1.bf16.msra.mxu0 %v545
        %575 = vmatprep.subr.bf16.mxu0 0
        %576 = vmatpush1.bf16.msra.mxu0 %v544
        %577 = vmatprep.subr.bf16.mxu0 0
        %578 = vmatpush1.bf16.msra.mxu0 %v543
        %579 = vmatprep.subr.bf16.mxu0 0
        %580 = vmatpush1.bf16.msra.mxu0 %v542
        %581 = vmatprep.subr.bf16.mxu0 0
        %582 = vmatpush1.bf16.msra.mxu0 %v541
        %583 = vmatprep.subr.bf16.mxu0 0
        %584 = vmatpush1.bf16.msra.mxu0 %v540
        %585 = vmatprep.subr.bf16.mxu0 0
        %586 = vmatpush1.bf16.msra.mxu0 %v539
        %587 = vmatprep.subr.bf16.mxu0 0
        %588 = vmatpush2.bf16.msra.mxu0 %v554
        %589 = vmatprep.subr.bf16.mxu0 0
        %590 = vmatpush2.bf16.msra.mxu0 %v553
        %591 = vmatprep.subr.bf16.mxu0 0
        %592 = vmatpush2.bf16.msra.mxu0 %v552
        %593 = vmatprep.subr.bf16.mxu0 0
        %594 = vmatpush2.bf16.msra.mxu0 %v551
        %595 = vmatprep.subr.bf16.mxu0 0
        %596 = vmatpush2.bf16.msra.mxu0 %v550
        %597 = vmatprep.subr.bf16.mxu0 0
        %598 = vmatpush2.bf16.msra.mxu0 %v549
        %599 = vmatprep.subr.bf16.mxu0 0
        %600 = vmatpush2.bf16.msra.mxu0 %v548
        %601 = vmatprep.subr.bf16.mxu0 0
        %602 = vmatpush2.bf16.msra.mxu0 %v547
        %603 = vmatprep.mubr.bf16.mxu0 %v266
        %604 = vmatmul.mubr.bf16.gmra.mxu0 %v265
        %v605 = vpop.f32.mrf.mxu0
        %v606 = vadd.f32 0.0, %v605
        %v607 = vpop.f32.mrf.mxu0
        %v608 = vpop.f32.mrf.mxu0
        %v609 = vadd.f32 0.0, %v608
        %v610 = vpop.f32.mrf.mxu0
        %611 = vmatprep.mubr.bf16.mxu0 %v268
        %612 = vmatmul.mubr.bf16.gmra.mxu0 %v267
        %v613 = vpop.f32.mrf.mxu0
        %v614 = vadd.f32 0.0, %v613
        %v615 = vpop.f32.mrf.mxu0
        %v616 = vpop.f32.mrf.mxu0
        %v617 = vadd.f32 0.0, %v616
        %v618 = vpop.f32.mrf.mxu0
        %619 = vmatprep.mubr.bf16.mxu0 %v270
        %620 = vmatmul.mubr.bf16.gmra.mxu0 %v269
        %v621 = vpop.f32.mrf.mxu0
        %v622 = vadd.f32 0.0, %v621
        %v623 = vpop.f32.mrf.mxu0
        %v624 = vpop.f32.mrf.mxu0
        %v625 = vadd.f32 0.0, %v624
        %v626 = vpop.f32.mrf.mxu0
        %627 = vmatprep.mubr.bf16.mxu0 %v272
        %628 = vmatmul.mubr.bf16.gmra.mxu0 %v271
        %v629 = vpop.f32.mrf.mxu0
        %v630 = vadd.f32 0.0, %v629
        %v631 = vpop.f32.mrf.mxu0
        %v632 = vpop.f32.mrf.mxu0
        %v633 = vadd.f32 0.0, %v632
        %v634 = vpop.f32.mrf.mxu0
        %635 = vdwg.mxu0
        %v636 = vmax.f32 %v412, %v606
        %v637 = vmax.f32 %v415, %v609
        %v638 = vmax.f32 %v420, %v614
        %v639 = vmax.f32 %v423, %v617
        %v640 = vmax.f32 %v428, %v622
        %v641 = vmax.f32 %v431, %v625
        %v642 = vmax.f32 %v436, %v630
        %v643 = vmax.f32 %v439, %v633
        %s644 = scalar_lea.vmem %s1, 256
        %v645 = vld [vmem:[%s644] sm:$0xf]
        %v646 = vld [vmem:[%s644 + $0x4] sm:$0xf]
        %v647 = vld [vmem:[%s644 + $0x8] sm:$0xf]
        %v648 = vld [vmem:[%s644 + $0xc] sm:$0xf]
        %v649 = vld [vmem:[%s644 + $0x10] sm:$0xf]
        %v650 = vld [vmem:[%s644 + $0x14] sm:$0xf]
        %v651 = vld [vmem:[%s644 + $0x18] sm:$0xf]
        %v652 = vld [vmem:[%s644 + $0x1c] sm:$0xf]
        %v653 = vld [vmem:[%s644 + $0x20] sm:$0xf]
        %v654 = vld [vmem:[%s644 + $0x24] sm:$0xf]
        %v655 = vld [vmem:[%s644 + $0x28] sm:$0xf]
        %v656 = vld [vmem:[%s644 + $0x2c] sm:$0xf]
        %v657 = vld [vmem:[%s644 + $0x30] sm:$0xf]
        %v658 = vld [vmem:[%s644 + $0x34] sm:$0xf]
        %v659 = vld [vmem:[%s644 + $0x38] sm:$0xf]
        %v660 = vld [vmem:[%s644 + $0x3c] sm:$0xf]
        %v661 = vld [vmem:[%s644 + $0x40] sm:$0xf]
        %v662 = vld [vmem:[%s644 + $0x44] sm:$0xf]
        %v663 = vld [vmem:[%s644 + $0x48] sm:$0xf]
        %v664 = vld [vmem:[%s644 + $0x4c] sm:$0xf]
        %v665 = vld [vmem:[%s644 + $0x50] sm:$0xf]
        %v666 = vld [vmem:[%s644 + $0x54] sm:$0xf]
        %v667 = vld [vmem:[%s644 + $0x58] sm:$0xf]
        %v668 = vld [vmem:[%s644 + $0x5c] sm:$0xf]
        %v669 = vld [vmem:[%s644 + $0x60] sm:$0xf]
        %v670 = vld [vmem:[%s644 + $0x64] sm:$0xf]
        %v671 = vld [vmem:[%s644 + $0x68] sm:$0xf]
        %v672 = vld [vmem:[%s644 + $0x6c] sm:$0xf]
        %v673 = vld [vmem:[%s644 + $0x70] sm:$0xf]
        %v674 = vld [vmem:[%s644 + $0x74] sm:$0xf]
        %v675 = vld [vmem:[%s644 + $0x78] sm:$0xf]
        %v676 = vld [vmem:[%s644 + $0x7c] sm:$0xf]
        %v709 = vunpack.c.l.b16 %v645
        %v710 = vunpack.c.l.b16 %v646
        %v711 = vunpack.c.l.b16 %v647
        %v712 = vunpack.c.l.b16 %v648
        %v713 = vunpack.c.l.b16 %v649
        %v714 = vunpack.c.l.b16 %v650
        %v715 = vunpack.c.l.b16 %v651
        %v716 = vunpack.c.l.b16 %v652
        %v717 = vunpack.c.l.b16 %v653
        %v718 = vunpack.c.l.b16 %v654
        %v719 = vunpack.c.l.b16 %v655
        %v720 = vunpack.c.l.b16 %v656
        %v721 = vunpack.c.l.b16 %v657
        %v722 = vunpack.c.l.b16 %v658
        %v723 = vunpack.c.l.b16 %v659
        %v724 = vunpack.c.l.b16 %v660
        %v725 = vunpack.c.l.b16 %v661
        %v726 = vunpack.c.l.b16 %v662
        %v727 = vunpack.c.l.b16 %v663
        %v728 = vunpack.c.l.b16 %v664
        %v729 = vunpack.c.l.b16 %v665
        %v730 = vunpack.c.l.b16 %v666
        %v731 = vunpack.c.l.b16 %v667
        %v732 = vunpack.c.l.b16 %v668
        %v733 = vunpack.c.l.b16 %v669
        %v734 = vunpack.c.l.b16 %v670
        %v735 = vunpack.c.l.b16 %v671
        %v736 = vunpack.c.l.b16 %v672
        %v737 = vunpack.c.l.b16 %v673
        %v738 = vunpack.c.l.b16 %v674
        %v739 = vunpack.c.l.b16 %v675
        %v740 = vunpack.c.l.b16 %v676
        %v741 = vpack.c.b16 %v710, %v709
        %v742 = vpack.c.b16 %v712, %v711
        %v743 = vpack.c.b16 %v714, %v713
        %v744 = vpack.c.b16 %v716, %v715
        %v745 = vpack.c.b16 %v718, %v717
        %v746 = vpack.c.b16 %v720, %v719
        %v747 = vpack.c.b16 %v722, %v721
        %v748 = vpack.c.b16 %v724, %v723
        %v749 = vpack.c.b16 %v726, %v725
        %v750 = vpack.c.b16 %v728, %v727
        %v751 = vpack.c.b16 %v730, %v729
        %v752 = vpack.c.b16 %v732, %v731
        %v753 = vpack.c.b16 %v734, %v733
        %v754 = vpack.c.b16 %v736, %v735
        %v755 = vpack.c.b16 %v738, %v737
        %v756 = vpack.c.b16 %v740, %v739
        %773 = vmatprep.subr.bf16.mxu0 0
        %774 = vmatpush1.bf16.msra.mxu0 %v748
        %775 = vmatprep.subr.bf16.mxu0 0
        %776 = vmatpush1.bf16.msra.mxu0 %v747
        %777 = vmatprep.subr.bf16.mxu0 0
        %778 = vmatpush1.bf16.msra.mxu0 %v746
        %779 = vmatprep.subr.bf16.mxu0 0
        %780 = vmatpush1.bf16.msra.mxu0 %v745
        %781 = vmatprep.subr.bf16.mxu0 0
        %782 = vmatpush1.bf16.msra.mxu0 %v744
        %783 = vmatprep.subr.bf16.mxu0 0
        %784 = vmatpush1.bf16.msra.mxu0 %v743
        %785 = vmatprep.subr.bf16.mxu0 0
        %786 = vmatpush1.bf16.msra.mxu0 %v742
        %787 = vmatprep.subr.bf16.mxu0 0
        %788 = vmatpush1.bf16.msra.mxu0 %v741
        %789 = vmatprep.subr.bf16.mxu0 0
        %790 = vmatpush2.bf16.msra.mxu0 %v756
        %791 = vmatprep.subr.bf16.mxu0 0
        %792 = vmatpush2.bf16.msra.mxu0 %v755
        %793 = vmatprep.subr.bf16.mxu0 0
        %794 = vmatpush2.bf16.msra.mxu0 %v754
        %795 = vmatprep.subr.bf16.mxu0 0
        %796 = vmatpush2.bf16.msra.mxu0 %v753
        %797 = vmatprep.subr.bf16.mxu0 0
        %798 = vmatpush2.bf16.msra.mxu0 %v752
        %799 = vmatprep.subr.bf16.mxu0 0
        %800 = vmatpush2.bf16.msra.mxu0 %v751
        %801 = vmatprep.subr.bf16.mxu0 0
        %802 = vmatpush2.bf16.msra.mxu0 %v750
        %803 = vmatprep.subr.bf16.mxu0 0
        %804 = vmatpush2.bf16.msra.mxu0 %v749
        %805 = vmatprep.mubr.bf16.mxu0 %v266
        %806 = vmatmul.mubr.bf16.gmra.mxu0 %v265
        %v807 = vpop.f32.mrf.mxu0
        %v808 = vadd.f32 0.0, %v807
        %v809 = vpop.f32.mrf.mxu0
        %v810 = vpop.f32.mrf.mxu0
        %v811 = vadd.f32 0.0, %v810
        %v812 = vpop.f32.mrf.mxu0
        %813 = vmatprep.mubr.bf16.mxu0 %v268
        %814 = vmatmul.mubr.bf16.gmra.mxu0 %v267
        %v815 = vpop.f32.mrf.mxu0
        %v816 = vadd.f32 0.0, %v815
        %v817 = vpop.f32.mrf.mxu0
        %v818 = vpop.f32.mrf.mxu0
        %v819 = vadd.f32 0.0, %v818
        %v820 = vpop.f32.mrf.mxu0
        %821 = vmatprep.mubr.bf16.mxu0 %v270
        %822 = vmatmul.mubr.bf16.gmra.mxu0 %v269
        %v823 = vpop.f32.mrf.mxu0
        %v824 = vadd.f32 0.0, %v823
        %v825 = vpop.f32.mrf.mxu0
        %v826 = vpop.f32.mrf.mxu0
        %v827 = vadd.f32 0.0, %v826
        %v828 = vpop.f32.mrf.mxu0
        %829 = vmatprep.mubr.bf16.mxu0 %v272
        %830 = vmatmul.mubr.bf16.gmra.mxu0 %v271
        %v831 = vpop.f32.mrf.mxu0
        %v832 = vadd.f32 0.0, %v831
        %v833 = vpop.f32.mrf.mxu0
        %v834 = vpop.f32.mrf.mxu0
        %v835 = vadd.f32 0.0, %v834
        %v836 = vpop.f32.mrf.mxu0
        %837 = vdwg.mxu0
        %v838 = vmax.f32 %v636, %v808
        %v839 = vmax.f32 %v637, %v811
        %v840 = vmax.f32 %v638, %v816
        %v841 = vmax.f32 %v639, %v819
        %v842 = vmax.f32 %v640, %v824
        %v843 = vmax.f32 %v641, %v827
        %v844 = vmax.f32 %v642, %v832
        %v845 = vmax.f32 %v643, %v835
        %s846 = scalar_lea.vmem %s1, 384
        %v847 = vld [vmem:[%s846] sm:$0xf]
        %v848 = vld [vmem:[%s846 + $0x4] sm:$0xf]
        %v849 = vld [vmem:[%s846 + $0x8] sm:$0xf]
        %v850 = vld [vmem:[%s846 + $0xc] sm:$0xf]
        %v851 = vld [vmem:[%s846 + $0x10] sm:$0xf]
        %v852 = vld [vmem:[%s846 + $0x14] sm:$0xf]
        %v853 = vld [vmem:[%s846 + $0x18] sm:$0xf]
        %v854 = vld [vmem:[%s846 + $0x1c] sm:$0xf]
        %v855 = vld [vmem:[%s846 + $0x20] sm:$0xf]
        %v856 = vld [vmem:[%s846 + $0x24] sm:$0xf]
        %v857 = vld [vmem:[%s846 + $0x28] sm:$0xf]
        %v858 = vld [vmem:[%s846 + $0x2c] sm:$0xf]
        %v859 = vld [vmem:[%s846 + $0x30] sm:$0xf]
        %v860 = vld [vmem:[%s846 + $0x34] sm:$0xf]
        %v861 = vld [vmem:[%s846 + $0x38] sm:$0xf]
        %v862 = vld [vmem:[%s846 + $0x3c] sm:$0xf]
        %v863 = vld [vmem:[%s846 + $0x40] sm:$0xf]
        %v864 = vld [vmem:[%s846 + $0x44] sm:$0xf]
        %v865 = vld [vmem:[%s846 + $0x48] sm:$0xf]
        %v866 = vld [vmem:[%s846 + $0x4c] sm:$0xf]
        %v867 = vld [vmem:[%s846 + $0x50] sm:$0xf]
        %v868 = vld [vmem:[%s846 + $0x54] sm:$0xf]
        %v869 = vld [vmem:[%s846 + $0x58] sm:$0xf]
        %v870 = vld [vmem:[%s846 + $0x5c] sm:$0xf]
        %v871 = vld [vmem:[%s846 + $0x60] sm:$0xf]
        %v872 = vld [vmem:[%s846 + $0x64] sm:$0xf]
        %v873 = vld [vmem:[%s846 + $0x68] sm:$0xf]
        %v874 = vld [vmem:[%s846 + $0x6c] sm:$0xf]
        %v875 = vld [vmem:[%s846 + $0x70] sm:$0xf]
        %v876 = vld [vmem:[%s846 + $0x74] sm:$0xf]
        %v877 = vld [vmem:[%s846 + $0x78] sm:$0xf]
        %v878 = vld [vmem:[%s846 + $0x7c] sm:$0xf]
        %v911 = vunpack.c.l.b16 %v847
        %v912 = vunpack.c.l.b16 %v848
        %v913 = vunpack.c.l.b16 %v849
        %v914 = vunpack.c.l.b16 %v850
        %v915 = vunpack.c.l.b16 %v851
        %v916 = vunpack.c.l.b16 %v852
        %v917 = vunpack.c.l.b16 %v853
        %v918 = vunpack.c.l.b16 %v854
        %v919 = vunpack.c.l.b16 %v855
        %v920 = vunpack.c.l.b16 %v856
        %v921 = vunpack.c.l.b16 %v857
        %v922 = vunpack.c.l.b16 %v858
        %v923 = vunpack.c.l.b16 %v859
        %v924 = vunpack.c.l.b16 %v860
        %v925 = vunpack.c.l.b16 %v861
        %v926 = vunpack.c.l.b16 %v862
        %v927 = vunpack.c.l.b16 %v863
        %v928 = vunpack.c.l.b16 %v864
        %v929 = vunpack.c.l.b16 %v865
        %v930 = vunpack.c.l.b16 %v866
        %v931 = vunpack.c.l.b16 %v867
        %v932 = vunpack.c.l.b16 %v868
        %v933 = vunpack.c.l.b16 %v869
        %v934 = vunpack.c.l.b16 %v870
        %v935 = vunpack.c.l.b16 %v871
        %v936 = vunpack.c.l.b16 %v872
        %v937 = vunpack.c.l.b16 %v873
        %v938 = vunpack.c.l.b16 %v874
        %v939 = vunpack.c.l.b16 %v875
        %v940 = vunpack.c.l.b16 %v876
        %v941 = vunpack.c.l.b16 %v877
        %v942 = vunpack.c.l.b16 %v878
        %v943 = vpack.c.b16 %v912, %v911
        %v944 = vpack.c.b16 %v914, %v913
        %v945 = vpack.c.b16 %v916, %v915
        %v946 = vpack.c.b16 %v918, %v917
        %v947 = vpack.c.b16 %v920, %v919
        %v948 = vpack.c.b16 %v922, %v921
        %v949 = vpack.c.b16 %v924, %v923
        %v950 = vpack.c.b16 %v926, %v925
        %v951 = vpack.c.b16 %v928, %v927
        %v952 = vpack.c.b16 %v930, %v929
        %v953 = vpack.c.b16 %v932, %v931
        %v954 = vpack.c.b16 %v934, %v933
        %v955 = vpack.c.b16 %v936, %v935
        %v956 = vpack.c.b16 %v938, %v937
        %v957 = vpack.c.b16 %v940, %v939
        %v958 = vpack.c.b16 %v942, %v941
        %975 = vmatprep.subr.bf16.mxu0 0
        %976 = vmatpush1.bf16.msra.mxu0 %v950
        %977 = vmatprep.subr.bf16.mxu0 0
        %978 = vmatpush1.bf16.msra.mxu0 %v949
        %979 = vmatprep.subr.bf16.mxu0 0
        %980 = vmatpush1.bf16.msra.mxu0 %v948
        %981 = vmatprep.subr.bf16.mxu0 0
        %982 = vmatpush1.bf16.msra.mxu0 %v947
        %983 = vmatprep.subr.bf16.mxu0 0
        %984 = vmatpush1.bf16.msra.mxu0 %v946
        %985 = vmatprep.subr.bf16.mxu0 0
        %986 = vmatpush1.bf16.msra.mxu0 %v945
        %987 = vmatprep.subr.bf16.mxu0 0
        %988 = vmatpush1.bf16.msra.mxu0 %v944
        %989 = vmatprep.subr.bf16.mxu0 0
        %990 = vmatpush1.bf16.msra.mxu0 %v943
        %991 = vmatprep.subr.bf16.mxu0 0
        %992 = vmatpush2.bf16.msra.mxu0 %v958
        %993 = vmatprep.subr.bf16.mxu0 0
        %994 = vmatpush2.bf16.msra.mxu0 %v957
        %995 = vmatprep.subr.bf16.mxu0 0
        %996 = vmatpush2.bf16.msra.mxu0 %v956
        %997 = vmatprep.subr.bf16.mxu0 0
        %998 = vmatpush2.bf16.msra.mxu0 %v955
        %999 = vmatprep.subr.bf16.mxu0 0
        %1000 = vmatpush2.bf16.msra.mxu0 %v954
        %1001 = vmatprep.subr.bf16.mxu0 0
        %1002 = vmatpush2.bf16.msra.mxu0 %v953
        %1003 = vmatprep.subr.bf16.mxu0 0
        %1004 = vmatpush2.bf16.msra.mxu0 %v952
        %1005 = vmatprep.subr.bf16.mxu0 0
        %1006 = vmatpush2.bf16.msra.mxu0 %v951
        %1007 = vmatprep.mubr.bf16.mxu0 %v266
        %1008 = vmatmul.mubr.bf16.gmra.mxu0 %v265
        %v1009 = vpop.f32.mrf.mxu0
        %v1010 = vadd.f32 0.0, %v1009
        %v1011 = vpop.f32.mrf.mxu0
        %v1012 = vpop.f32.mrf.mxu0
        %v1013 = vadd.f32 0.0, %v1012
        %v1014 = vpop.f32.mrf.mxu0
        %1015 = vmatprep.mubr.bf16.mxu0 %v268
        %1016 = vmatmul.mubr.bf16.gmra.mxu0 %v267
        %v1017 = vpop.f32.mrf.mxu0
        %v1018 = vadd.f32 0.0, %v1017
        %v1019 = vpop.f32.mrf.mxu0
        %v1020 = vpop.f32.mrf.mxu0
        %v1021 = vadd.f32 0.0, %v1020
        %v1022 = vpop.f32.mrf.mxu0
        %1023 = vmatprep.mubr.bf16.mxu0 %v270
        %1024 = vmatmul.mubr.bf16.gmra.mxu0 %v269
        %v1025 = vpop.f32.mrf.mxu0
        %v1026 = vadd.f32 0.0, %v1025
        %v1027 = vpop.f32.mrf.mxu0
        %v1028 = vpop.f32.mrf.mxu0
        %v1029 = vadd.f32 0.0, %v1028
        %v1030 = vpop.f32.mrf.mxu0
        %1031 = vmatprep.mubr.bf16.mxu0 %v272
        %1032 = vmatmul.mubr.bf16.gmra.mxu0 %v271
        %v1033 = vpop.f32.mrf.mxu0
        %v1034 = vadd.f32 0.0, %v1033
        %v1035 = vpop.f32.mrf.mxu0
        %v1036 = vpop.f32.mrf.mxu0
        %v1037 = vadd.f32 0.0, %v1036
        %v1038 = vpop.f32.mrf.mxu0
        %1039 = vdwg.mxu0
        %v1040 = vmax.f32 %v838, %v1010
        %v1041 = vmax.f32 %v839, %v1013
        %v1042 = vmax.f32 %v840, %v1018
        %v1043 = vmax.f32 %v841, %v1021
        %v1044 = vmax.f32 %v842, %v1026
        %v1045 = vmax.f32 %v843, %v1029
        %v1046 = vmax.f32 %v844, %v1034
        %v1047 = vmax.f32 %v845, %v1037
        %v1048 = vld [vmem:[%s2] sm:$0x1]
        %v1050 = vlaneseq
        %v1051 = vshrl.u32 %v1050, 7
        %v1052 = vsub.s32 0, %v1051
        %v1053 = vrot.slane %v1048, %v1052
        %v1055 = vadd.f32 %v1040, %v1053
        %v1056 = vadd.f32 %v1041, %v1053
        %v1057 = vadd.f32 %v1042, %v1053
        %v1058 = vadd.f32 %v1043, %v1053
        %v1059 = vadd.f32 %v1044, %v1053
        %v1060 = vadd.f32 %v1045, %v1053
        %v1061 = vadd.f32 %v1046, %v1053
        %v1062 = vadd.f32 %v1047, %v1053
        %v1063 = vmax.f32 %v1055, 0.0
        %v1064 = vmax.f32 %v1056, 0.0
        %v1065 = vmax.f32 %v1057, 0.0
        %v1066 = vmax.f32 %v1058, 0.0
        %v1067 = vmax.f32 %v1059, 0.0
        %v1068 = vmax.f32 %v1060, 0.0
        %v1069 = vmax.f32 %v1061, 0.0
        %v1070 = vmax.f32 %v1062, 0.0
        %v1071 = vpack.c.bf16 %v1064, %v1063
        %v1072 = vpack.c.bf16 %v1066, %v1065
        %v1073 = vpack.c.bf16 %v1068, %v1067
        %v1074 = vpack.c.bf16 %v1070, %v1069
        %v1079 = vunpack.c.l.b16 %v1071
        %v1080 = vunpack.c.h.b16 %v1071
        %v1081 = vunpack.c.l.b16 %v1072
        %v1082 = vunpack.c.h.b16 %v1072
        %v1083 = vunpack.c.l.b16 %v1073
        %v1084 = vunpack.c.h.b16 %v1073
        %v1085 = vunpack.c.l.b16 %v1074
        %v1086 = vunpack.c.h.b16 %v1074
        %v1087 = vpack.c.b16 %v1079, %v1079
        %v1088 = vpack.c.b16 %v1080, %v1080
        %v1089 = vpack.c.b16 %v1081, %v1081
        %v1090 = vpack.c.b16 %v1082, %v1082
        %v1091 = vpack.c.b16 %v1083, %v1083
        %v1092 = vpack.c.b16 %v1084, %v1084
        %v1093 = vpack.c.b16 %v1085, %v1085
        %v1094 = vpack.c.b16 %v1086, %v1086
        %vm1103 = vcmask 257024
        %1104 = vst.msk [vmem:[%s177] sm:$0xf] %vm1103, %v1087
        %1105 = vst.msk [vmem:[%s177 + $0x4] sm:$0xf] %vm1103, %v1088
        %1106 = vst.msk [vmem:[%s177 + $0x8] sm:$0xf] %vm1103, %v1089
        %1107 = vst.msk [vmem:[%s177 + $0xc] sm:$0xf] %vm1103, %v1090
        %1108 = vst.msk [vmem:[%s177 + $0x10] sm:$0xf] %vm1103, %v1091
        %1109 = vst.msk [vmem:[%s177 + $0x14] sm:$0xf] %vm1103, %v1092
        %1110 = vst.msk [vmem:[%s177 + $0x18] sm:$0xf] %vm1103, %v1093
        %1111 = vst.msk [vmem:[%s177 + $0x1c] sm:$0xf] %vm1103, %v1094
        %s1112 = sand.u32 %s90, 1
        %s1113 = sand.u32 %s90, 1
        %s1114 = smul.addr %s1113, 32
        %s1115 = scalar_lea.vmem [#allocation2], %s1114
        // Predicated region
        $region33: #{simple_cnn_forward.4} parent=31 // pred_check
          %p1116 = pneg %p100
        $region34: #{simple_cnn_forward.4} parent=31 // pred_check_branch
          %1118 = sbr.rel (%p1116) target = $region36
        $region35: #{simple_cnn_forward.4} parent=31 // pred_region
          %s1119 = smul.u32 8, %s14
          %s1120 = ssub.s32 13, %s1119
          %p1121 = scmp.lt.s32.totalorder %s1120, 8
          %s1122 = scalar_select %p1121, %s1120, 8
          %s1123 = smul.u32 64, %s1122
          %p1124 = scmp.ne.s32.totalorder 0, %s1123
          %s1125 = smul.addr %s1119, 4
          %s1126 = scalar_lea.vmem %s3, %s1125
          // Predicated region
          $region37: #{simple_cnn_forward.4} parent=35 // pred_check
            %p1127 = pneg %p1124
          $region38: #{simple_cnn_forward.4} parent=35 // pred_check_branch
            %1129 = sbr.rel (%p1127) target = $region40
          $region39: #{simple_cnn_forward.4} parent=35 // pred_region
            // Predicated region
            $region41: #{simple_cnn_forward.4} parent=39 // pred_check
              _
            $region42: #{simple_cnn_forward.4} parent=39 // pred_check_branch
              %1131 = sbr.rel target = $region44
            $region43: #{simple_cnn_forward.4} parent=39 // pred_region
              // Predicated region
              $region63: #{simple_cnn_forward.4} parent=43 // pred_check
                _
              $region64: #{simple_cnn_forward.4} parent=43 // pred_check_branch
                %1195 = sbr.rel (0) target = $region66
              $region65: #{simple_cnn_forward.4} parent=43 // pred_region
                %s1197 = ssub.s32 16, 1
                %s1198 = sshrl.u32 %s1122, 3
                // While loop
                $region67: #{simple_cnn_forward.4} parent=65 // loop_pre_header
                  _
                $region68: #{simple_cnn_forward.4} parent=65 // loop_header
                  %s1200 = sphi 0, %s1202
                  %p1201 = scmp.ge.s32.totalorder %s1200, %s1198
                  %s1205 = sphi 0, %s1226
                  %s1206 = sphi %s1115, %s1229
                  %s1207 = sphi %s1126, %s1230
                $region69: #{simple_cnn_forward.4} parent=65 // loop_header_branch
                  %1204 = sbr.rel (%p1201) target = $region73
                $region70: #{simple_cnn_forward.4} parent=65 // loop_body
                  %v1208 = vld [vmem:[%s1206] sm:%s1197]
                  %1209 = vst [vmem:[%s1207] sm:%s1197] %v1208
                  %v1210 = vld [vmem:[%s1206 + $0x4] sm:%s1197]
                  %1211 = vst [vmem:[%s1207 + $0x4] sm:%s1197] %v1210
                  %v1212 = vld [vmem:[%s1206 + $0x8] sm:%s1197]
                  %1213 = vst [vmem:[%s1207 + $0x8] sm:%s1197] %v1212
                  %v1214 = vld [vmem:[%s1206 + $0xc] sm:%s1197]
                  %1215 = vst [vmem:[%s1207 + $0xc] sm:%s1197] %v1214
                  %v1216 = vld [vmem:[%s1206 + $0x10] sm:%s1197]
                  %1217 = vst [vmem:[%s1207 + $0x10] sm:%s1197] %v1216
                  %v1218 = vld [vmem:[%s1206 + $0x14] sm:%s1197]
                  %1219 = vst [vmem:[%s1207 + $0x14] sm:%s1197] %v1218
                  %v1220 = vld [vmem:[%s1206 + $0x18] sm:%s1197]
                  %1221 = vst [vmem:[%s1207 + $0x18] sm:%s1197] %v1220
                  %v1222 = vld [vmem:[%s1206 + $0x1c] sm:%s1197]
                  %1223 = vst [vmem:[%s1207 + $0x1c] sm:%s1197] %v1222
                  %s1224 = sadd.s32 1, %s1205
                  %p1225 = scmp.ge.s32.totalorder %s1224, %s1198
                  %s1226 = scalar_select %p1225, 0, %s1224
                  %s1227 = smul.u32 %s1226, 32
                  %s1228 = smul.u32 %s1226, 32
                  %s1229 = scalar_lea.vmem %s1115, %s1227 [#allocation2]
                  %s1230 = scalar_lea.vmem %s1126, %s1228
                $region71: #{simple_cnn_forward.4} parent=65 // loop_footer
                  %s1202 = sadd.s32 %s1200, 1
                $region72: #{simple_cnn_forward.4} parent=65 // loop_footer_branch
                  %1199 = sbr.rel target = $region68
                $region73: #{simple_cnn_forward.4} parent=65 // loop_exit
                  _
                %s1231 = sshrl.u32 %s1122, 3
                %s1232 = sand.u32 %s1122, 7
                %s1233 = smul.u32 %s1231, 8
                %s1234 = smul.u32 4, %s1233
                %s1235 = scalar_lea.vmem %s1115, %s1234 [#allocation2]
                %s1236 = smul.u32 4, %s1233
                %s1237 = scalar_lea.vmem %s1126, %s1236
                // While loop
                $region74: #{simple_cnn_forward.4} parent=65 // loop_pre_header
                  _
                $region75: #{simple_cnn_forward.4} parent=65 // loop_header
                  %s1239 = sphi 0, %s1241
                  %p1240 = scmp.ge.s32.totalorder %s1239, %s1232
                  %s1244 = sphi 0, %s1251
                  %s1245 = sphi %s1235, %s1254
                  %s1246 = sphi %s1237, %s1255
                $region76: #{simple_cnn_forward.4} parent=65 // loop_header_branch
                  %1243 = sbr.rel (%p1240) target = $region80
                $region77: #{simple_cnn_forward.4} parent=65 // loop_body
                  %v1247 = vld [vmem:[%s1245] sm:%s1197]
                  %1248 = vst [vmem:[%s1246] sm:%s1197] %v1247
                  %s1249 = sadd.s32 1, %s1244
                  %p1250 = scmp.ge.s32.totalorder %s1249, %s1232
                  %s1251 = scalar_select %p1250, 0, %s1249
                  %s1252 = smul.u32 %s1251, 4
                  %s1253 = smul.u32 %s1251, 4
                  %s1254 = scalar_lea.vmem %s1235, %s1252 [#allocation2]
                  %s1255 = scalar_lea.vmem %s1237, %s1253
                $region78: #{simple_cnn_forward.4} parent=65 // loop_footer
                  %s1241 = sadd.s32 %s1239, 1
                $region79: #{simple_cnn_forward.4} parent=65 // loop_footer_branch
                  %1238 = sbr.rel target = $region75
                $region80: #{simple_cnn_forward.4} parent=65 // loop_exit
                  _
              $region66: #{simple_cnn_forward.4} parent=43 // pred_fallthru
                _
            $region44: #{simple_cnn_forward.4} parent=39 // pred_fallthru
              _
            // Predicated region
            $region45: #{simple_cnn_forward.4} parent=39 // pred_check
              _
            $region46: #{simple_cnn_forward.4} parent=39 // pred_check_branch
              %1133 = sbr.rel (0) target = $region48
            $region47: #{simple_cnn_forward.4} parent=39 // pred_region
              %s1135 = ssub.s32 16, 1
              %s1136 = sshrl.u32 %s1122, 3
              // While loop
              $region49: #{simple_cnn_forward.4} parent=47 // loop_pre_header
                _
              $region50: #{simple_cnn_forward.4} parent=47 // loop_header
                %s1138 = sphi 0, %s1140
                %p1139 = scmp.ge.s32.totalorder %s1138, %s1136
                %s1143 = sphi 0, %s1164
                %s1144 = sphi %s1115, %s1167
                %s1145 = sphi %s1126, %s1168
              $region51: #{simple_cnn_forward.4} parent=47 // loop_header_branch
                %1142 = sbr.rel (%p1139) target = $region55
              $region52: #{simple_cnn_forward.4} parent=47 // loop_body
                %v1146 = vld [vmem:[%s1144] sm:%s1135]
                %1147 = vst [vmem:[%s1145] sm:%s1135] %v1146
                %v1148 = vld [vmem:[%s1144 + $0x4] sm:%s1135]
                %1149 = vst [vmem:[%s1145 + $0x4] sm:%s1135] %v1148
                %v1150 = vld [vmem:[%s1144 + $0x8] sm:%s1135]
                %1151 = vst [vmem:[%s1145 + $0x8] sm:%s1135] %v1150
                %v1152 = vld [vmem:[%s1144 + $0xc] sm:%s1135]
                %1153 = vst [vmem:[%s1145 + $0xc] sm:%s1135] %v1152
                %v1154 = vld [vmem:[%s1144 + $0x10] sm:%s1135]
                %1155 = vst [vmem:[%s1145 + $0x10] sm:%s1135] %v1154
                %v1156 = vld [vmem:[%s1144 + $0x14] sm:%s1135]
                %1157 = vst [vmem:[%s1145 + $0x14] sm:%s1135] %v1156
                %v1158 = vld [vmem:[%s1144 + $0x18] sm:%s1135]
                %1159 = vst [vmem:[%s1145 + $0x18] sm:%s1135] %v1158
                %v1160 = vld [vmem:[%s1144 + $0x1c] sm:%s1135]
                %1161 = vst [vmem:[%s1145 + $0x1c] sm:%s1135] %v1160
                %s1162 = sadd.s32 1, %s1143
                %p1163 = scmp.ge.s32.totalorder %s1162, %s1136
                %s1164 = scalar_select %p1163, 0, %s1162
                %s1165 = smul.u32 %s1164, 32
                %s1166 = smul.u32 %s1164, 32
                %s1167 = scalar_lea.vmem %s1115, %s1165 [#allocation2]
                %s1168 = scalar_lea.vmem %s1126, %s1166
              $region53: #{simple_cnn_forward.4} parent=47 // loop_footer
                %s1140 = sadd.s32 %s1138, 1
              $region54: #{simple_cnn_forward.4} parent=47 // loop_footer_branch
                %1137 = sbr.rel target = $region50
              $region55: #{simple_cnn_forward.4} parent=47 // loop_exit
                _
              %s1169 = sshrl.u32 %s1122, 3
              %s1170 = sand.u32 %s1122, 7
              %s1171 = smul.u32 %s1169, 8
              %s1172 = smul.u32 4, %s1171
              %s1173 = scalar_lea.vmem %s1115, %s1172 [#allocation2]
              %s1174 = smul.u32 4, %s1171
              %s1175 = scalar_lea.vmem %s1126, %s1174
              // While loop
              $region56: #{simple_cnn_forward.4} parent=47 // loop_pre_header
                _
              $region57: #{simple_cnn_forward.4} parent=47 // loop_header
                %s1177 = sphi 0, %s1179
                %p1178 = scmp.ge.s32.totalorder %s1177, %s1170
                %s1182 = sphi 0, %s1189
                %s1183 = sphi %s1173, %s1192
                %s1184 = sphi %s1175, %s1193
              $region58: #{simple_cnn_forward.4} parent=47 // loop_header_branch
                %1181 = sbr.rel (%p1178) target = $region62
              $region59: #{simple_cnn_forward.4} parent=47 // loop_body
                %v1185 = vld [vmem:[%s1183] sm:%s1135]
                %1186 = vst [vmem:[%s1184] sm:%s1135] %v1185
                %s1187 = sadd.s32 1, %s1182
                %p1188 = scmp.ge.s32.totalorder %s1187, %s1170
                %s1189 = scalar_select %p1188, 0, %s1187
                %s1190 = smul.u32 %s1189, 4
                %s1191 = smul.u32 %s1189, 4
                %s1192 = scalar_lea.vmem %s1173, %s1190 [#allocation2]
                %s1193 = scalar_lea.vmem %s1175, %s1191
              $region60: #{simple_cnn_forward.4} parent=47 // loop_footer
                %s1179 = sadd.s32 %s1177, 1
              $region61: #{simple_cnn_forward.4} parent=47 // loop_footer_branch
                %1176 = sbr.rel target = $region57
              $region62: #{simple_cnn_forward.4} parent=47 // loop_exit
                _
            $region48: #{simple_cnn_forward.4} parent=39 // pred_fallthru
              _
          $region40: #{simple_cnn_forward.4} parent=35 // pred_fallthru
            _
          %1256 = vnop
        $region36: #{simple_cnn_forward.4} parent=31 // pred_fallthru
          _
      $region32: #{simple_cnn_forward.4} parent=5 // pred_fallthru
        _
      %p1257 = scmp.le.s32.totalorder 2, %s9
      // Predicated region
      $region81: #{simple_cnn_forward.4} parent=5 // pred_check
        %p1258 = pneg %p1257
      $region82: #{simple_cnn_forward.4} parent=5 // pred_check_branch
        %1260 = sbr.rel (%p1258) target = $region84
      $region83: #{simple_cnn_forward.4} parent=5 // pred_region
        %s1261 = ssub.s32 %s9, 2
        // Predicated region
        $region85: #{simple_cnn_forward.4} parent=83 // pred_check
          %p1262 = pneg %p106
        $region86: #{simple_cnn_forward.4} parent=83 // pred_check_branch
          %1264 = sbr.rel (%p1262) target = $region88
        $region87: #{simple_cnn_forward.4} parent=83 // pred_region
          %s1265 = sand.u32 %s91, 1
          %s1266 = sand.u32 %s91, 1
          %s1267 = smul.addr %s1266, 32
          %s1268 = scalar_lea.vmem [#allocation2], %s1267
        $region88: #{simple_cnn_forward.4} parent=83 // pred_fallthru
          _
      $region84: #{simple_cnn_forward.4} parent=5 // pred_fallthru
        _
    $region6: #{simple_cnn_forward.4} parent=1 // loop_footer
      %s13 = sadd.s32 1, %s9
    $region7: #{simple_cnn_forward.4} parent=1 // loop_footer_branch
      %8 = sbr.rel target = $region3
    $region8: #{simple_cnn_forward.4} parent=1 // loop_exit
      _

// kernel: simple_cnn_forward.5
$region0: #{simple_cnn_forward.5}
  #allocation0 [shape = 'u32[]', space=smem, size = 0x4, offset = 0x4, fixed_abs, tag = 'smem constant byte address 0x4 - core index']
  #allocation1 [shape = 'u32[144,128]{1,0:T(1,128)}', space=vmem, size = 0x12000, scoped, tag = 'internal scratch']
  %s0 = inlined_call_operand.vmem [shape: bf16[2,1568], index: 0, kind: input, shape index: {}]
  %s1 = inlined_call_operand.vmem [shape: bf16[1568,128], index: 1, kind: input, shape index: {}]
  %s2 = inlined_call_operand.vmem [shape: f32[1,128], index: 2, kind: input, shape index: {}]
  %s3 = inlined_call_operand.vmem [shape: bf16[128,128], index: 3, kind: input, shape index: {}]
  %s4 = inlined_call_operand.vmem [shape: f32[1,128], index: 4, kind: input, shape index: {}]
  %s5 = inlined_call_operand.hbm [shape: f32[2,128], index: 5, kind: output, shape index: {}]
  %s6 = sld [smem:[#allocation0]]
  $region30: #{simple_cnn_forward.5} parent=0
    _
  %s8 = ssub.s32 1, %s6
  %s9 = scalar_select 0, %s8, %s6
  $region1: #{simple_cnn_forward.5} parent=0
    #allocation2 [shape = 'u8[1024]{0}', space=vmem, size = 0x400, scoped, tag = 'output window, operand 0, single buffered']
    #allocation3 [shape = 's32[1]{0}', space=sflag, size = 0x4, scoped, tag = 'scoped memory for simple_cnn_forward.5']
    %10 = vsyncpa [#allocation3], 0
    // Predicated region
    $region2: #{simple_cnn_forward.5} parent=1 // pred_check
      _
    $region3: #{simple_cnn_forward.5} parent=1 // pred_check_branch
      %12 = sbr.rel (0) target = $region5
    $region4: #{simple_cnn_forward.5} parent=1 // pred_region
      _
    $region5: #{simple_cnn_forward.5} parent=1 // pred_fallthru
      _
    // Predicated region
    $region6: #{simple_cnn_forward.5} parent=1 // pred_check
      _
    $region7: #{simple_cnn_forward.5} parent=1 // pred_check_branch
      %14 = sbr.rel (0) target = $region9
    $region8: #{simple_cnn_forward.5} parent=1 // pred_region
      _
    $region9: #{simple_cnn_forward.5} parent=1 // pred_fallthru
      _
    // Predicated region
    $region10: #{simple_cnn_forward.5} parent=1 // pred_check
      _
    $region11: #{simple_cnn_forward.5} parent=1 // pred_check_branch
      %16 = sbr.rel (0) target = $region13
    $region12: #{simple_cnn_forward.5} parent=1 // pred_region
      _
    $region13: #{simple_cnn_forward.5} parent=1 // pred_fallthru
      _
    // Predicated region
    $region14: #{simple_cnn_forward.5} parent=1 // pred_check
      _
    $region15: #{simple_cnn_forward.5} parent=1 // pred_check_branch
      %18 = sbr.rel (0) target = $region17
    $region16: #{simple_cnn_forward.5} parent=1 // pred_region
      _
    $region17: #{simple_cnn_forward.5} parent=1 // pred_fallthru
      _
    // Predicated region
    $region18: #{simple_cnn_forward.5} parent=1 // pred_check
      _
    $region19: #{simple_cnn_forward.5} parent=1 // pred_check_branch
      %20 = sbr.rel (0) target = $region21
    $region20: #{simple_cnn_forward.5} parent=1 // pred_region
      _
    $region21: #{simple_cnn_forward.5} parent=1 // pred_fallthru
      _
    %v22 = vld [vmem:[%s0] sm:$0xff]
    %v23 = vld [vmem:[%s0 + $0x8] sm:$0x1f]
    %v24 = vld [vmem:[%s1] sm:$0xf]
    %v25 = vld [vmem:[%s1 + $0x4] sm:$0xf]
    %v26 = vld [vmem:[%s1 + $0x8] sm:$0xf]
    %v27 = vld [vmem:[%s1 + $0xc] sm:$0xf]
    %v28 = vld [vmem:[%s1 + $0x10] sm:$0xf]
    %v29 = vld [vmem:[%s1 + $0x14] sm:$0xf]
    %v30 = vld [vmem:[%s1 + $0x18] sm:$0xf]
    %v31 = vld [vmem:[%s1 + $0x1c] sm:$0xf]
    %v32 = vld [vmem:[%s1 + $0x20] sm:$0xf]
    %v33 = vld [vmem:[%s1 + $0x24] sm:$0xf]
    %v34 = vld [vmem:[%s1 + $0x28] sm:$0xf]
    %v35 = vld [vmem:[%s1 + $0x2c] sm:$0xf]
    %v36 = vld [vmem:[%s1 + $0x30] sm:$0xf]
    %v37 = vld [vmem:[%s1 + $0x34] sm:$0xf]
    %v38 = vld [vmem:[%s1 + $0x38] sm:$0xf]
    %v39 = vld [vmem:[%s1 + $0x3c] sm:$0xf]
    %v40 = vld [vmem:[%s1 + $0x40] sm:$0xf]
    %v41 = vld [vmem:[%s1 + $0x44] sm:$0xf]
    %v42 = vld [vmem:[%s1 + $0x48] sm:$0xf]
    %v43 = vld [vmem:[%s1 + $0x4c] sm:$0xf]
    %v44 = vld [vmem:[%s1 + $0x50] sm:$0xf]
    %v45 = vld [vmem:[%s1 + $0x54] sm:$0xf]
    %v46 = vld [vmem:[%s1 + $0x58] sm:$0xf]
    %v47 = vld [vmem:[%s1 + $0x5c] sm:$0xf]
    %v48 = vld [vmem:[%s1 + $0x60] sm:$0xf]
    %v49 = vld [vmem:[%s1 + $0x64] sm:$0xf]
    %v50 = vld [vmem:[%s1 + $0x68] sm:$0xf]
    %v51 = vld [vmem:[%s1 + $0x6c] sm:$0xf]
    %v52 = vld [vmem:[%s1 + $0x70] sm:$0xf]
    %v53 = vld [vmem:[%s1 + $0x74] sm:$0xf]
    %v54 = vld [vmem:[%s1 + $0x78] sm:$0xf]
    %v55 = vld [vmem:[%s1 + $0x7c] sm:$0xf]
    %v56 = vld [vmem:[%s1 + $0x80] sm:$0xf]
    %v57 = vld [vmem:[%s1 + $0x84] sm:$0xf]
    %v58 = vld [vmem:[%s1 + $0x88] sm:$0xf]
    %v59 = vld [vmem:[%s1 + $0x8c] sm:$0xf]
    %v60 = vld [vmem:[%s1 + $0x90] sm:$0xf]
    %v61 = vld [vmem:[%s1 + $0x94] sm:$0xf]
    %v62 = vld [vmem:[%s1 + $0x98] sm:$0xf]
    %v63 = vld [vmem:[%s1 + $0x9c] sm:$0xf]
    %v64 = vld [vmem:[%s1 + $0xa0] sm:$0xf]
    %v65 = vld [vmem:[%s1 + $0xa4] sm:$0xf]
    %v66 = vld [vmem:[%s1 + $0xa8] sm:$0xf]
    %v67 = vld [vmem:[%s1 + $0xac] sm:$0xf]
    %v68 = vld [vmem:[%s1 + $0xb0] sm:$0xf]
    %v69 = vld [vmem:[%s1 + $0xb4] sm:$0xf]
    %v70 = vld [vmem:[%s1 + $0xb8] sm:$0xf]
    %v71 = vld [vmem:[%s1 + $0xbc] sm:$0xf]
    %v72 = vld [vmem:[%s1 + $0xc0] sm:$0xf]
    %v73 = vld [vmem:[%s1 + $0xc4] sm:$0xf]
    %v74 = vld [vmem:[%s1 + $0xc8] sm:$0xf]
    %v75 = vld [vmem:[%s1 + $0xcc] sm:$0xf]
    %v76 = vld [vmem:[%s1 + $0xd0] sm:$0xf]
    %v77 = vld [vmem:[%s1 + $0xd4] sm:$0xf]
    %v78 = vld [vmem:[%s1 + $0xd8] sm:$0xf]
    %v79 = vld [vmem:[%s1 + $0xdc] sm:$0xf]
    %v80 = vld [vmem:[%s1 + $0xe0] sm:$0xf]
    %v81 = vld [vmem:[%s1 + $0xe4] sm:$0xf]
    %v82 = vld [vmem:[%s1 + $0xe8] sm:$0xf]
    %v83 = vld [vmem:[%s1 + $0xec] sm:$0xf]
    %v84 = vld [vmem:[%s1 + $0xf0] sm:$0xf]
    %v85 = vld [vmem:[%s1 + $0xf4] sm:$0xf]
    %v86 = vld [vmem:[%s1 + $0xf8] sm:$0xf]
    %v87 = vld [vmem:[%s1 + $0xfc] sm:$0xf]
    %v88 = vld [vmem:[%s1 + $0x100] sm:$0xf]
    %v89 = vld [vmem:[%s1 + $0x104] sm:$0xf]
    %v90 = vld [vmem:[%s1 + $0x108] sm:$0xf]
    %v91 = vld [vmem:[%s1 + $0x10c] sm:$0xf]
    %v92 = vld [vmem:[%s1 + $0x110] sm:$0xf]
    %v93 = vld [vmem:[%s1 + $0x114] sm:$0xf]
    %v94 = vld [vmem:[%s1 + $0x118] sm:$0xf]
    %v95 = vld [vmem:[%s1 + $0x11c] sm:$0xf]
    %v96 = vld [vmem:[%s1 + $0x120] sm:$0xf]
    %v97 = vld [vmem:[%s1 + $0x124] sm:$0xf]
    %v98 = vld [vmem:[%s1 + $0x128] sm:$0xf]
    %v99 = vld [vmem:[%s1 + $0x12c] sm:$0xf]
    %v100 = vld [vmem:[%s1 + $0x130] sm:$0xf]
    %v101 = vld [vmem:[%s1 + $0x134] sm:$0xf]
    %v102 = vld [vmem:[%s1 + $0x138] sm:$0xf]
    %v103 = vld [vmem:[%s1 + $0x13c] sm:$0xf]
    %v104 = vld [vmem:[%s1 + $0x140] sm:$0xf]
    %v105 = vld [vmem:[%s1 + $0x144] sm:$0xf]
    %v106 = vld [vmem:[%s1 + $0x148] sm:$0xf]
    %v107 = vld [vmem:[%s1 + $0x14c] sm:$0xf]
    %v108 = vld [vmem:[%s1 + $0x150] sm:$0xf]
    %v109 = vld [vmem:[%s1 + $0x154] sm:$0xf]
    %v110 = vld [vmem:[%s1 + $0x158] sm:$0xf]
    %v111 = vld [vmem:[%s1 + $0x15c] sm:$0xf]
    %v112 = vld [vmem:[%s1 + $0x160] sm:$0xf]
    %v113 = vld [vmem:[%s1 + $0x164] sm:$0xf]
    %v114 = vld [vmem:[%s1 + $0x168] sm:$0xf]
    %v115 = vld [vmem:[%s1 + $0x16c] sm:$0xf]
    %v116 = vld [vmem:[%s1 + $0x170] sm:$0xf]
    %v117 = vld [vmem:[%s1 + $0x174] sm:$0xf]
    %v118 = vld [vmem:[%s1 + $0x178] sm:$0xf]
    %v119 = vld [vmem:[%s1 + $0x17c] sm:$0xf]
    %v120 = vld [vmem:[%s1 + $0x180] sm:$0xf]
    %v121 = vld [vmem:[%s1 + $0x184] sm:$0xf]
    %v122 = vld [vmem:[%s1 + $0x188] sm:$0xf]
    %v123 = vld [vmem:[%s1 + $0x18c] sm:$0xf]
    %v124 = vld [vmem:[%s1 + $0x190] sm:$0xf]
    %v125 = vld [vmem:[%s1 + $0x194] sm:$0xf]
    %v126 = vld [vmem:[%s1 + $0x198] sm:$0xf]
    %v127 = vld [vmem:[%s1 + $0x19c] sm:$0xf]
    %v128 = vld [vmem:[%s1 + $0x1a0] sm:$0xf]
    %v129 = vld [vmem:[%s1 + $0x1a4] sm:$0xf]
    %v130 = vld [vmem:[%s1 + $0x1a8] sm:$0xf]
    %v131 = vld [vmem:[%s1 + $0x1ac] sm:$0xf]
    %v132 = vld [vmem:[%s1 + $0x1b0] sm:$0xf]
    %v133 = vld [vmem:[%s1 + $0x1b4] sm:$0xf]
    %v134 = vld [vmem:[%s1 + $0x1b8] sm:$0xf]
    %v135 = vld [vmem:[%s1 + $0x1bc] sm:$0xf]
    %v136 = vld [vmem:[%s1 + $0x1c0] sm:$0xf]
    %v137 = vld [vmem:[%s1 + $0x1c4] sm:$0xf]
    %v138 = vld [vmem:[%s1 + $0x1c8] sm:$0xf]
    %v139 = vld [vmem:[%s1 + $0x1cc] sm:$0xf]
    %v140 = vld [vmem:[%s1 + $0x1d0] sm:$0xf]
    %v141 = vld [vmem:[%s1 + $0x1d4] sm:$0xf]
    %v142 = vld [vmem:[%s1 + $0x1d8] sm:$0xf]
    %v143 = vld [vmem:[%s1 + $0x1dc] sm:$0xf]
    %v144 = vld [vmem:[%s1 + $0x1e0] sm:$0xf]
    %v145 = vld [vmem:[%s1 + $0x1e4] sm:$0xf]
    %v146 = vld [vmem:[%s1 + $0x1e8] sm:$0xf]
    %v147 = vld [vmem:[%s1 + $0x1ec] sm:$0xf]
    %v148 = vld [vmem:[%s1 + $0x1f0] sm:$0xf]
    %v149 = vld [vmem:[%s1 + $0x1f4] sm:$0xf]
    %v150 = vld [vmem:[%s1 + $0x1f8] sm:$0xf]
    %v151 = vld [vmem:[%s1 + $0x1fc] sm:$0xf]
    %v152 = vld [vmem:[%s1 + $0x200] sm:$0xf]
    %v153 = vld [vmem:[%s1 + $0x204] sm:$0xf]
    %v154 = vld [vmem:[%s1 + $0x208] sm:$0xf]
    %v155 = vld [vmem:[%s1 + $0x20c] sm:$0xf]
    %v156 = vld [vmem:[%s1 + $0x210] sm:$0xf]
    %v157 = vld [vmem:[%s1 + $0x214] sm:$0xf]
    %v158 = vld [vmem:[%s1 + $0x218] sm:$0xf]
    %v159 = vld [vmem:[%s1 + $0x21c] sm:$0xf]
    %v160 = vld [vmem:[%s1 + $0x220] sm:$0xf]
    %v161 = vld [vmem:[%s1 + $0x224] sm:$0xf]
    %v162 = vld [vmem:[%s1 + $0x228] sm:$0xf]
    %v163 = vld [vmem:[%s1 + $0x22c] sm:$0xf]
    %v164 = vld [vmem:[%s1 + $0x230] sm:$0xf]
    %v165 = vld [vmem:[%s1 + $0x234] sm:$0xf]
    %v166 = vld [vmem:[%s1 + $0x238] sm:$0xf]
    %v167 = vld [vmem:[%s1 + $0x23c] sm:$0xf]
    %v168 = vld [vmem:[%s1 + $0x240] sm:$0xf]
    %v169 = vld [vmem:[%s1 + $0x244] sm:$0xf]
    %v170 = vld [vmem:[%s1 + $0x248] sm:$0xf]
    %v171 = vld [vmem:[%s1 + $0x24c] sm:$0xf]
    %v172 = vld [vmem:[%s1 + $0x250] sm:$0xf]
    %v173 = vld [vmem:[%s1 + $0x254] sm:$0xf]
    %v174 = vld [vmem:[%s1 + $0x258] sm:$0xf]
    %v175 = vld [vmem:[%s1 + $0x25c] sm:$0xf]
    %v176 = vld [vmem:[%s1 + $0x260] sm:$0xf]
    %v177 = vld [vmem:[%s1 + $0x264] sm:$0xf]
    %v178 = vld [vmem:[%s1 + $0x268] sm:$0xf]
    %v179 = vld [vmem:[%s1 + $0x26c] sm:$0xf]
    %v180 = vld [vmem:[%s1 + $0x270] sm:$0xf]
    %v181 = vld [vmem:[%s1 + $0x274] sm:$0xf]
    %v182 = vld [vmem:[%s1 + $0x278] sm:$0xf]
    %v183 = vld [vmem:[%s1 + $0x27c] sm:$0xf]
    %v184 = vld [vmem:[%s1 + $0x280] sm:$0xf]
    %v185 = vld [vmem:[%s1 + $0x284] sm:$0xf]
    %v186 = vld [vmem:[%s1 + $0x288] sm:$0xf]
    %v187 = vld [vmem:[%s1 + $0x28c] sm:$0xf]
    %v188 = vld [vmem:[%s1 + $0x290] sm:$0xf]
    %v189 = vld [vmem:[%s1 + $0x294] sm:$0xf]
    %v190 = vld [vmem:[%s1 + $0x298] sm:$0xf]
    %v191 = vld [vmem:[%s1 + $0x29c] sm:$0xf]
    %v192 = vld [vmem:[%s1 + $0x2a0] sm:$0xf]
    %v193 = vld [vmem:[%s1 + $0x2a4] sm:$0xf]
    %v194 = vld [vmem:[%s1 + $0x2a8] sm:$0xf]
    %v195 = vld [vmem:[%s1 + $0x2ac] sm:$0xf]
    %v196 = vld [vmem:[%s1 + $0x2b0] sm:$0xf]
    %v197 = vld [vmem:[%s1 + $0x2b4] sm:$0xf]
    %v198 = vld [vmem:[%s1 + $0x2b8] sm:$0xf]
    %v199 = vld [vmem:[%s1 + $0x2bc] sm:$0xf]
    %v200 = vld [vmem:[%s1 + $0x2c0] sm:$0xf]
    %v201 = vld [vmem:[%s1 + $0x2c4] sm:$0xf]
    %v202 = vld [vmem:[%s1 + $0x2c8] sm:$0xf]
    %v203 = vld [vmem:[%s1 + $0x2cc] sm:$0xf]
    %v204 = vld [vmem:[%s1 + $0x2d0] sm:$0xf]
    %v205 = vld [vmem:[%s1 + $0x2d4] sm:$0xf]
    %v206 = vld [vmem:[%s1 + $0x2d8] sm:$0xf]
    %v207 = vld [vmem:[%s1 + $0x2dc] sm:$0xf]
    %v208 = vld [vmem:[%s1 + $0x2e0] sm:$0xf]
    %v209 = vld [vmem:[%s1 + $0x2e4] sm:$0xf]
    %v210 = vld [vmem:[%s1 + $0x2e8] sm:$0xf]
    %v211 = vld [vmem:[%s1 + $0x2ec] sm:$0xf]
    %v212 = vld [vmem:[%s1 + $0x2f0] sm:$0xf]
    %v213 = vld [vmem:[%s1 + $0x2f4] sm:$0xf]
    %v214 = vld [vmem:[%s1 + $0x2f8] sm:$0xf]
    %v215 = vld [vmem:[%s1 + $0x2fc] sm:$0xf]
    %v216 = vld [vmem:[%s1 + $0x300] sm:$0xf]
    %v217 = vld [vmem:[%s1 + $0x304] sm:$0xf]
    %v218 = vld [vmem:[%s1 + $0x308] sm:$0xf]
    %v219 = vld [vmem:[%s1 + $0x30c] sm:$0xf]
    %v220 = vld [vmem:[%s2] sm:$0x1]
    %v222 = vlaneseq
    %v223 = vshrl.u32 %v222, 7
    %v224 = vsub.s32 0, %v223
    %v225 = vrot.slane %v220, %v224
    %v229 = vcombine.high %v22, %v22
    %v231 = vunpack.c.l.s4 1966171168
    %v232 = vunpack.c.0.s8 %v231
    %v233 = vlaneseq
    %v234 = vshrl.u32 %v233, 7
    %v235 = vsub.s32 %v232, %v234
    %v236 = vrot.slane %v22, %v235
    %v238 = vunpack.c.l.s4 1966171168
    %v239 = vunpack.c.0.s8 %v238
    %v240 = vlaneseq
    %v241 = vshrl.u32 %v240, 7
    %v242 = vsub.s32 %v239, %v241
    %v243 = vrot.slane %v229, %v242
    %v244 = vcombine.high %v236, %v236
    %v245 = vcombine.high %v243, %v243
    %v247 = vunpack.c.l.s4 1966171168
    %v248 = vunpack.c.0.s8 %v247
    %v249 = vlaneseq
    %v250 = vshrl.u32 %v249, 7
    %v251 = vsub.s32 %v248, %v250
    %v252 = vrot.slane %v236, %v251
    %v254 = vunpack.c.l.s4 1966171168
    %v255 = vunpack.c.0.s8 %v254
    %v256 = vlaneseq
    %v257 = vshrl.u32 %v256, 7
    %v258 = vsub.s32 %v255, %v257
    %v259 = vrot.slane %v243, %v258
    %v261 = vunpack.c.l.s4 1966171168
    %v262 = vunpack.c.0.s8 %v261
    %v263 = vlaneseq
    %v264 = vshrl.u32 %v263, 7
    %v265 = vsub.s32 %v262, %v264
    %v266 = vrot.slane %v244, %v265
    %v268 = vunpack.c.l.s4 1966171168
    %v269 = vunpack.c.0.s8 %v268
    %v270 = vlaneseq
    %v271 = vshrl.u32 %v270, 7
    %v272 = vsub.s32 %v269, %v271
    %v273 = vrot.slane %v245, %v272
    %v274 = vcombine.high %v252, %v252
    %v275 = vcombine.high %v259, %v259
    %v276 = vcombine.high %v266, %v266
    %v277 = vcombine.high %v273, %v273
    %v278 = vcombine.high %v23, %v23
    %v280 = vunpack.c.l.s4 1966171168
    %v281 = vunpack.c.0.s8 %v280
    %v282 = vlaneseq
    %v283 = vshrl.u32 %v282, 7
    %v284 = vsub.s32 %v281, %v283
    %v285 = vrot.slane %v23, %v284
    %v287 = vunpack.c.l.s4 1966171168
    %v288 = vunpack.c.0.s8 %v287
    %v289 = vlaneseq
    %v290 = vshrl.u32 %v289, 7
    %v291 = vsub.s32 %v288, %v290
    %v292 = vrot.slane %v278, %v291
    %v293 = vcombine.high %v285, %v285
    %v295 = vunpack.c.l.s4 1966171168
    %v296 = vunpack.c.0.s8 %v295
    %v297 = vlaneseq
    %v298 = vshrl.u32 %v297, 7
    %v299 = vsub.s32 %v296, %v298
    %v300 = vrot.slane %v285, %v299
    %v302 = vunpack.c.l.s4 1966171168
    %v303 = vunpack.c.0.s8 %v302
    %v304 = vlaneseq
    %v305 = vshrl.u32 %v304, 7
    %v306 = vsub.s32 %v303, %v305
    %v307 = vrot.slane %v292, %v306
    %v309 = vunpack.c.l.s4 1966171168
    %v310 = vunpack.c.0.s8 %v309
    %v311 = vlaneseq
    %v312 = vshrl.u32 %v311, 7
    %v313 = vsub.s32 %v310, %v312
    %v314 = vrot.slane %v293, %v313
    %v315 = vcombine.high %v300, %v300
    %v316 = vcombine.high %v314, %v314
    %v525 = vunpack.c.l.b16 %v24
    %v526 = vunpack.c.l.b16 %v25
    %v527 = vunpack.c.l.b16 %v26
    %v528 = vunpack.c.l.b16 %v27
    %v529 = vunpack.c.l.b16 %v28
    %v530 = vunpack.c.l.b16 %v29
    %v531 = vunpack.c.l.b16 %v30
    %v532 = vunpack.c.l.b16 %v31
    %v533 = vunpack.c.l.b16 %v32
    %v534 = vunpack.c.l.b16 %v33
    %v535 = vunpack.c.l.b16 %v34
    %v536 = vunpack.c.l.b16 %v35
    %v537 = vunpack.c.l.b16 %v36
    %v538 = vunpack.c.l.b16 %v37
    %v539 = vunpack.c.l.b16 %v38
    %v540 = vunpack.c.l.b16 %v39
    %v541 = vunpack.c.l.b16 %v40
    %v542 = vunpack.c.l.b16 %v41
    %v543 = vunpack.c.l.b16 %v42
    %v544 = vunpack.c.l.b16 %v43
    %v545 = vunpack.c.l.b16 %v44
    %v546 = vunpack.c.l.b16 %v45
    %v547 = vunpack.c.l.b16 %v46
    %v548 = vunpack.c.l.b16 %v47
    %v549 = vunpack.c.l.b16 %v48
    %v550 = vunpack.c.l.b16 %v49
    %v551 = vunpack.c.l.b16 %v50
    %v552 = vunpack.c.l.b16 %v51
    %v553 = vunpack.c.l.b16 %v52
    %v554 = vunpack.c.l.b16 %v53
    %v555 = vunpack.c.l.b16 %v54
    %v556 = vunpack.c.l.b16 %v55
    %v557 = vunpack.c.l.b16 %v56
    %v558 = vunpack.c.l.b16 %v57
    %v559 = vunpack.c.l.b16 %v58
    %v560 = vunpack.c.l.b16 %v59
    %v561 = vunpack.c.l.b16 %v60
    %v562 = vunpack.c.l.b16 %v61
    %v563 = vunpack.c.l.b16 %v62
    %v564 = vunpack.c.l.b16 %v63
    %v565 = vunpack.c.l.b16 %v64
    %v566 = vunpack.c.l.b16 %v65
    %v567 = vunpack.c.l.b16 %v66
    %v568 = vunpack.c.l.b16 %v67
    %v569 = vunpack.c.l.b16 %v68
    %v570 = vunpack.c.l.b16 %v69
    %v571 = vunpack.c.l.b16 %v70
    %v572 = vunpack.c.l.b16 %v71
    %v573 = vunpack.c.l.b16 %v72
    %v574 = vunpack.c.l.b16 %v73
    %v575 = vunpack.c.l.b16 %v74
    %v576 = vunpack.c.l.b16 %v75
    %v577 = vunpack.c.l.b16 %v76
    %v578 = vunpack.c.l.b16 %v77
    %v579 = vunpack.c.l.b16 %v78
    %v580 = vunpack.c.l.b16 %v79
    %v581 = vunpack.c.l.b16 %v80
    %v582 = vunpack.c.l.b16 %v81
    %v583 = vunpack.c.l.b16 %v82
    %v584 = vunpack.c.l.b16 %v83
    %v585 = vunpack.c.l.b16 %v84
    %v586 = vunpack.c.l.b16 %v85
    %v587 = vunpack.c.l.b16 %v86
    %v588 = vunpack.c.l.b16 %v87
    %v589 = vunpack.c.l.b16 %v88
    %v590 = vunpack.c.l.b16 %v89
    %v591 = vunpack.c.l.b16 %v90
    %v592 = vunpack.c.l.b16 %v91
    %v593 = vunpack.c.l.b16 %v92
    %v594 = vunpack.c.l.b16 %v93
    %v595 = vunpack.c.l.b16 %v94
    %v596 = vunpack.c.l.b16 %v95
    %v597 = vunpack.c.l.b16 %v96
    %v598 = vunpack.c.l.b16 %v97
    %v599 = vunpack.c.l.b16 %v98
    %v600 = vunpack.c.l.b16 %v99
    %v601 = vunpack.c.l.b16 %v100
    %v602 = vunpack.c.l.b16 %v101
    %v603 = vunpack.c.l.b16 %v102
    %v604 = vunpack.c.l.b16 %v103
    %v605 = vunpack.c.l.b16 %v104
    %v606 = vunpack.c.l.b16 %v105
    %v607 = vunpack.c.l.b16 %v106
    %v608 = vunpack.c.l.b16 %v107
    %v609 = vunpack.c.l.b16 %v108
    %v610 = vunpack.c.l.b16 %v109
    %v611 = vunpack.c.l.b16 %v110
    %v612 = vunpack.c.l.b16 %v111
    %v613 = vunpack.c.l.b16 %v112
    %v614 = vunpack.c.l.b16 %v113
    %v615 = vunpack.c.l.b16 %v114
    %v616 = vunpack.c.l.b16 %v115
    %v617 = vunpack.c.l.b16 %v116
    %v618 = vunpack.c.l.b16 %v117
    %v619 = vunpack.c.l.b16 %v118
    %v620 = vunpack.c.l.b16 %v119
    %v621 = vunpack.c.l.b16 %v120
    %v622 = vunpack.c.l.b16 %v121
    %v623 = vunpack.c.l.b16 %v122
    %v624 = vunpack.c.l.b16 %v123
    %v625 = vunpack.c.l.b16 %v124
    %v626 = vunpack.c.l.b16 %v125
    %v627 = vunpack.c.l.b16 %v126
    %v628 = vunpack.c.l.b16 %v127
    %v629 = vunpack.c.l.b16 %v128
    %v630 = vunpack.c.l.b16 %v129
    %v631 = vunpack.c.l.b16 %v130
    %v632 = vunpack.c.l.b16 %v131
    %v633 = vunpack.c.l.b16 %v132
    %v634 = vunpack.c.l.b16 %v133
    %v635 = vunpack.c.l.b16 %v134
    %v636 = vunpack.c.l.b16 %v135
    %v637 = vunpack.c.l.b16 %v136
    %v638 = vunpack.c.l.b16 %v137
    %v639 = vunpack.c.l.b16 %v138
    %v640 = vunpack.c.l.b16 %v139
    %v641 = vunpack.c.l.b16 %v140
    %v642 = vunpack.c.l.b16 %v141
    %v643 = vunpack.c.l.b16 %v142
    %v644 = vunpack.c.l.b16 %v143
    %v645 = vunpack.c.l.b16 %v144
    %v646 = vunpack.c.l.b16 %v145
    %v647 = vunpack.c.l.b16 %v146
    %v648 = vunpack.c.l.b16 %v147
    %v649 = vunpack.c.l.b16 %v148
    %v650 = vunpack.c.l.b16 %v149
    %v651 = vunpack.c.l.b16 %v150
    %v652 = vunpack.c.l.b16 %v151
    %v653 = vunpack.c.l.b16 %v152
    %v654 = vunpack.c.l.b16 %v153
    %v655 = vunpack.c.l.b16 %v154
    %v656 = vunpack.c.l.b16 %v155
    %v657 = vunpack.c.l.b16 %v156
    %v658 = vunpack.c.l.b16 %v157
    %v659 = vunpack.c.l.b16 %v158
    %v660 = vunpack.c.l.b16 %v159
    %v661 = vunpack.c.l.b16 %v160
    %v662 = vunpack.c.l.b16 %v161
    %v663 = vunpack.c.l.b16 %v162
    %v664 = vunpack.c.l.b16 %v163
    %v665 = vunpack.c.l.b16 %v164
    %v666 = vunpack.c.l.b16 %v165
    %v667 = vunpack.c.l.b16 %v166
    %v668 = vunpack.c.l.b16 %v167
    %v669 = vunpack.c.l.b16 %v168
    %v670 = vunpack.c.l.b16 %v169
    %v671 = vunpack.c.l.b16 %v170
    %v672 = vunpack.c.l.b16 %v171
    %v673 = vunpack.c.l.b16 %v172
    %v674 = vunpack.c.l.b16 %v173
    %v675 = vunpack.c.l.b16 %v174
    %v676 = vunpack.c.l.b16 %v175
    %v677 = vunpack.c.l.b16 %v176
    %v678 = vunpack.c.l.b16 %v177
    %v679 = vunpack.c.l.b16 %v178
    %v680 = vunpack.c.l.b16 %v179
    %v681 = vunpack.c.l.b16 %v180
    %v682 = vunpack.c.l.b16 %v181
    %v683 = vunpack.c.l.b16 %v182
    %v684 = vunpack.c.l.b16 %v183
    %v685 = vunpack.c.l.b16 %v184
    %v686 = vunpack.c.l.b16 %v185
    %v687 = vunpack.c.l.b16 %v186
    %v688 = vunpack.c.l.b16 %v187
    %v689 = vunpack.c.l.b16 %v188
    %v690 = vunpack.c.l.b16 %v189
    %v691 = vunpack.c.l.b16 %v190
    %v692 = vunpack.c.l.b16 %v191
    %v693 = vunpack.c.l.b16 %v192
    %v694 = vunpack.c.l.b16 %v193
    %v695 = vunpack.c.l.b16 %v194
    %v696 = vunpack.c.l.b16 %v195
    %v697 = vunpack.c.l.b16 %v196
    %v698 = vunpack.c.l.b16 %v197
    %v699 = vunpack.c.l.b16 %v198
    %v700 = vunpack.c.l.b16 %v199
    %v701 = vunpack.c.l.b16 %v200
    %v702 = vunpack.c.l.b16 %v201
    %v703 = vunpack.c.l.b16 %v202
    %v704 = vunpack.c.l.b16 %v203
    %v705 = vunpack.c.l.b16 %v204
    %v706 = vunpack.c.l.b16 %v205
    %v707 = vunpack.c.l.b16 %v206
    %v708 = vunpack.c.l.b16 %v207
    %v709 = vunpack.c.l.b16 %v208
    %v710 = vunpack.c.l.b16 %v209
    %v711 = vunpack.c.l.b16 %v210
    %v712 = vunpack.c.l.b16 %v211
    %v713 = vunpack.c.l.b16 %v212
    %v714 = vunpack.c.l.b16 %v213
    %v715 = vunpack.c.l.b16 %v214
    %v716 = vunpack.c.l.b16 %v215
    %v717 = vunpack.c.l.b16 %v216
    %v718 = vunpack.c.l.b16 %v217
    %v719 = vunpack.c.l.b16 %v218
    %v720 = vunpack.c.l.b16 %v219
    %v721 = vpack.c.b16 %v526, %v525
    %v722 = vpack.c.b16 %v528, %v527
    %v723 = vpack.c.b16 %v530, %v529
    %v724 = vpack.c.b16 %v532, %v531
    %v725 = vpack.c.b16 %v534, %v533
    %v726 = vpack.c.b16 %v536, %v535
    %v727 = vpack.c.b16 %v538, %v537
    %v728 = vpack.c.b16 %v540, %v539
    %v729 = vpack.c.b16 %v542, %v541
    %v730 = vpack.c.b16 %v544, %v543
    %v731 = vpack.c.b16 %v546, %v545
    %v732 = vpack.c.b16 %v548, %v547
    %v733 = vpack.c.b16 %v550, %v549
    %v734 = vpack.c.b16 %v552, %v551
    %v735 = vpack.c.b16 %v554, %v553
    %v736 = vpack.c.b16 %v556, %v555
    %v737 = vpack.c.b16 %v558, %v557
    %v738 = vpack.c.b16 %v560, %v559
    %v739 = vpack.c.b16 %v562, %v561
    %v740 = vpack.c.b16 %v564, %v563
    %v741 = vpack.c.b16 %v566, %v565
    %v742 = vpack.c.b16 %v568, %v567
    %v743 = vpack.c.b16 %v570, %v569
    %v744 = vpack.c.b16 %v572, %v571
    %v745 = vpack.c.b16 %v574, %v573
    %v746 = vpack.c.b16 %v576, %v575
    %v747 = vpack.c.b16 %v578, %v577
    %v748 = vpack.c.b16 %v580, %v579
    %v749 = vpack.c.b16 %v582, %v581
    %v750 = vpack.c.b16 %v584, %v583
    %v751 = vpack.c.b16 %v586, %v585
    %v752 = vpack.c.b16 %v588, %v587
    %v753 = vpack.c.b16 %v590, %v589
    %v754 = vpack.c.b16 %v592, %v591
    %v755 = vpack.c.b16 %v594, %v593
    %v756 = vpack.c.b16 %v596, %v595
    %v757 = vpack.c.b16 %v598, %v597
    %v758 = vpack.c.b16 %v600, %v599
    %v759 = vpack.c.b16 %v602, %v601
    %v760 = vpack.c.b16 %v604, %v603
    %v761 = vpack.c.b16 %v606, %v605
    %v762 = vpack.c.b16 %v608, %v607
    %v763 = vpack.c.b16 %v610, %v609
    %v764 = vpack.c.b16 %v612, %v611
    %v765 = vpack.c.b16 %v614, %v613
    %v766 = vpack.c.b16 %v616, %v615
    %v767 = vpack.c.b16 %v618, %v617
    %v768 = vpack.c.b16 %v620, %v619
    %v769 = vpack.c.b16 %v622, %v621
    %v770 = vpack.c.b16 %v624, %v623
    %v771 = vpack.c.b16 %v626, %v625
    %v772 = vpack.c.b16 %v628, %v627
    %v773 = vpack.c.b16 %v630, %v629
    %v774 = vpack.c.b16 %v632, %v631
    %v775 = vpack.c.b16 %v634, %v633
    %v776 = vpack.c.b16 %v636, %v635
    %v777 = vpack.c.b16 %v638, %v637
    %v778 = vpack.c.b16 %v640, %v639
    %v779 = vpack.c.b16 %v642, %v641
    %v780 = vpack.c.b16 %v644, %v643
    %v781 = vpack.c.b16 %v646, %v645
    %v782 = vpack.c.b16 %v648, %v647
    %v783 = vpack.c.b16 %v650, %v649
    %v784 = vpack.c.b16 %v652, %v651
    %v785 = vpack.c.b16 %v654, %v653
    %v786 = vpack.c.b16 %v656, %v655
    %v787 = vpack.c.b16 %v658, %v657
    %v788 = vpack.c.b16 %v660, %v659
    %v789 = vpack.c.b16 %v662, %v661
    %v790 = vpack.c.b16 %v664, %v663
    %v791 = vpack.c.b16 %v666, %v665
    %v792 = vpack.c.b16 %v668, %v667
    %v793 = vpack.c.b16 %v670, %v669
    %v794 = vpack.c.b16 %v672, %v671
    %v795 = vpack.c.b16 %v674, %v673
    %v796 = vpack.c.b16 %v676, %v675
    %v797 = vpack.c.b16 %v678, %v677
    %v798 = vpack.c.b16 %v680, %v679
    %v799 = vpack.c.b16 %v682, %v681
    %v800 = vpack.c.b16 %v684, %v683
    %v801 = vpack.c.b16 %v686, %v685
    %v802 = vpack.c.b16 %v688, %v687
    %v803 = vpack.c.b16 %v690, %v689
    %v804 = vpack.c.b16 %v692, %v691
    %v805 = vpack.c.b16 %v694, %v693
    %v806 = vpack.c.b16 %v696, %v695
    %v807 = vpack.c.b16 %v698, %v697
    %v808 = vpack.c.b16 %v700, %v699
    %v809 = vpack.c.b16 %v702, %v701
    %v810 = vpack.c.b16 %v704, %v703
    %v811 = vpack.c.b16 %v706, %v705
    %v812 = vpack.c.b16 %v708, %v707
    %v813 = vpack.c.b16 %v710, %v709
    %v814 = vpack.c.b16 %v712, %v711
    %v815 = vpack.c.b16 %v714, %v713
    %v816 = vpack.c.b16 %v716, %v715
    %v817 = vpack.c.b16 %v718, %v717
    %v818 = vpack.c.b16 %v720, %v719
    %vm917 = vcmask 261120
    %v919 = vsel %vm917, %v307, 0
    %921 = vmatprep.subr.bf16.mxu0 0
    %922 = vmatpush1.bf16.msra.mxu0 %v728
    %923 = vmatprep.subr.bf16.mxu0 0
    %924 = vmatpush1.bf16.msra.mxu0 %v727
    %925 = vmatprep.subr.bf16.mxu0 0
    %926 = vmatpush1.bf16.msra.mxu0 %v726
    %927 = vmatprep.subr.bf16.mxu0 0
    %928 = vmatpush1.bf16.msra.mxu0 %v725
    %929 = vmatprep.subr.bf16.mxu0 0
    %930 = vmatpush1.bf16.msra.mxu0 %v724
    %931 = vmatprep.subr.bf16.mxu0 0
    %932 = vmatpush1.bf16.msra.mxu0 %v723
    %933 = vmatprep.subr.bf16.mxu0 0
    %934 = vmatpush1.bf16.msra.mxu0 %v722
    %935 = vmatprep.subr.bf16.mxu0 0
    %936 = vmatpush1.bf16.msra.mxu0 %v721
    %937 = vmatprep.subr.bf16.mxu0 0
    %938 = vmatpush2.bf16.msra.mxu0 %v736
    %939 = vmatprep.subr.bf16.mxu0 0
    %940 = vmatpush2.bf16.msra.mxu0 %v735
    %941 = vmatprep.subr.bf16.mxu0 0
    %942 = vmatpush2.bf16.msra.mxu0 %v734
    %943 = vmatprep.subr.bf16.mxu0 0
    %944 = vmatpush2.bf16.msra.mxu0 %v733
    %945 = vmatprep.subr.bf16.mxu0 0
    %946 = vmatpush2.bf16.msra.mxu0 %v732
    %947 = vmatprep.subr.bf16.mxu0 0
    %948 = vmatpush2.bf16.msra.mxu0 %v731
    %949 = vmatprep.subr.bf16.mxu0 0
    %950 = vmatpush2.bf16.msra.mxu0 %v730
    %951 = vmatprep.subr.bf16.mxu0 0
    %952 = vmatpush2.bf16.msra.mxu0 %v729
    %953 = vmatprep.mubr.bf16.mxu0 %v266
    %954 = vmatmul.mubr.bf16.gmra.mxu0 %v252
    %v955 = vpop.f32.mrf.mxu0
    %v956 = vadd.f32 %v225, %v955
    %v957 = vpop.f32.mrf.mxu0
    %v958 = vpop.f32.mrf.mxu0
    %v959 = vpop.f32.mrf.mxu0
    %960 = vdwg.mxu0
    %961 = vmatprep.subr.bf16.mxu0 0
    %962 = vmatpush1.bf16.msra.mxu0 %v744
    %963 = vmatprep.subr.bf16.mxu0 0
    %964 = vmatpush1.bf16.msra.mxu0 %v743
    %965 = vmatprep.subr.bf16.mxu0 0
    %966 = vmatpush1.bf16.msra.mxu0 %v742
    %967 = vmatprep.subr.bf16.mxu0 0
    %968 = vmatpush1.bf16.msra.mxu0 %v741
    %969 = vmatprep.subr.bf16.mxu0 0
    %970 = vmatpush1.bf16.msra.mxu0 %v740
    %971 = vmatprep.subr.bf16.mxu0 0
    %972 = vmatpush1.bf16.msra.mxu0 %v739
    %973 = vmatprep.subr.bf16.mxu0 0
    %974 = vmatpush1.bf16.msra.mxu0 %v738
    %975 = vmatprep.subr.bf16.mxu0 0
    %976 = vmatpush1.bf16.msra.mxu0 %v737
    %977 = vmatprep.subr.bf16.mxu0 0
    %978 = vmatpush2.bf16.msra.mxu0 %v752
    %979 = vmatprep.subr.bf16.mxu0 0
    %980 = vmatpush2.bf16.msra.mxu0 %v751
    %981 = vmatprep.subr.bf16.mxu0 0
    %982 = vmatpush2.bf16.msra.mxu0 %v750
    %983 = vmatprep.subr.bf16.mxu0 0
    %984 = vmatpush2.bf16.msra.mxu0 %v749
    %985 = vmatprep.subr.bf16.mxu0 0
    %986 = vmatpush2.bf16.msra.mxu0 %v748
    %987 = vmatprep.subr.bf16.mxu0 0
    %988 = vmatpush2.bf16.msra.mxu0 %v747
    %989 = vmatprep.subr.bf16.mxu0 0
    %990 = vmatpush2.bf16.msra.mxu0 %v746
    %991 = vmatprep.subr.bf16.mxu0 0
    %992 = vmatpush2.bf16.msra.mxu0 %v745
    %993 = vmatprep.mubr.bf16.mxu0 %v276
    %994 = vmatmul.mubr.bf16.gmra.mxu0 %v274
    %v995 = vpop.f32.mrf.mxu0
    %v996 = vadd.f32 %v956, %v995
    %v997 = vpop.f32.mrf.mxu0
    %v998 = vpop.f32.mrf.mxu0
    %v999 = vpop.f32.mrf.mxu0
    %1000 = vdwg.mxu0
    %1001 = vmatprep.subr.bf16.mxu0 0
    %1002 = vmatpush1.bf16.msra.mxu0 %v760
    %1003 = vmatprep.subr.bf16.mxu0 0
    %1004 = vmatpush1.bf16.msra.mxu0 %v759
    %1005 = vmatprep.subr.bf16.mxu0 0
    %1006 = vmatpush1.bf16.msra.mxu0 %v758
    %1007 = vmatprep.subr.bf16.mxu0 0
    %1008 = vmatpush1.bf16.msra.mxu0 %v757
    %1009 = vmatprep.subr.bf16.mxu0 0
    %1010 = vmatpush1.bf16.msra.mxu0 %v756
    %1011 = vmatprep.subr.bf16.mxu0 0
    %1012 = vmatpush1.bf16.msra.mxu0 %v755
    %1013 = vmatprep.subr.bf16.mxu0 0
    %1014 = vmatpush1.bf16.msra.mxu0 %v754
    %1015 = vmatprep.subr.bf16.mxu0 0
    %1016 = vmatpush1.bf16.msra.mxu0 %v753
    %1017 = vmatprep.subr.bf16.mxu0 0
    %1018 = vmatpush2.bf16.msra.mxu0 %v768
    %1019 = vmatprep.subr.bf16.mxu0 0
    %1020 = vmatpush2.bf16.msra.mxu0 %v767
    %1021 = vmatprep.subr.bf16.mxu0 0
    %1022 = vmatpush2.bf16.msra.mxu0 %v766
    %1023 = vmatprep.subr.bf16.mxu0 0
    %1024 = vmatpush2.bf16.msra.mxu0 %v765
    %1025 = vmatprep.subr.bf16.mxu0 0
    %1026 = vmatpush2.bf16.msra.mxu0 %v764
    %1027 = vmatprep.subr.bf16.mxu0 0
    %1028 = vmatpush2.bf16.msra.mxu0 %v763
    %1029 = vmatprep.subr.bf16.mxu0 0
    %1030 = vmatpush2.bf16.msra.mxu0 %v762
    %1031 = vmatprep.subr.bf16.mxu0 0
    %1032 = vmatpush2.bf16.msra.mxu0 %v761
    %1033 = vmatprep.mubr.bf16.mxu0 %v273
    %1034 = vmatmul.mubr.bf16.gmra.mxu0 %v259
    %v1035 = vpop.f32.mrf.mxu0
    %v1036 = vadd.f32 %v996, %v1035
    %v1037 = vpop.f32.mrf.mxu0
    %v1038 = vpop.f32.mrf.mxu0
    %v1039 = vpop.f32.mrf.mxu0
    %1040 = vdwg.mxu0
    %1041 = vmatprep.subr.bf16.mxu0 0
    %1042 = vmatpush1.bf16.msra.mxu0 %v776
    %1043 = vmatprep.subr.bf16.mxu0 0
    %1044 = vmatpush1.bf16.msra.mxu0 %v775
    %1045 = vmatprep.subr.bf16.mxu0 0
    %1046 = vmatpush1.bf16.msra.mxu0 %v774
    %1047 = vmatprep.subr.bf16.mxu0 0
    %1048 = vmatpush1.bf16.msra.mxu0 %v773
    %1049 = vmatprep.subr.bf16.mxu0 0
    %1050 = vmatpush1.bf16.msra.mxu0 %v772
    %1051 = vmatprep.subr.bf16.mxu0 0
    %1052 = vmatpush1.bf16.msra.mxu0 %v771
    %1053 = vmatprep.subr.bf16.mxu0 0
    %1054 = vmatpush1.bf16.msra.mxu0 %v770
    %1055 = vmatprep.subr.bf16.mxu0 0
    %1056 = vmatpush1.bf16.msra.mxu0 %v769
    %1057 = vmatprep.subr.bf16.mxu0 0
    %1058 = vmatpush2.bf16.msra.mxu0 %v784
    %1059 = vmatprep.subr.bf16.mxu0 0
    %1060 = vmatpush2.bf16.msra.mxu0 %v783
    %1061 = vmatprep.subr.bf16.mxu0 0
    %1062 = vmatpush2.bf16.msra.mxu0 %v782
    %1063 = vmatprep.subr.bf16.mxu0 0
    %1064 = vmatpush2.bf16.msra.mxu0 %v781
    %1065 = vmatprep.subr.bf16.mxu0 0
    %1066 = vmatpush2.bf16.msra.mxu0 %v780
    %1067 = vmatprep.subr.bf16.mxu0 0
    %1068 = vmatpush2.bf16.msra.mxu0 %v779
    %1069 = vmatprep.subr.bf16.mxu0 0
    %1070 = vmatpush2.bf16.msra.mxu0 %v778
    %1071 = vmatprep.subr.bf16.mxu0 0
    %1072 = vmatpush2.bf16.msra.mxu0 %v777
    %1073 = vmatprep.mubr.bf16.mxu0 %v277
    %1074 = vmatmul.mubr.bf16.gmra.mxu0 %v275
    %v1075 = vpop.f32.mrf.mxu0
    %v1076 = vadd.f32 %v1036, %v1075
    %v1077 = vpop.f32.mrf.mxu0
    %v1078 = vpop.f32.mrf.mxu0
    %v1079 = vpop.f32.mrf.mxu0
    %1080 = vdwg.mxu0
    %1081 = vmatprep.subr.bf16.mxu0 0
    %1082 = vmatpush1.bf16.msra.mxu0 %v792
    %1083 = vmatprep.subr.bf16.mxu0 0
    %1084 = vmatpush1.bf16.msra.mxu0 %v791
    %1085 = vmatprep.subr.bf16.mxu0 0
    %1086 = vmatpush1.bf16.msra.mxu0 %v790
    %1087 = vmatprep.subr.bf16.mxu0 0
    %1088 = vmatpush1.bf16.msra.mxu0 %v789
    %1089 = vmatprep.subr.bf16.mxu0 0
    %1090 = vmatpush1.bf16.msra.mxu0 %v788
    %1091 = vmatprep.subr.bf16.mxu0 0
    %1092 = vmatpush1.bf16.msra.mxu0 %v787
    %1093 = vmatprep.subr.bf16.mxu0 0
    %1094 = vmatpush1.bf16.msra.mxu0 %v786
    %1095 = vmatprep.subr.bf16.mxu0 0
    %1096 = vmatpush1.bf16.msra.mxu0 %v785
    %1097 = vmatprep.subr.bf16.mxu0 0
    %1098 = vmatpush2.bf16.msra.mxu0 %v800
    %1099 = vmatprep.subr.bf16.mxu0 0
    %1100 = vmatpush2.bf16.msra.mxu0 %v799
    %1101 = vmatprep.subr.bf16.mxu0 0
    %1102 = vmatpush2.bf16.msra.mxu0 %v798
    %1103 = vmatprep.subr.bf16.mxu0 0
    %1104 = vmatpush2.bf16.msra.mxu0 %v797
    %1105 = vmatprep.subr.bf16.mxu0 0
    %1106 = vmatpush2.bf16.msra.mxu0 %v796
    %1107 = vmatprep.subr.bf16.mxu0 0
    %1108 = vmatpush2.bf16.msra.mxu0 %v795
    %1109 = vmatprep.subr.bf16.mxu0 0
    %1110 = vmatpush2.bf16.msra.mxu0 %v794
    %1111 = vmatprep.subr.bf16.mxu0 0
    %1112 = vmatpush2.bf16.msra.mxu0 %v793
    %1113 = vmatprep.mubr.bf16.mxu0 %v314
    %1114 = vmatmul.mubr.bf16.gmra.mxu0 %v300
    %v1115 = vpop.f32.mrf.mxu0
    %v1116 = vadd.f32 %v1076, %v1115
    %v1117 = vpop.f32.mrf.mxu0
    %v1118 = vpop.f32.mrf.mxu0
    %v1119 = vpop.f32.mrf.mxu0
    %1120 = vdwg.mxu0
    %1121 = vmatprep.subr.bf16.mxu0 0
    %1122 = vmatpush1.bf16.msra.mxu0 %v808
    %1123 = vmatprep.subr.bf16.mxu0 0
    %1124 = vmatpush1.bf16.msra.mxu0 %v807
    %1125 = vmatprep.subr.bf16.mxu0 0
    %1126 = vmatpush1.bf16.msra.mxu0 %v806
    %1127 = vmatprep.subr.bf16.mxu0 0
    %1128 = vmatpush1.bf16.msra.mxu0 %v805
    %1129 = vmatprep.subr.bf16.mxu0 0
    %1130 = vmatpush1.bf16.msra.mxu0 %v804
    %1131 = vmatprep.subr.bf16.mxu0 0
    %1132 = vmatpush1.bf16.msra.mxu0 %v803
    %1133 = vmatprep.subr.bf16.mxu0 0
    %1134 = vmatpush1.bf16.msra.mxu0 %v802
    %1135 = vmatprep.subr.bf16.mxu0 0
    %1136 = vmatpush1.bf16.msra.mxu0 %v801
    %1137 = vmatprep.subr.bf16.mxu0 0
    %1138 = vmatpush2.bf16.msra.mxu0 %v816
    %1139 = vmatprep.subr.bf16.mxu0 0
    %1140 = vmatpush2.bf16.msra.mxu0 %v815
    %1141 = vmatprep.subr.bf16.mxu0 0
    %1142 = vmatpush2.bf16.msra.mxu0 %v814
    %1143 = vmatprep.subr.bf16.mxu0 0
    %1144 = vmatpush2.bf16.msra.mxu0 %v813
    %1145 = vmatprep.subr.bf16.mxu0 0
    %1146 = vmatpush2.bf16.msra.mxu0 %v812
    %1147 = vmatprep.subr.bf16.mxu0 0
    %1148 = vmatpush2.bf16.msra.mxu0 %v811
    %1149 = vmatprep.subr.bf16.mxu0 0
    %1150 = vmatpush2.bf16.msra.mxu0 %v810
    %1151 = vmatprep.subr.bf16.mxu0 0
    %1152 = vmatpush2.bf16.msra.mxu0 %v809
    %1153 = vmatprep.mubr.bf16.mxu0 %v316
    %1154 = vmatmul.mubr.bf16.gmra.mxu0 %v315
    %v1155 = vpop.f32.mrf.mxu0
    %v1156 = vadd.f32 %v1116, %v1155
    %v1157 = vpop.f32.mrf.mxu0
    %v1158 = vpop.f32.mrf.mxu0
    %v1159 = vpop.f32.mrf.mxu0
    %1160 = vdwg.mxu0
    %1161 = vmatprep.subr.bf16.mxu0 0
    %1162 = vmatpush1.bf16.msra.mxu0 0
    %1163 = vmatprep.subr.bf16.mxu0 0
    %1164 = vmatpush1.bf16.msra.mxu0 0
    %1165 = vmatprep.subr.bf16.mxu0 0
    %1166 = vmatpush1.bf16.msra.mxu0 0
    %1167 = vmatprep.subr.bf16.mxu0 0
    %1168 = vmatpush1.bf16.msra.mxu0 0
    %1169 = vmatprep.subr.bf16.mxu0 0
    %1170 = vmatpush1.bf16.msra.mxu0 0
    %1171 = vmatprep.subr.bf16.mxu0 0
    %1172 = vmatpush1.bf16.msra.mxu0 0
    %1173 = vmatprep.subr.bf16.mxu0 0
    %1174 = vmatpush1.bf16.msra.mxu0 %v818
    %1175 = vmatprep.subr.bf16.mxu0 0
    %1176 = vmatpush1.bf16.msra.mxu0 %v817
    %1177 = vmatprep.subr.bf16.mxu0 0
    %1178 = vmatpush2.bf16.msra.mxu0 0
    %1179 = vmatprep.subr.bf16.mxu0 0
    %1180 = vmatpush2.bf16.msra.mxu0 0
    %1181 = vmatprep.subr.bf16.mxu0 0
    %1182 = vmatpush2.bf16.msra.mxu0 0
    %1183 = vmatprep.subr.bf16.mxu0 0
    %1184 = vmatpush2.bf16.msra.mxu0 0
    %1185 = vmatprep.subr.bf16.mxu0 0
    %1186 = vmatpush2.bf16.msra.mxu0 0
    %1187 = vmatprep.subr.bf16.mxu0 0
    %1188 = vmatpush2.bf16.msra.mxu0 0
    %1189 = vmatprep.subr.bf16.mxu0 0
    %1190 = vmatpush2.bf16.msra.mxu0 0
    %1191 = vmatprep.subr.bf16.mxu0 0
    %1192 = vmatpush2.bf16.msra.mxu0 0
    %1193 = vmatprep.mubr.bf16.mxu0 0
    %1194 = vmatmul.mubr.bf16.gmra.mxu0 %v919
    %v1195 = vpop.f32.mrf.mxu0
    %v1196 = vadd.f32 %v1156, %v1195
    %v1197 = vpop.f32.mrf.mxu0
    %v1198 = vpop.f32.mrf.mxu0
    %v1199 = vpop.f32.mrf.mxu0
    %1200 = vdwg.mxu0
    %v1201 = vmax.f32 %v1196, 0.0
    %v1202 = vpack.c.bf16 %v1201, %v1201
    %v1203 = vld [vmem:[%s3] sm:$0xf]
    %v1204 = vld [vmem:[%s3 + $0x4] sm:$0xf]
    %v1205 = vld [vmem:[%s3 + $0x8] sm:$0xf]
    %v1206 = vld [vmem:[%s3 + $0xc] sm:$0xf]
    %v1207 = vld [vmem:[%s3 + $0x10] sm:$0xf]
    %v1208 = vld [vmem:[%s3 + $0x14] sm:$0xf]
    %v1209 = vld [vmem:[%s3 + $0x18] sm:$0xf]
    %v1210 = vld [vmem:[%s3 + $0x1c] sm:$0xf]
    %v1211 = vld [vmem:[%s3 + $0x20] sm:$0xf]
    %v1212 = vld [vmem:[%s3 + $0x24] sm:$0xf]
    %v1213 = vld [vmem:[%s3 + $0x28] sm:$0xf]
    %v1214 = vld [vmem:[%s3 + $0x2c] sm:$0xf]
    %v1215 = vld [vmem:[%s3 + $0x30] sm:$0xf]
    %v1216 = vld [vmem:[%s3 + $0x34] sm:$0xf]
    %v1217 = vld [vmem:[%s3 + $0x38] sm:$0xf]
    %v1218 = vld [vmem:[%s3 + $0x3c] sm:$0xf]
    %v1219 = vld [vmem:[%s4] sm:$0x1]
    %v1221 = vlaneseq
    %v1222 = vshrl.u32 %v1221, 7
    %v1223 = vsub.s32 0, %v1222
    %v1224 = vrot.slane %v1219, %v1223
    %v1242 = vunpack.c.l.b16 %v1203
    %v1243 = vunpack.c.l.b16 %v1204
    %v1244 = vunpack.c.l.b16 %v1205
    %v1245 = vunpack.c.l.b16 %v1206
    %v1246 = vunpack.c.l.b16 %v1207
    %v1247 = vunpack.c.l.b16 %v1208
    %v1248 = vunpack.c.l.b16 %v1209
    %v1249 = vunpack.c.l.b16 %v1210
    %v1250 = vunpack.c.l.b16 %v1211
    %v1251 = vunpack.c.l.b16 %v1212
    %v1252 = vunpack.c.l.b16 %v1213
    %v1253 = vunpack.c.l.b16 %v1214
    %v1254 = vunpack.c.l.b16 %v1215
    %v1255 = vunpack.c.l.b16 %v1216
    %v1256 = vunpack.c.l.b16 %v1217
    %v1257 = vunpack.c.l.b16 %v1218
    %v1258 = vpack.c.b16 %v1243, %v1242
    %v1259 = vpack.c.b16 %v1245, %v1244
    %v1260 = vpack.c.b16 %v1247, %v1246
    %v1261 = vpack.c.b16 %v1249, %v1248
    %v1262 = vpack.c.b16 %v1251, %v1250
    %v1263 = vpack.c.b16 %v1253, %v1252
    %v1264 = vpack.c.b16 %v1255, %v1254
    %v1265 = vpack.c.b16 %v1257, %v1256
    %1274 = vmatprep.subr.bf16.mxu0 0
    %1275 = vmatpush1.bf16.msra.mxu0 %v1265
    %1276 = vmatprep.subr.bf16.mxu0 0
    %1277 = vmatpush1.bf16.msra.mxu0 %v1264
    %1278 = vmatprep.subr.bf16.mxu0 0
    %1279 = vmatpush1.bf16.msra.mxu0 %v1263
    %1280 = vmatprep.subr.bf16.mxu0 0
    %1281 = vmatpush1.bf16.msra.mxu0 %v1262
    %1282 = vmatprep.subr.bf16.mxu0 0
    %1283 = vmatpush1.bf16.msra.mxu0 %v1261
    %1284 = vmatprep.subr.bf16.mxu0 0
    %1285 = vmatpush1.bf16.msra.mxu0 %v1260
    %1286 = vmatprep.subr.bf16.mxu0 0
    %1287 = vmatpush1.bf16.msra.mxu0 %v1259
    %1288 = vmatprep.subr.bf16.mxu0 0
    %1289 = vmatpush1.bf16.msra.mxu0 %v1258
    %1290 = vmatprep.subr.bf16.mxu0 0
    %1291 = vmatpush2.bf16.msra.mxu0 0
    %1292 = vmatprep.subr.bf16.mxu0 0
    %1293 = vmatpush2.bf16.msra.mxu0 0
    %1294 = vmatprep.subr.bf16.mxu0 0
    %1295 = vmatpush2.bf16.msra.mxu0 0
    %1296 = vmatprep.subr.bf16.mxu0 0
    %1297 = vmatpush2.bf16.msra.mxu0 0
    %1298 = vmatprep.subr.bf16.mxu0 0
    %1299 = vmatpush2.bf16.msra.mxu0 0
    %1300 = vmatprep.subr.bf16.mxu0 0
    %1301 = vmatpush2.bf16.msra.mxu0 0
    %1302 = vmatprep.subr.bf16.mxu0 0
    %1303 = vmatpush2.bf16.msra.mxu0 0
    %1304 = vmatprep.subr.bf16.mxu0 0
    %1305 = vmatpush2.bf16.msra.mxu0 0
    %1306 = vmatprep.mubr.bf16.mxu0 0
    %1307 = vmatmul.mubr.bf16.gmra.mxu0 %v1202
    %v1308 = vpop.f32.mrf.mxu0
    %v1309 = vadd.f32 %v1224, %v1308
    %v1310 = vpop.f32.mrf.mxu0
    %v1311 = vpop.f32.mrf.mxu0
    %v1312 = vpop.f32.mrf.mxu0
    %1313 = vdwg.mxu0
    %1314 = vst [vmem:[#allocation2] sm:$0x3] %v1309
    // Predicated region
    $region22: #{simple_cnn_forward.5} parent=1 // pred_check
      _
    $region23: #{simple_cnn_forward.5} parent=1 // pred_check_branch
      %1316 = sbr.rel (0) target = $region25
    $region24: #{simple_cnn_forward.5} parent=1 // pred_region
      %s1318 = ssub.s32 32, 32
      %1319 = vsyncadd [#allocation3], %s1318
      %s1321 = sshll.u32 [#allocation2], 4
      %s1322 = int_to_ptr.vmem [resolvable:$true] %s1321
      %1324 = dma.vmem_to_hbm [thread:$0]  %s1322, 32, %s5, [#allocation3]
    $region25: #{simple_cnn_forward.5} parent=1 // pred_fallthru
      _
    // Predicated region
    $region26: #{simple_cnn_forward.5} parent=1 // pred_check
      _
    $region27: #{simple_cnn_forward.5} parent=1 // pred_check_branch
      %1326 = sbr.rel (0) target = $region29
    $region28: #{simple_cnn_forward.5} parent=1 // pred_region
      %1327 = dma.done [#allocation3], 32
    $region29: #{simple_cnn_forward.5} parent=1 // pred_fallthru
      _
    %1328 = vsyncpa [#allocation3], 1

</llo_original>
